<compile_context>
chip_gen: v7x
topology: tpu7x:2x2x1
jax: 0.10.0
libtpu: 0.0.40
codegen_flags: <defaults>
</compile_context>

<pallas_src>
import jax
import jax.numpy as jnp
from jax.experimental import pallas as pl
from jax.experimental.pallas import tpu as pltpu


def _siren_fused_kernel(*refs):
    """refs = (x_ref, w_0, b_0, w_1, b_1, ..., w_{L-1}, b_{L-1}, o_ref).

    x_ref : (d_in, tile_n)     activation tile, batch on the lane axis
    w_l   : (d_out_l, d_in_l)  layer weight with w0 pre-folded in
    b_l   : (d_out_l, 1)       layer bias (lane-broadcast)
    o_ref : (d_out_last, tile_n)
    """
    x_ref, o_ref = refs[0], refs[-1]
    wb = refs[1:-1]
    num_layers = len(wb) // 2

    h = x_ref[...].astype(jnp.float32)                  # (d_in, tile_n)
    for l in range(num_layers):
        w = wb[2 * l][...].astype(jnp.float32)          # (d_out, d_in)
        b = wb[2 * l + 1][...].astype(jnp.float32)      # (d_out, 1)
        h = jnp.dot(w, h, preferred_element_type=jnp.float32) + b   # MXU
        if l < num_layers - 1:                          # Sine on all but last
            h = jnp.sin(h)                              # (last layer: Identity)
    o_ref[...] = h.astype(o_ref.dtype)


def siren_net_forward(x, pallas_params, *, tile_n=512):
    """Fused SirenNet forward.

    x             : (N, dim_in) coordinates (PyTorch layout)
    pallas_params : list of (W_scaled (d_out, d_in), b (d_out, 1)) per layer
    returns       : (N, dim_out)
    """
    assert tile_n % 128 == 0, "tile_n must be a multiple of 128 (lane axis)"
    n, d_in = x.shape
    d_out = pallas_params[-1][0].shape[0]
    n_pad = pl.cdiv(n, tile_n) * tile_n

    # Layout plumbing only: put the batch on the lane axis, pad to tile_n.
    xt = jnp.pad(x.T, ((0, 0), (0, n_pad - n)))          # (d_in, n_pad)

    in_specs = [pl.BlockSpec((d_in, tile_n), lambda i: (0, i))]      # x tile
    args = [xt]
    for w, b in pallas_params:
        do, di = w.shape
        in_specs.append(pl.BlockSpec((do, di), lambda i: (0, 0)))    # resident W
        in_specs.append(pl.BlockSpec((do, 1), lambda i: (0, 0)))     # resident b
        args += [w, b]

    out_t = pl.pallas_call(
        _siren_fused_kernel,
        out_shape=jax.ShapeDtypeStruct((d_out, n_pad), x.dtype),
        grid_spec=pltpu.PrefetchScalarGridSpec(
            num_scalar_prefetch=0,
            grid=(n_pad // tile_n,),
            in_specs=in_specs,
            out_specs=pl.BlockSpec((d_out, tile_n), lambda i: (0, i)),
        ),
        compiler_params=pltpu.CompilerParams(
            dimension_semantics=("parallel",)),
    )(*args)

    return out_t[:, :n].T                                # back to (N, dim_out)


def init_siren_params(key, dim_in, dim_hidden, dim_out, w0=30.0, w0_first=30.0,
                      c=6.0, dtype=jnp.float32):
    """Deterministic parameter init matching Siren.init_ / nn.Linear defaults."""
    dims = [dim_in] + list(dim_hidden) + [dim_out]
    params = []
    for ind in range(len(dims) - 1):
        is_first = ind == 0
        is_last = ind == len(dims) - 2
        layer_w0 = w0_first if is_first else w0
        d_i, d_o = dims[ind], dims[ind + 1]
        key, kw, kb = jax.random.split(key, 3)
        if is_first:
            bound_w = 1.0 / d_i
        else:
            bound_w = (c / d_i) ** 0.5 / layer_w0
        w = jax.random.uniform(kw, (d_o, d_i), dtype, -bound_w, bound_w)
        # nn.Linear default bias init: U(-1/sqrt(fan_in), 1/sqrt(fan_in))
        bound_b = 1.0 / (d_i ** 0.5)
        b = jax.random.uniform(kb, (d_o,), dtype, -bound_b, bound_b)
        params.append(dict(w=w, b=b, w0=layer_w0, apply_sine=not is_last))
    return params


def prepare_pallas_params(params):
    """One-time transform: fold w0 into W, reshape bias to a (d_out, 1) column."""
    out = []
    for p in params:
        w_scaled = jnp.asarray(p["w0"], p["w"].dtype) * p["w"]   # (d_out, d_in)
        b_col = p["b"].reshape(-1, 1)                            # (d_out, 1)
        out.append((w_scaled, b_col))
    return out


def siren_net_reference(x, params):
    """Pure-JAX reference mirroring the PyTorch SirenNet.forward exactly."""
    for p in params:
        y = (p["w0"] * x) @ p["w"].T + p["b"]
        x = jnp.sin(y) if p["apply_sine"] else y
    return x


if __name__ == "__main__":
    # SIREN coordinate MLP: N points, dim_in=2 coords, hidden [32, 32], dim_out=3.
    N, DIM_IN, DIM_HIDDEN, DIM_OUT = 1024, 2, [32, 32], 3
    TILE_N = 512   # 2 grid steps -> both TensorCores used on v7x

    key = jax.random.PRNGKey(0)
    kx, kp = jax.random.split(key)
    x = jax.random.uniform(kx, (N, DIM_IN), jnp.float32, -1.0, 1.0)
    params = init_siren_params(kp, DIM_IN, DIM_HIDDEN, DIM_OUT,
                               w0=30.0, w0_first=30.0)
    pallas_params = prepare_pallas_params(params)

    out = jax.block_until_ready(
        siren_net_forward(x, pallas_params, tile_n=TILE_N))
    ref = jax.block_until_ready(siren_net_reference(x, params))

    assert out.shape == (N, DIM_OUT), out.shape
    assert jnp.allclose(out, ref, atol=1e-4, rtol=1e-4), \
        float(jnp.max(jnp.abs(out - ref)))
    print("KERNEL_OK")
</pallas_src>

<mosaic_0001>
module attributes {stable_mosaic.version = 11 : i64} {
  func.func @_siren_fused_kernel(%arg0: i32, %arg1: memref<2x512xf32, #tpu.memory_space<vmem>>, %arg2: memref<32x2xf32, #tpu.memory_space<vmem>>, %arg3: memref<32x1xf32, #tpu.memory_space<vmem>>, %arg4: memref<32x32xf32, #tpu.memory_space<vmem>>, %arg5: memref<32x1xf32, #tpu.memory_space<vmem>>, %arg6: memref<3x32xf32, #tpu.memory_space<vmem>>, %arg7: memref<3x1xf32, #tpu.memory_space<vmem>>, %arg8: memref<3x512xf32, #tpu.memory_space<vmem>>) attributes {dimension_semantics = [#tpu.dimension_semantics<parallel>], iteration_bounds = array<i64: 2>, scalar_prefetch = 0 : i64, scratch_operands = 0 : i64, tpu.core_type = #tpu.core_type<tc>, window_params = [{transform_indices = @transform_0, window_bounds = array<i64: 2, 512>}, {pipeline_mode = #tpu.pipeline_mode<synchronous>, transform_indices = @transform_1, window_bounds = array<i64: 32, 2>}, {pipeline_mode = #tpu.pipeline_mode<synchronous>, transform_indices = @transform_2, window_bounds = array<i64: 32, 1>}, {pipeline_mode = #tpu.pipeline_mode<synchronous>, transform_indices = @transform_3, window_bounds = array<i64: 32, 32>}, {pipeline_mode = #tpu.pipeline_mode<synchronous>, transform_indices = @transform_4, window_bounds = array<i64: 32, 1>}, {pipeline_mode = #tpu.pipeline_mode<synchronous>, transform_indices = @transform_5, window_bounds = array<i64: 3, 32>}, {pipeline_mode = #tpu.pipeline_mode<synchronous>, transform_indices = @transform_6, window_bounds = array<i64: 3, 1>}, {transform_indices = @transform_7, window_bounds = array<i64: 3, 512>}]} {
    %c0 = arith.constant 0 : index
    %c0_0 = arith.constant 0 : index
    %0 = vector.load %arg1[%c0, %c0_0] : memref<2x512xf32, #tpu.memory_space<vmem>>, vector<2x512xf32>
    %c0_1 = arith.constant 0 : index
    %c0_2 = arith.constant 0 : index
    %1 = vector.load %arg2[%c0_1, %c0_2] : memref<32x2xf32, #tpu.memory_space<vmem>>, vector<32x2xf32>
    %c0_3 = arith.constant 0 : index
    %c0_4 = arith.constant 0 : index
    %2 = vector.load %arg3[%c0_3, %c0_4] : memref<32x1xf32, #tpu.memory_space<vmem>>, vector<32x1xf32>
    %cst = arith.constant dense<0.000000e+00> : vector<32x512xf32>
    %3 = tpu.matmul %1, %0, %cst {dimension_numbers = #tpu.dot_dimension_numbers<[1], [0], [0], [1], [0, 0, 1, 1], [], []>} : vector<32x2xf32>, vector<2x512xf32>, vector<32x512xf32> -> vector<32x512xf32>
    %4 = vector.broadcast %2 : vector<32x1xf32> to vector<32x512xf32>
    %5 = arith.addf %3, %4 : vector<32x512xf32>
    %6 = math.sin %5 : vector<32x512xf32>
    %c0_5 = arith.constant 0 : index
    %c0_6 = arith.constant 0 : index
    %7 = vector.load %arg4[%c0_5, %c0_6] : memref<32x32xf32, #tpu.memory_space<vmem>>, vector<32x32xf32>
    %c0_7 = arith.constant 0 : index
    %c0_8 = arith.constant 0 : index
    %8 = vector.load %arg5[%c0_7, %c0_8] : memref<32x1xf32, #tpu.memory_space<vmem>>, vector<32x1xf32>
    %cst_9 = arith.constant dense<0.000000e+00> : vector<32x512xf32>
    %9 = tpu.matmul %7, %6, %cst_9 {dimension_numbers = #tpu.dot_dimension_numbers<[1], [0], [0], [1], [0, 0, 1, 1], [], []>} : vector<32x32xf32>, vector<32x512xf32>, vector<32x512xf32> -> vector<32x512xf32>
    %10 = vector.broadcast %8 : vector<32x1xf32> to vector<32x512xf32>
    %11 = arith.addf %9, %10 : vector<32x512xf32>
    %12 = math.sin %11 : vector<32x512xf32>
    %c0_10 = arith.constant 0 : index
    %c0_11 = arith.constant 0 : index
    %13 = vector.load %arg6[%c0_10, %c0_11] : memref<3x32xf32, #tpu.memory_space<vmem>>, vector<3x32xf32>
    %c0_12 = arith.constant 0 : index
    %c0_13 = arith.constant 0 : index
    %14 = vector.load %arg7[%c0_12, %c0_13] : memref<3x1xf32, #tpu.memory_space<vmem>>, vector<3x1xf32>
    %cst_14 = arith.constant dense<0.000000e+00> : vector<3x512xf32>
    %15 = tpu.matmul %13, %12, %cst_14 {dimension_numbers = #tpu.dot_dimension_numbers<[1], [0], [0], [1], [0, 0, 1, 1], [], []>} : vector<3x32xf32>, vector<32x512xf32>, vector<3x512xf32> -> vector<3x512xf32>
    %16 = vector.broadcast %14 : vector<3x1xf32> to vector<3x512xf32>
    %17 = arith.addf %15, %16 : vector<3x512xf32>
    %c0_15 = arith.constant 0 : index
    %c0_16 = arith.constant 0 : index
    %18 = vector.load %arg8[%c0_15, %c0_16] : memref<3x512xf32, #tpu.memory_space<vmem>>, vector<3x512xf32>
    tpu.vector_store %arg8[%c0_15, %c0_16], %17 {strides = array<i32>} : memref<3x512xf32, #tpu.memory_space<vmem>>, vector<3x512xf32>,
    return
  }
  func.func @transform_0(%arg0: i32) -> (i32, i32) {
    %c0_i32 = arith.constant 0 : i32
    %c0_i32_0 = arith.constant 0 : i32
    return %c0_i32, %arg0 : i32, i32
  }
  func.func @transform_1(%arg0: i32) -> (i32, i32) {
    %c0_i32 = arith.constant 0 : i32
    %c0_i32_0 = arith.constant 0 : i32
    %c0_i32_1 = arith.constant 0 : i32
    return %c0_i32, %c0_i32_0 : i32, i32
  }
  func.func @transform_2(%arg0: i32) -> (i32, i32) {
    %c0_i32 = arith.constant 0 : i32
    %c0_i32_0 = arith.constant 0 : i32
    %c0_i32_1 = arith.constant 0 : i32
    return %c0_i32, %c0_i32_0 : i32, i32
  }
  func.func @transform_3(%arg0: i32) -> (i32, i32) {
    %c0_i32 = arith.constant 0 : i32
    %c0_i32_0 = arith.constant 0 : i32
    %c0_i32_1 = arith.constant 0 : i32
    return %c0_i32, %c0_i32_0 : i32, i32
  }
  func.func @transform_4(%arg0: i32) -> (i32, i32) {
    %c0_i32 = arith.constant 0 : i32
    %c0_i32_0 = arith.constant 0 : i32
    %c0_i32_1 = arith.constant 0 : i32
    return %c0_i32, %c0_i32_0 : i32, i32
  }
  func.func @transform_5(%arg0: i32) -> (i32, i32) {
    %c0_i32 = arith.constant 0 : i32
    %c0_i32_0 = arith.constant 0 : i32
    %c0_i32_1 = arith.constant 0 : i32
    return %c0_i32, %c0_i32_0 : i32, i32
  }
  func.func @transform_6(%arg0: i32) -> (i32, i32) {
    %c0_i32 = arith.constant 0 : i32
    %c0_i32_0 = arith.constant 0 : i32
    %c0_i32_1 = arith.constant 0 : i32
    return %c0_i32, %c0_i32_0 : i32, i32
  }
  func.func @transform_7(%arg0: i32) -> (i32, i32) {
    %c0_i32 = arith.constant 0 : i32
    %c0_i32_0 = arith.constant 0 : i32
    return %c0_i32, %arg0 : i32, i32
  }
}

</mosaic_0001>

<llo_original>
// kernel: tpu_custom_call.1
$region0: #{tpu_custom_call.1}
  #allocation0 [shape = 'u32[]', space=smem, size = 0x4, offset = 0x4, fixed_abs, tag = 'smem constant byte address 0x4 - core index']
  #allocation1 [shape = 'u32[144,128]{1,0:T(1,128)}', space=vmem, size = 0x12000, scoped, tag = 'internal scratch']
  %s0 = inlined_call_operand.vmem [shape: f32[2,1024], index: 0, kind: input, shape index: {}]
  %s1 = inlined_call_operand.vmem [shape: f32[32,2], index: 1, kind: input, shape index: {}]
  %s2 = inlined_call_operand.vmem [shape: f32[32,1], index: 2, kind: input, shape index: {}]
  %s3 = inlined_call_operand.vmem [shape: f32[32,32], index: 3, kind: input, shape index: {}]
  %s4 = inlined_call_operand.vmem [shape: f32[32,1], index: 4, kind: input, shape index: {}]
  %s5 = inlined_call_operand.vmem [shape: f32[3,32], index: 5, kind: input, shape index: {}]
  %s6 = inlined_call_operand.vmem [shape: f32[3,1], index: 6, kind: input, shape index: {}]
  %s7 = inlined_call_operand.hbm [shape: f32[3,1024], index: 7, kind: output, shape index: {}]
  %s8 = sld [smem:[#allocation0]]
  $region61: #{tpu_custom_call.1} parent=0
    _
  %s10 = ssub.s32 1, %s8
  %s11 = scalar_select 0, %s10, %s8
  $region1: #{tpu_custom_call.1} parent=0
    #allocation2 [shape = 'u8[16384]{0}', space=vmem, size = 0x4000, scoped, tag = 'output window, operand 0']
    #allocation3 [shape = 's32[2]{0}', space=sflag, size = 0x8, scoped, tag = 'scoped memory for tpu_custom_call.1']
    %12 = vsyncpa [#allocation3], 0
    %s13 = scalar_lea.sflag [#allocation3], 1
    %14 = vsyncpa %s13, 0
    loop: start=0, step=1, limit=4
    $region2: #{tpu_custom_call.1} parent=1 // loop_pre_header
      _
    $region3: #{tpu_custom_call.1} parent=1 // loop_header
      %s16 = sphi 0, %s20
      %p17 = scmp.ge.s32.totalorder %s16, 4
      %s26 = sphi 0, %s28
      %s29 = sphi 0, %s26
      %s30 = sphi 0, %s29
      %s46 = sphi 0, %s30
      %s50 = sphi 0, %s50
      %s52 = sphi 0, %s50
      %s53 = sphi 0, %s52
      %s67 = sphi 0, %s53
      %s71 = sphi 0, %s71
      %s73 = sphi 0, %s71
      %s74 = sphi 0, %s73
      %s88 = sphi 0, %s74
      %s92 = sphi 0, %s92
      %s94 = sphi 0, %s92
      %s95 = sphi 0, %s94
      %s109 = sphi 0, %s95
      %s113 = sphi 0, %s113
      %s115 = sphi 0, %s113
      %s116 = sphi 0, %s115
      %s130 = sphi 0, %s116
      %s134 = sphi 0, %s134
      %s136 = sphi 0, %s134
      %s137 = sphi 0, %s136
      %s151 = sphi 0, %s137
      %s155 = sphi 0, %s155
      %s157 = sphi 0, %s155
      %s158 = sphi 0, %s157
      %s172 = sphi 0, %s158
      %s178 = sphi 0, %s180
      %s181 = sphi 0, %s178
      %s182 = sphi 0, %s181
      %s198 = sphi 0, %s182
    $region4: #{tpu_custom_call.1} parent=1 // loop_header_branch
      %19 = sbr.rel (%p17) target = $region8
    $region5: #{tpu_custom_call.1} parent=1 // loop_body
      %s21 = ssub.s32 %s16, 1
      %s22 = ssub.s32 %s16, 2
      %s23 = sadd.s32 %s16, 1
      %s24 = ssub.s32 %s16, %s23
      %p25 = scmp.eq.s32.totalorder %s24, 0
      %s27 = sadd.s32 %s26, 1
      %s28 = scalar_select %p25, %s26, %s27
      %p31 = pneg %p25
      %p32 = scmp.eq.s32.totalorder %s16, 1
      %p33 = por %p31, %p32
      %p34 = scmp.ne.s32.totalorder %s26, %s29
      %p35 = scmp.eq.s32.totalorder %s16, 0
      %p36 = por %p34, %p35
      %p37 = scmp.ne.s32.totalorder %s26, %s29
      %p38 = scmp.eq.s32.totalorder %s21, 1
      %p39 = por %p37, %p38
      %p40 = scmp.ne.s32.totalorder %s29, %s30
      %p41 = scmp.eq.s32.totalorder %s21, 0
      %p42 = por %p40, %p41
      %p43 = scmp.ne.s32.totalorder %s29, %s30
      %p44 = scmp.eq.s32.totalorder %s22, 1
      %p45 = por %p43, %p44
      %p47 = scmp.ne.s32.totalorder %s30, %s46
      %p48 = scmp.eq.s32.totalorder %s22, 0
      %p49 = por %p47, %p48
      %s51 = sadd.s32 %s50, 1
      %p54 = scmp.eq.s32.totalorder %s16, 1
      %p55 = scmp.ne.s32.totalorder %s50, %s52
      %p56 = scmp.eq.s32.totalorder %s16, 0
      %p57 = por %p55, %p56
      %p58 = scmp.ne.s32.totalorder %s50, %s52
      %p59 = scmp.eq.s32.totalorder %s21, 1
      %p60 = por %p58, %p59
      %p61 = scmp.ne.s32.totalorder %s52, %s53
      %p62 = scmp.eq.s32.totalorder %s21, 0
      %p63 = por %p61, %p62
      %p64 = scmp.ne.s32.totalorder %s52, %s53
      %p65 = scmp.eq.s32.totalorder %s22, 1
      %p66 = por %p64, %p65
      %p68 = scmp.ne.s32.totalorder %s53, %s67
      %p69 = scmp.eq.s32.totalorder %s22, 0
      %p70 = por %p68, %p69
      %s72 = sadd.s32 %s71, 1
      %p75 = scmp.eq.s32.totalorder %s16, 1
      %p76 = scmp.ne.s32.totalorder %s71, %s73
      %p77 = scmp.eq.s32.totalorder %s16, 0
      %p78 = por %p76, %p77
      %p79 = scmp.ne.s32.totalorder %s71, %s73
      %p80 = scmp.eq.s32.totalorder %s21, 1
      %p81 = por %p79, %p80
      %p82 = scmp.ne.s32.totalorder %s73, %s74
      %p83 = scmp.eq.s32.totalorder %s21, 0
      %p84 = por %p82, %p83
      %p85 = scmp.ne.s32.totalorder %s73, %s74
      %p86 = scmp.eq.s32.totalorder %s22, 1
      %p87 = por %p85, %p86
      %p89 = scmp.ne.s32.totalorder %s74, %s88
      %p90 = scmp.eq.s32.totalorder %s22, 0
      %p91 = por %p89, %p90
      %s93 = sadd.s32 %s92, 1
      %p96 = scmp.eq.s32.totalorder %s16, 1
      %p97 = scmp.ne.s32.totalorder %s92, %s94
      %p98 = scmp.eq.s32.totalorder %s16, 0
      %p99 = por %p97, %p98
      %p100 = scmp.ne.s32.totalorder %s92, %s94
      %p101 = scmp.eq.s32.totalorder %s21, 1
      %p102 = por %p100, %p101
      %p103 = scmp.ne.s32.totalorder %s94, %s95
      %p104 = scmp.eq.s32.totalorder %s21, 0
      %p105 = por %p103, %p104
      %p106 = scmp.ne.s32.totalorder %s94, %s95
      %p107 = scmp.eq.s32.totalorder %s22, 1
      %p108 = por %p106, %p107
      %p110 = scmp.ne.s32.totalorder %s95, %s109
      %p111 = scmp.eq.s32.totalorder %s22, 0
      %p112 = por %p110, %p111
      %s114 = sadd.s32 %s113, 1
      %p117 = scmp.eq.s32.totalorder %s16, 1
      %p118 = scmp.ne.s32.totalorder %s113, %s115
      %p119 = scmp.eq.s32.totalorder %s16, 0
      %p120 = por %p118, %p119
      %p121 = scmp.ne.s32.totalorder %s113, %s115
      %p122 = scmp.eq.s32.totalorder %s21, 1
      %p123 = por %p121, %p122
      %p124 = scmp.ne.s32.totalorder %s115, %s116
      %p125 = scmp.eq.s32.totalorder %s21, 0
      %p126 = por %p124, %p125
      %p127 = scmp.ne.s32.totalorder %s115, %s116
      %p128 = scmp.eq.s32.totalorder %s22, 1
      %p129 = por %p127, %p128
      %p131 = scmp.ne.s32.totalorder %s116, %s130
      %p132 = scmp.eq.s32.totalorder %s22, 0
      %p133 = por %p131, %p132
      %s135 = sadd.s32 %s134, 1
      %p138 = scmp.eq.s32.totalorder %s16, 1
      %p139 = scmp.ne.s32.totalorder %s134, %s136
      %p140 = scmp.eq.s32.totalorder %s16, 0
      %p141 = por %p139, %p140
      %p142 = scmp.ne.s32.totalorder %s134, %s136
      %p143 = scmp.eq.s32.totalorder %s21, 1
      %p144 = por %p142, %p143
      %p145 = scmp.ne.s32.totalorder %s136, %s137
      %p146 = scmp.eq.s32.totalorder %s21, 0
      %p147 = por %p145, %p146
      %p148 = scmp.ne.s32.totalorder %s136, %s137
      %p149 = scmp.eq.s32.totalorder %s22, 1
      %p150 = por %p148, %p149
      %p152 = scmp.ne.s32.totalorder %s137, %s151
      %p153 = scmp.eq.s32.totalorder %s22, 0
      %p154 = por %p152, %p153
      %s156 = sadd.s32 %s155, 1
      %p159 = scmp.eq.s32.totalorder %s16, 1
      %p160 = scmp.ne.s32.totalorder %s155, %s157
      %p161 = scmp.eq.s32.totalorder %s16, 0
      %p162 = por %p160, %p161
      %p163 = scmp.ne.s32.totalorder %s155, %s157
      %p164 = scmp.eq.s32.totalorder %s21, 1
      %p165 = por %p163, %p164
      %p166 = scmp.ne.s32.totalorder %s157, %s158
      %p167 = scmp.eq.s32.totalorder %s21, 0
      %p168 = por %p166, %p167
      %p169 = scmp.ne.s32.totalorder %s157, %s158
      %p170 = scmp.eq.s32.totalorder %s22, 1
      %p171 = por %p169, %p170
      %p173 = scmp.ne.s32.totalorder %s158, %s172
      %p174 = scmp.eq.s32.totalorder %s22, 0
      %p175 = por %p173, %p174
      %s176 = ssub.s32 %s16, %s23
      %p177 = scmp.eq.s32.totalorder %s176, 0
      %s179 = sadd.s32 %s178, 1
      %s180 = scalar_select %p177, %s178, %s179
      %p183 = pneg %p177
      %p184 = scmp.eq.s32.totalorder %s16, 1
      %p185 = por %p183, %p184
      %p186 = scmp.ne.s32.totalorder %s178, %s181
      %p187 = scmp.eq.s32.totalorder %s16, 0
      %p188 = por %p186, %p187
      %p189 = scmp.ne.s32.totalorder %s178, %s181
      %p190 = scmp.eq.s32.totalorder %s21, 1
      %p191 = por %p189, %p190
      %p192 = scmp.ne.s32.totalorder %s181, %s182
      %p193 = scmp.eq.s32.totalorder %s21, 0
      %p194 = por %p192, %p193
      %p195 = scmp.ne.s32.totalorder %s181, %s182
      %p196 = scmp.eq.s32.totalorder %s22, 1
      %p197 = por %p195, %p196
      %p199 = scmp.ne.s32.totalorder %s182, %s198
      %p200 = scmp.eq.s32.totalorder %s22, 0
      %p201 = por %p199, %p200
      %p202 = scmp.le.s32.totalorder 1, %s16
      %p203 = scmp.lt.s32.totalorder %s16, 3
      %p204 = pnand %p202, %p203
      %p205 = pneg %p204
      // Predicated region
      $region9: #{tpu_custom_call.1} parent=5 // pred_check
        _
      $region10: #{tpu_custom_call.1} parent=5 // pred_check_branch
        %207 = sbr.rel (%p204) target = $region12
      $region11: #{tpu_custom_call.1} parent=5 // pred_region
        %s208 = ssub.s32 %s16, 1
        // Predicated region
        $region13: #{tpu_custom_call.1} parent=11 // pred_check
          %p209 = pneg %p63
        $region14: #{tpu_custom_call.1} parent=11 // pred_check_branch
          %211 = sbr.rel (%p209) target = $region16
        $region15: #{tpu_custom_call.1} parent=11 // pred_region
          _
        $region16: #{tpu_custom_call.1} parent=11 // pred_fallthru
          _
        // Predicated region
        $region17: #{tpu_custom_call.1} parent=11 // pred_check
          %p212 = pneg %p84
        $region18: #{tpu_custom_call.1} parent=11 // pred_check_branch
          %214 = sbr.rel (%p212) target = $region20
        $region19: #{tpu_custom_call.1} parent=11 // pred_region
          _
        $region20: #{tpu_custom_call.1} parent=11 // pred_fallthru
          _
        // Predicated region
        $region21: #{tpu_custom_call.1} parent=11 // pred_check
          %p215 = pneg %p105
        $region22: #{tpu_custom_call.1} parent=11 // pred_check_branch
          %217 = sbr.rel (%p215) target = $region24
        $region23: #{tpu_custom_call.1} parent=11 // pred_region
          _
        $region24: #{tpu_custom_call.1} parent=11 // pred_fallthru
          _
        // Predicated region
        $region25: #{tpu_custom_call.1} parent=11 // pred_check
          %p218 = pneg %p126
        $region26: #{tpu_custom_call.1} parent=11 // pred_check_branch
          %220 = sbr.rel (%p218) target = $region28
        $region27: #{tpu_custom_call.1} parent=11 // pred_region
          _
        $region28: #{tpu_custom_call.1} parent=11 // pred_fallthru
          _
        // Predicated region
        $region29: #{tpu_custom_call.1} parent=11 // pred_check
          %p221 = pneg %p147
        $region30: #{tpu_custom_call.1} parent=11 // pred_check_branch
          %223 = sbr.rel (%p221) target = $region32
        $region31: #{tpu_custom_call.1} parent=11 // pred_region
          _
        $region32: #{tpu_custom_call.1} parent=11 // pred_fallthru
          _
        // Predicated region
        $region33: #{tpu_custom_call.1} parent=11 // pred_check
          %p224 = pneg %p168
        $region34: #{tpu_custom_call.1} parent=11 // pred_check_branch
          %226 = sbr.rel (%p224) target = $region36
        $region35: #{tpu_custom_call.1} parent=11 // pred_region
          _
        $region36: #{tpu_custom_call.1} parent=11 // pred_fallthru
          _
      $region12: #{tpu_custom_call.1} parent=5 // pred_fallthru
        _
      %p227 = scmp.lt.s32.totalorder %s16, 2
      // Predicated region
      $region37: #{tpu_custom_call.1} parent=5 // pred_check
        %p228 = pneg %p227
      $region38: #{tpu_custom_call.1} parent=5 // pred_check_branch
        %230 = sbr.rel (%p228) target = $region40
      $region39: #{tpu_custom_call.1} parent=5 // pred_region
        // Predicated region
        $region41: #{tpu_custom_call.1} parent=39 // pred_check
          %p231 = pneg %p36
        $region42: #{tpu_custom_call.1} parent=39 // pred_check_branch
          %233 = sbr.rel (%p231) target = $region44
        $region43: #{tpu_custom_call.1} parent=39 // pred_region
          %s234 = smul.u32 4, %s16
          %p235 = scmp.lt.s32.totalorder %s234, 7
          %s236 = scalar_select %p235, %s234, 7
          %s237 = smul.addr %s236, 2
          %s238 = scalar_lea.vmem %s0, %s237
          %s239 = smul.u32 4, %s16
        $region44: #{tpu_custom_call.1} parent=39 // pred_fallthru
          _
      $region40: #{tpu_custom_call.1} parent=5 // pred_fallthru
        _
      %p240 = scmp.le.s32.totalorder 1, %s16
      %p241 = scmp.lt.s32.totalorder %s16, 3
      %p242 = pnand %p240, %p241
      %p243 = pneg %p242
      // Predicated region
      $region45: #{tpu_custom_call.1} parent=5 // pred_check
        _
      $region46: #{tpu_custom_call.1} parent=5 // pred_check_branch
        %245 = sbr.rel (%p242) target = $region48
      $region47: #{tpu_custom_call.1} parent=5 // pred_region
        %s246 = ssub.s32 %s16, 1
        %s247 = smul.u32 4, %s21
        %p248 = scmp.lt.s32.totalorder %s247, 7
        %s249 = scalar_select %p248, %s247, 7
        %s250 = smul.addr %s249, 2
        %s251 = scalar_lea.vmem %s0, %s250
        %p252 = pneg %p42
        %p253 = pneg %p39
        %p254 = pneg %p63
        %p255 = pneg %p60
        %p256 = pneg %p84
        %p257 = pneg %p81
        %p258 = pneg %p105
        %p259 = pneg %p102
        %p260 = pneg %p126
        %p261 = pneg %p123
        %p262 = pneg %p147
        %p263 = pneg %p144
        %p264 = pneg %p168
        %p265 = pneg %p165
        %p266 = pneg %p194
        %p267 = pneg %p191
        %s268 = sand.u32 %s181, 1
        %s269 = scalar_lea.sflag [#allocation3], %s268
        %s270 = sand.u32 %s181, 1
        %s271 = smul.addr %s270, 16
        %s272 = scalar_lea.vmem [#allocation2], %s271
        %s273 = smul.u32 4, %s21
        %p274 = scmp.lt.s32.totalorder %s273, 7
        %s275 = scalar_select %p274, %s273, 7
        %s276 = smul.addr %s275, 2
        %s277 = scalar_lea.vmem %s0, %s276
        %s278 = smul.u32 4, %s21
        %s279 = smul.u32 4, %s21
        %v280 = vld [vmem:[%s277] sm:$0xff]
        %v281 = vld [vmem:[%s1] sm:$0xff]
        %v282 = vld [vmem:[%s1 + $0x8] sm:$0xff]
        %v283 = vld [vmem:[%s1 + $0x10] sm:$0xff]
        %v284 = vld [vmem:[%s1 + $0x18] sm:$0xff]
        %v285 = vld [vmem:[%s2] sm:$0xff]
        %v286 = vld [vmem:[%s2 + $0x8] sm:$0xff]
        %v287 = vld [vmem:[%s2 + $0x10] sm:$0xff]
        %v288 = vld [vmem:[%s2 + $0x18] sm:$0xff]
        %290 = vset.pattern.permute.xlu0 0
        %291 = vperm.xlu0 %290, %v285
        %v292 = vpop.permute.xlu0 %291
        %295 = vset.pattern.permute.xlu0 0
        %296 = vperm.xlu0 %295, %v286
        %v297 = vpop.permute.xlu0 %296
        %300 = vset.pattern.permute.xlu0 0
        %301 = vperm.xlu0 %300, %v287
        %v302 = vpop.permute.xlu0 %301
        %305 = vset.pattern.permute.xlu0 0
        %306 = vperm.xlu0 %305, %v288
        %v307 = vpop.permute.xlu0 %306
        %v310 = vcombine.high %v280, %v280
        %v312 = vunpack.c.l.s4 1983009808
        %v313 = vunpack.c.0.s8 %v312
        %v314 = vlaneseq
        %v315 = vshrl.u32 %v314, 7
        %v316 = vsub.s32 %v313, %v315
        %v317 = vrot.slane %v280, %v316
        %v319 = vunpack.c.l.s4 1983009808
        %v320 = vunpack.c.0.s8 %v319
        %v321 = vlaneseq
        %v322 = vshrl.u32 %v321, 7
        %v323 = vsub.s32 %v320, %v322
        %v324 = vrot.slane %v310, %v323
        %v325 = vcombine.high %v317, %v317
        %v326 = vcombine.high %v324, %v324
        %vm327 = vcmask 15360
        %v329 = vsel %vm327, %v281, 0
        %v332 = vsel %vm327, %v282, 0
        %v335 = vsel %vm327, %v283, 0
        %v338 = vsel %vm327, %v284, 0
        %vm340 = vcmask 1041408
        %v341 = vsel %vm340, %v317, 0
        %v343 = vsel %vm340, %v325, 0
        %v345 = vsel %vm340, %v324, 0
        %v347 = vsel %vm340, %v326, 0
        %349 = vmatprep.subr.mxu0 %v343
        %350 = vmatpush1.msra.mxu0 %v341
        %351 = vmatprep.subr.mxu0 0.0
        %352 = vmatpush1.msra.mxu0 0.0
        %353 = vmatprep.subr.mxu0 0.0
        %354 = vmatpush1.msra.mxu0 0.0
        %355 = vmatprep.subr.mxu0 0.0
        %356 = vmatpush1.msra.mxu0 0.0
        %357 = vmatprep.subr.mxu0 0.0
        %358 = vmatpush1.msra.mxu0 0.0
        %359 = vmatprep.subr.mxu0 0.0
        %360 = vmatpush1.msra.mxu0 0.0
        %361 = vmatprep.subr.mxu0 0.0
        %362 = vmatpush1.msra.mxu0 0.0
        %363 = vmatprep.subr.mxu0 0.0
        %364 = vmatpush1.msra.mxu0 0.0
        %365 = vmatprep.subr.mxu0 0.0
        %366 = vmatpush1.msra.mxu0 0.0
        %367 = vmatprep.subr.mxu0 0.0
        %368 = vmatpush1.msra.mxu0 0.0
        %369 = vmatprep.subr.mxu0 0.0
        %370 = vmatpush1.msra.mxu0 0.0
        %371 = vmatprep.subr.mxu0 0.0
        %372 = vmatpush1.msra.mxu0 0.0
        %373 = vmatprep.subr.mxu0 0.0
        %374 = vmatpush1.msra.mxu0 0.0
        %375 = vmatprep.subr.mxu0 0.0
        %376 = vmatpush1.msra.mxu0 0.0
        %377 = vmatprep.subr.mxu0 0.0
        %378 = vmatpush1.msra.mxu0 0.0
        %379 = vmatprep.subr.mxu0 0.0
        %380 = vmatpush1.msra.mxu0 0.0
        %381 = vmatprep.subr.mxu0 0.0
        %382 = vmatpush1.msra.mxu0 0.0
        %383 = vmatprep.subr.mxu0 0.0
        %384 = vmatpush1.msra.mxu0 0.0
        %385 = vmatprep.subr.mxu0 0.0
        %386 = vmatpush1.msra.mxu0 0.0
        %387 = vmatprep.subr.mxu0 0.0
        %388 = vmatpush1.msra.mxu0 0.0
        %389 = vmatprep.subr.mxu0 0.0
        %390 = vmatpush1.msra.mxu0 0.0
        %391 = vmatprep.subr.mxu0 0.0
        %392 = vmatpush1.msra.mxu0 0.0
        %393 = vmatprep.subr.mxu0 0.0
        %394 = vmatpush1.msra.mxu0 0.0
        %395 = vmatprep.subr.mxu0 0.0
        %396 = vmatpush1.msra.mxu0 0.0
        %397 = vmatprep.subr.mxu0 0.0
        %398 = vmatpush1.msra.mxu0 0.0
        %399 = vmatprep.subr.mxu0 0.0
        %400 = vmatpush1.msra.mxu0 0.0
        %401 = vmatprep.subr.mxu0 0.0
        %402 = vmatpush1.msra.mxu0 0.0
        %403 = vmatprep.subr.mxu0 0.0
        %404 = vmatpush1.msra.mxu0 0.0
        %405 = vmatprep.subr.mxu0 0.0
        %406 = vmatpush1.msra.mxu0 0.0
        %407 = vmatprep.subr.mxu0 0.0
        %408 = vmatpush1.msra.mxu0 0.0
        %409 = vmatprep.subr.mxu0 0.0
        %410 = vmatpush1.msra.mxu0 0.0
        %411 = vmatprep.subr.mxu0 0.0
        %412 = vmatpush1.msra.mxu0 0.0
        %413 = vmatprep.mubr.f32.mxu0 0.0
        %414 = vmatmul.mubr.f32.gmra.mrb[0].mxu0 %v329
        %v415 = vpop.f32.mrb[0].mxu0
        %v416 = vadd.f32 %v292, %v415
        %v417 = vpop.f32.mrb[0].mxu0
        %v418 = vadd.f32 %v292, %v417
        %419 = vmatprep.mubr.f32.mxu0 0.0
        %420 = vmatmul.mubr.f32.gmra.mrb[0].mxu0 %v332
        %v421 = vpop.f32.mrb[0].mxu0
        %v422 = vadd.f32 %v297, %v421
        %v423 = vpop.f32.mrb[0].mxu0
        %v424 = vadd.f32 %v297, %v423
        %425 = vmatprep.mubr.f32.mxu0 0.0
        %426 = vmatmul.mubr.f32.gmra.mrb[0].mxu0 %v335
        %v427 = vpop.f32.mrb[0].mxu0
        %v428 = vadd.f32 %v302, %v427
        %v429 = vpop.f32.mrb[0].mxu0
        %v430 = vadd.f32 %v302, %v429
        %431 = vmatprep.mubr.f32.mxu0 0.0
        %432 = vmatmul.mubr.f32.gmra.mrb[0].mxu0 %v338
        %v433 = vpop.f32.mrb[0].mxu0
        %v434 = vadd.f32 %v307, %v433
        %v435 = vpop.f32.mrb[0].mxu0
        %v436 = vadd.f32 %v307, %v435
        %437 = vdwg.mxu0
        %438 = vmatprep.subr.mxu0 %v347
        %439 = vmatpush1.msra.mxu0 %v345
        %440 = vmatprep.subr.mxu0 0.0
        %441 = vmatpush1.msra.mxu0 0.0
        %442 = vmatprep.subr.mxu0 0.0
        %443 = vmatpush1.msra.mxu0 0.0
        %444 = vmatprep.subr.mxu0 0.0
        %445 = vmatpush1.msra.mxu0 0.0
        %446 = vmatprep.subr.mxu0 0.0
        %447 = vmatpush1.msra.mxu0 0.0
        %448 = vmatprep.subr.mxu0 0.0
        %449 = vmatpush1.msra.mxu0 0.0
        %450 = vmatprep.subr.mxu0 0.0
        %451 = vmatpush1.msra.mxu0 0.0
        %452 = vmatprep.subr.mxu0 0.0
        %453 = vmatpush1.msra.mxu0 0.0
        %454 = vmatprep.subr.mxu0 0.0
        %455 = vmatpush1.msra.mxu0 0.0
        %456 = vmatprep.subr.mxu0 0.0
        %457 = vmatpush1.msra.mxu0 0.0
        %458 = vmatprep.subr.mxu0 0.0
        %459 = vmatpush1.msra.mxu0 0.0
        %460 = vmatprep.subr.mxu0 0.0
        %461 = vmatpush1.msra.mxu0 0.0
        %462 = vmatprep.subr.mxu0 0.0
        %463 = vmatpush1.msra.mxu0 0.0
        %464 = vmatprep.subr.mxu0 0.0
        %465 = vmatpush1.msra.mxu0 0.0
        %466 = vmatprep.subr.mxu0 0.0
        %467 = vmatpush1.msra.mxu0 0.0
        %468 = vmatprep.subr.mxu0 0.0
        %469 = vmatpush1.msra.mxu0 0.0
        %470 = vmatprep.subr.mxu0 0.0
        %471 = vmatpush1.msra.mxu0 0.0
        %472 = vmatprep.subr.mxu0 0.0
        %473 = vmatpush1.msra.mxu0 0.0
        %474 = vmatprep.subr.mxu0 0.0
        %475 = vmatpush1.msra.mxu0 0.0
        %476 = vmatprep.subr.mxu0 0.0
        %477 = vmatpush1.msra.mxu0 0.0
        %478 = vmatprep.subr.mxu0 0.0
        %479 = vmatpush1.msra.mxu0 0.0
        %480 = vmatprep.subr.mxu0 0.0
        %481 = vmatpush1.msra.mxu0 0.0
        %482 = vmatprep.subr.mxu0 0.0
        %483 = vmatpush1.msra.mxu0 0.0
        %484 = vmatprep.subr.mxu0 0.0
        %485 = vmatpush1.msra.mxu0 0.0
        %486 = vmatprep.subr.mxu0 0.0
        %487 = vmatpush1.msra.mxu0 0.0
        %488 = vmatprep.subr.mxu0 0.0
        %489 = vmatpush1.msra.mxu0 0.0
        %490 = vmatprep.subr.mxu0 0.0
        %491 = vmatpush1.msra.mxu0 0.0
        %492 = vmatprep.subr.mxu0 0.0
        %493 = vmatpush1.msra.mxu0 0.0
        %494 = vmatprep.subr.mxu0 0.0
        %495 = vmatpush1.msra.mxu0 0.0
        %496 = vmatprep.subr.mxu0 0.0
        %497 = vmatpush1.msra.mxu0 0.0
        %498 = vmatprep.subr.mxu0 0.0
        %499 = vmatpush1.msra.mxu0 0.0
        %500 = vmatprep.subr.mxu0 0.0
        %501 = vmatpush1.msra.mxu0 0.0
        %502 = vmatprep.mubr.f32.mxu0 0.0
        %503 = vmatmul.mubr.f32.gmra.mrb[0].mxu0 %v329
        %v504 = vpop.f32.mrb[0].mxu0
        %v505 = vadd.f32 %v292, %v504
        %v506 = vpop.f32.mrb[0].mxu0
        %v507 = vadd.f32 %v292, %v506
        %508 = vmatprep.mubr.f32.mxu0 0.0
        %509 = vmatmul.mubr.f32.gmra.mrb[0].mxu0 %v332
        %v510 = vpop.f32.mrb[0].mxu0
        %v511 = vadd.f32 %v297, %v510
        %v512 = vpop.f32.mrb[0].mxu0
        %v513 = vadd.f32 %v297, %v512
        %514 = vmatprep.mubr.f32.mxu0 0.0
        %515 = vmatmul.mubr.f32.gmra.mrb[0].mxu0 %v335
        %v516 = vpop.f32.mrb[0].mxu0
        %v517 = vadd.f32 %v302, %v516
        %v518 = vpop.f32.mrb[0].mxu0
        %v519 = vadd.f32 %v302, %v518
        %520 = vmatprep.mubr.f32.mxu0 0.0
        %521 = vmatmul.mubr.f32.gmra.mrb[0].mxu0 %v338
        %v522 = vpop.f32.mrb[0].mxu0
        %v523 = vadd.f32 %v307, %v522
        %v524 = vpop.f32.mrb[0].mxu0
        %v525 = vadd.f32 %v307, %v524
        %526 = vdwg.mxu0
        %v527 = vand.u32 2147483647, %v416
        %vm528 = vcmp.le.f32.partialorder %v527, 0.7853982
        %vm529 = vcmp.lt.s32.totalorder %v416, 0
        %v530 = vand.u32 %v416, 2139095040
        %v531 = vshrl.u32 %v530, 23
        %v532 = vsub.s32 %v531, 127
        %v533 = vand.u32 2147483647, %v416
        %v534 = vand.u32 %v533, 8388607
        %v535 = vor.u32 %v534, 8388608
        %v536 = vsub.s32 0, %v535
        %v537 = vadd.s32 %v532, 1
        %vm538 = vcmp.gt.s32.totalorder %v537, 0
        %v539 = vsel %vm538, %v537, 0
        %v540 = vshrl.u32 %v539, 5
        %v541 = vand.u32 %v539, 31
        %v542 = vsub.s32 32, %v541
        %v543 = vshrl.u32 683565275, %v542
        %v544 = vshll.u32 683565275, %v541
        %v545 = vshrl.u32 2475754826, %v542
        %v546 = vor.u32 %v544, %v545
        %v547 = vshll.u32 2475754826, %v541
        %v548 = vshrl.u32 2131351028, %v542
        %v549 = vor.u32 %v547, %v548
        %v550 = vshll.u32 2131351028, %v541
        %v551 = vshrl.u32 2102212464, %v542
        %v552 = vor.u32 %v550, %v551
        %v553 = vshll.u32 2102212464, %v541
        %v554 = vshrl.u32 920167782, %v542
        %v555 = vor.u32 %v553, %v554
        %v556 = vshll.u32 920167782, %v541
        %v557 = vshrl.u32 1326507024, %v542
        %v558 = vor.u32 %v556, %v557
        %vm559 = vcmp.lt.s32.totalorder %v540, 1
        %vm560 = vcmp.lt.s32.totalorder %v540, 2
        %vm561 = vcmp.lt.s32.totalorder %v540, 3
        %vm562 = vcmp.lt.s32.totalorder %v540, 4
        %v563 = vsel %vm559, %v543, %v546
        %v564 = vsel %vm562, %v552, 2102212464
        %v565 = vsel %vm561, %v549, %v564
        %v566 = vsel %vm560, %v563, %v565
        %v567 = vsel %vm559, %v546, %v549
        %v568 = vsel %vm562, %v555, 920167782
        %v569 = vsel %vm561, %v552, %v568
        %v570 = vsel %vm560, %v567, %v569
        %v571 = vsel %vm559, %v549, %v552
        %v572 = vsel %vm562, %v558, 1326507024
        %v573 = vsel %vm561, %v555, %v572
        %v574 = vsel %vm560, %v571, %v573
        %v575 = vshll.u32 %v535, 8
        %v576 = vmul.u32.u64.compose %v575, %v574
        %v577 = vextract.low.u32 %v576
        %v578 = vextract.high.u32 %v576
        %v579 = vmul.u32.u64.compose %v575, %v570
        %v580 = vextract.low.u32 %v579
        %v581 = vextract.high.u32 %v579
        %v582 = vmul.u32 %v575, %v566
        %v583 = vadd.s32 %v578, %v580
        %vm584 = vc.u32 %v578, %v580
        %v585 = vadd.s32 %v581, 1
        %v586 = vsel %vm584, %v585, %v581
        %v587 = vadd.s32 %v582, %v586
        %v588 = vadd.s32 %v587, 536870912
        %v589 = vshrl.u32 %v588, 30
        %v590 = vshll.u32 %v589, 30
        %v591 = vsub.s32 %v587, %v590
        %vm592 = vcmp.lt.s32.totalorder %v591, 0
        %v593 = vsub.s32 0, %v591
        %v594 = vsel %vm592, %v593, %v591
        %v595 = vclz %v594
        %v596 = vsub.s32 %v595, 2
        %vm597 = vcmp.gt.s32.totalorder 0, %v596
        %v598 = vsel %vm597, 0, %v596
        %v599 = vsub.s32 32, %v598
        %v600 = vshll.u32 %v591, %v598
        %v601 = vshrl.u32 %v583, %v599
        %v602 = vor.u32 %v600, %v601
        %v603 = vsub.s32 4294967266, %v598
        %v604 = vadd.s32 %v603, 127
        %v605 = vshll.u32 %v604, 23
        %v606 = vor.u32 4788187, %v605
        %v607 = vand.u32 2147483647, %v606
        %v609 = vcvt.s32.f32 %v602
        %v610 = vmul.f32 %v609, %v607
        %v611 = vxor.u32 %v610, 2147483648
        %v612 = vsel %vm529, %v611, %v610
        %v613 = vsub.s32 4, %v589
        %v614 = vsel %vm529, %v613, %v589
        %v615 = vsel %vm528, %v416, %v612
        %v616 = vsel %vm528, 0, %v614
        %v617 = vcosq.f32.pop %v615
        %v618 = vsinq.f32.pop %v615
        %vm619 = vweird.f32 %v416
        %v620 = vadd.s32 %v616, 3
        %v621 = vand.u32 %v620, 3
        %vm622 = vcmp.lt.s32.totalorder %v621, 2
        %vm623 = vcmp.eq.s32.totalorder %v621, 0
        %v624 = vxor.u32 %v618, 2147483648
        %v625 = vsel %vm623, %v617, %v624
        %vm626 = vcmp.eq.s32.totalorder %v621, 2
        %v627 = vxor.u32 %v617, 2147483648
        %v628 = vsel %vm626, %v627, %v618
        %v629 = vsel %vm622, %v625, %v628
        %v630 = vsel %vm619, nan, %v629
        %v631 = vand.u32 2147483647, %v418
        %vm632 = vcmp.le.f32.partialorder %v631, 0.7853982
        %vm633 = vcmp.lt.s32.totalorder %v418, 0
        %v634 = vand.u32 %v418, 2139095040
        %v635 = vshrl.u32 %v634, 23
        %v636 = vsub.s32 %v635, 127
        %v637 = vand.u32 2147483647, %v418
        %v638 = vand.u32 %v637, 8388607
        %v639 = vor.u32 %v638, 8388608
        %v640 = vsub.s32 0, %v639
        %v641 = vadd.s32 %v636, 1
        %vm642 = vcmp.gt.s32.totalorder %v641, 0
        %v643 = vsel %vm642, %v641, 0
        %v644 = vshrl.u32 %v643, 5
        %v645 = vand.u32 %v643, 31
        %v646 = vsub.s32 32, %v645
        %v647 = vshrl.u32 683565275, %v646
        %v648 = vshll.u32 683565275, %v645
        %v649 = vshrl.u32 2475754826, %v646
        %v650 = vor.u32 %v648, %v649
        %v651 = vshll.u32 2475754826, %v645
        %v652 = vshrl.u32 2131351028, %v646
        %v653 = vor.u32 %v651, %v652
        %v654 = vshll.u32 2131351028, %v645
        %v655 = vshrl.u32 2102212464, %v646
        %v656 = vor.u32 %v654, %v655
        %v657 = vshll.u32 2102212464, %v645
        %v658 = vshrl.u32 920167782, %v646
        %v659 = vor.u32 %v657, %v658
        %v660 = vshll.u32 920167782, %v645
        %v661 = vshrl.u32 1326507024, %v646
        %v662 = vor.u32 %v660, %v661
        %vm663 = vcmp.lt.s32.totalorder %v644, 1
        %vm664 = vcmp.lt.s32.totalorder %v644, 2
        %vm665 = vcmp.lt.s32.totalorder %v644, 3
        %vm666 = vcmp.lt.s32.totalorder %v644, 4
        %v667 = vsel %vm663, %v647, %v650
        %v668 = vsel %vm666, %v656, 2102212464
        %v669 = vsel %vm665, %v653, %v668
        %v670 = vsel %vm664, %v667, %v669
        %v671 = vsel %vm663, %v650, %v653
        %v672 = vsel %vm666, %v659, 920167782
        %v673 = vsel %vm665, %v656, %v672
        %v674 = vsel %vm664, %v671, %v673
        %v675 = vsel %vm663, %v653, %v656
        %v676 = vsel %vm666, %v662, 1326507024
        %v677 = vsel %vm665, %v659, %v676
        %v678 = vsel %vm664, %v675, %v677
        %v679 = vshll.u32 %v639, 8
        %v680 = vmul.u32.u64.compose %v679, %v678
        %v681 = vextract.low.u32 %v680
        %v682 = vextract.high.u32 %v680
        %v683 = vmul.u32.u64.compose %v679, %v674
        %v684 = vextract.low.u32 %v683
        %v685 = vextract.high.u32 %v683
        %v686 = vmul.u32 %v679, %v670
        %v687 = vadd.s32 %v682, %v684
        %vm688 = vc.u32 %v682, %v684
        %v689 = vadd.s32 %v685, 1
        %v690 = vsel %vm688, %v689, %v685
        %v691 = vadd.s32 %v686, %v690
        %v692 = vadd.s32 %v691, 536870912
        %v693 = vshrl.u32 %v692, 30
        %v694 = vshll.u32 %v693, 30
        %v695 = vsub.s32 %v691, %v694
        %vm696 = vcmp.lt.s32.totalorder %v695, 0
        %v697 = vsub.s32 0, %v695
        %v698 = vsel %vm696, %v697, %v695
        %v699 = vclz %v698
        %v700 = vsub.s32 %v699, 2
        %vm701 = vcmp.gt.s32.totalorder 0, %v700
        %v702 = vsel %vm701, 0, %v700
        %v703 = vsub.s32 32, %v702
        %v704 = vshll.u32 %v695, %v702
        %v705 = vshrl.u32 %v687, %v703
        %v706 = vor.u32 %v704, %v705
        %v707 = vsub.s32 4294967266, %v702
        %v708 = vadd.s32 %v707, 127
        %v709 = vshll.u32 %v708, 23
        %v710 = vor.u32 4788187, %v709
        %v711 = vand.u32 2147483647, %v710
        %v713 = vcvt.s32.f32 %v706
        %v714 = vmul.f32 %v713, %v711
        %v715 = vxor.u32 %v714, 2147483648
        %v716 = vsel %vm633, %v715, %v714
        %v717 = vsub.s32 4, %v693
        %v718 = vsel %vm633, %v717, %v693
        %v719 = vsel %vm632, %v418, %v716
        %v720 = vsel %vm632, 0, %v718
        %v721 = vcosq.f32.pop %v719
        %v722 = vsinq.f32.pop %v719
        %vm723 = vweird.f32 %v418
        %v724 = vadd.s32 %v720, 3
        %v725 = vand.u32 %v724, 3
        %vm726 = vcmp.lt.s32.totalorder %v725, 2
        %vm727 = vcmp.eq.s32.totalorder %v725, 0
        %v728 = vxor.u32 %v722, 2147483648
        %v729 = vsel %vm727, %v721, %v728
        %vm730 = vcmp.eq.s32.totalorder %v725, 2
        %v731 = vxor.u32 %v721, 2147483648
        %v732 = vsel %vm730, %v731, %v722
        %v733 = vsel %vm726, %v729, %v732
        %v734 = vsel %vm723, nan, %v733
        %v735 = vand.u32 2147483647, %v505
        %vm736 = vcmp.le.f32.partialorder %v735, 0.7853982
        %vm737 = vcmp.lt.s32.totalorder %v505, 0
        %v738 = vand.u32 %v505, 2139095040
        %v739 = vshrl.u32 %v738, 23
        %v740 = vsub.s32 %v739, 127
        %v741 = vand.u32 2147483647, %v505
        %v742 = vand.u32 %v741, 8388607
        %v743 = vor.u32 %v742, 8388608
        %v744 = vsub.s32 0, %v743
        %v745 = vadd.s32 %v740, 1
        %vm746 = vcmp.gt.s32.totalorder %v745, 0
        %v747 = vsel %vm746, %v745, 0
        %v748 = vshrl.u32 %v747, 5
        %v749 = vand.u32 %v747, 31
        %v750 = vsub.s32 32, %v749
        %v751 = vshrl.u32 683565275, %v750
        %v752 = vshll.u32 683565275, %v749
        %v753 = vshrl.u32 2475754826, %v750
        %v754 = vor.u32 %v752, %v753
        %v755 = vshll.u32 2475754826, %v749
        %v756 = vshrl.u32 2131351028, %v750
        %v757 = vor.u32 %v755, %v756
        %v758 = vshll.u32 2131351028, %v749
        %v759 = vshrl.u32 2102212464, %v750
        %v760 = vor.u32 %v758, %v759
        %v761 = vshll.u32 2102212464, %v749
        %v762 = vshrl.u32 920167782, %v750
        %v763 = vor.u32 %v761, %v762
        %v764 = vshll.u32 920167782, %v749
        %v765 = vshrl.u32 1326507024, %v750
        %v766 = vor.u32 %v764, %v765
        %vm767 = vcmp.lt.s32.totalorder %v748, 1
        %vm768 = vcmp.lt.s32.totalorder %v748, 2
        %vm769 = vcmp.lt.s32.totalorder %v748, 3
        %vm770 = vcmp.lt.s32.totalorder %v748, 4
        %v771 = vsel %vm767, %v751, %v754
        %v772 = vsel %vm770, %v760, 2102212464
        %v773 = vsel %vm769, %v757, %v772
        %v774 = vsel %vm768, %v771, %v773
        %v775 = vsel %vm767, %v754, %v757
        %v776 = vsel %vm770, %v763, 920167782
        %v777 = vsel %vm769, %v760, %v776
        %v778 = vsel %vm768, %v775, %v777
        %v779 = vsel %vm767, %v757, %v760
        %v780 = vsel %vm770, %v766, 1326507024
        %v781 = vsel %vm769, %v763, %v780
        %v782 = vsel %vm768, %v779, %v781
        %v783 = vshll.u32 %v743, 8
        %v784 = vmul.u32.u64.compose %v783, %v782
        %v785 = vextract.low.u32 %v784
        %v786 = vextract.high.u32 %v784
        %v787 = vmul.u32.u64.compose %v783, %v778
        %v788 = vextract.low.u32 %v787
        %v789 = vextract.high.u32 %v787
        %v790 = vmul.u32 %v783, %v774
        %v791 = vadd.s32 %v786, %v788
        %vm792 = vc.u32 %v786, %v788
        %v793 = vadd.s32 %v789, 1
        %v794 = vsel %vm792, %v793, %v789
        %v795 = vadd.s32 %v790, %v794
        %v796 = vadd.s32 %v795, 536870912
        %v797 = vshrl.u32 %v796, 30
        %v798 = vshll.u32 %v797, 30
        %v799 = vsub.s32 %v795, %v798
        %vm800 = vcmp.lt.s32.totalorder %v799, 0
        %v801 = vsub.s32 0, %v799
        %v802 = vsel %vm800, %v801, %v799
        %v803 = vclz %v802
        %v804 = vsub.s32 %v803, 2
        %vm805 = vcmp.gt.s32.totalorder 0, %v804
        %v806 = vsel %vm805, 0, %v804
        %v807 = vsub.s32 32, %v806
        %v808 = vshll.u32 %v799, %v806
        %v809 = vshrl.u32 %v791, %v807
        %v810 = vor.u32 %v808, %v809
        %v811 = vsub.s32 4294967266, %v806
        %v812 = vadd.s32 %v811, 127
        %v813 = vshll.u32 %v812, 23
        %v814 = vor.u32 4788187, %v813
        %v815 = vand.u32 2147483647, %v814
        %v817 = vcvt.s32.f32 %v810
        %v818 = vmul.f32 %v817, %v815
        %v819 = vxor.u32 %v818, 2147483648
        %v820 = vsel %vm737, %v819, %v818
        %v821 = vsub.s32 4, %v797
        %v822 = vsel %vm737, %v821, %v797
        %v823 = vsel %vm736, %v505, %v820
        %v824 = vsel %vm736, 0, %v822
        %v825 = vcosq.f32.pop %v823
        %v826 = vsinq.f32.pop %v823
        %vm827 = vweird.f32 %v505
        %v828 = vadd.s32 %v824, 3
        %v829 = vand.u32 %v828, 3
        %vm830 = vcmp.lt.s32.totalorder %v829, 2
        %vm831 = vcmp.eq.s32.totalorder %v829, 0
        %v832 = vxor.u32 %v826, 2147483648
        %v833 = vsel %vm831, %v825, %v832
        %vm834 = vcmp.eq.s32.totalorder %v829, 2
        %v835 = vxor.u32 %v825, 2147483648
        %v836 = vsel %vm834, %v835, %v826
        %v837 = vsel %vm830, %v833, %v836
        %v838 = vsel %vm827, nan, %v837
        %v839 = vand.u32 2147483647, %v507
        %vm840 = vcmp.le.f32.partialorder %v839, 0.7853982
        %vm841 = vcmp.lt.s32.totalorder %v507, 0
        %v842 = vand.u32 %v507, 2139095040
        %v843 = vshrl.u32 %v842, 23
        %v844 = vsub.s32 %v843, 127
        %v845 = vand.u32 2147483647, %v507
        %v846 = vand.u32 %v845, 8388607
        %v847 = vor.u32 %v846, 8388608
        %v848 = vsub.s32 0, %v847
        %v849 = vadd.s32 %v844, 1
        %vm850 = vcmp.gt.s32.totalorder %v849, 0
        %v851 = vsel %vm850, %v849, 0
        %v852 = vshrl.u32 %v851, 5
        %v853 = vand.u32 %v851, 31
        %v854 = vsub.s32 32, %v853
        %v855 = vshrl.u32 683565275, %v854
        %v856 = vshll.u32 683565275, %v853
        %v857 = vshrl.u32 2475754826, %v854
        %v858 = vor.u32 %v856, %v857
        %v859 = vshll.u32 2475754826, %v853
        %v860 = vshrl.u32 2131351028, %v854
        %v861 = vor.u32 %v859, %v860
        %v862 = vshll.u32 2131351028, %v853
        %v863 = vshrl.u32 2102212464, %v854
        %v864 = vor.u32 %v862, %v863
        %v865 = vshll.u32 2102212464, %v853
        %v866 = vshrl.u32 920167782, %v854
        %v867 = vor.u32 %v865, %v866
        %v868 = vshll.u32 920167782, %v853
        %v869 = vshrl.u32 1326507024, %v854
        %v870 = vor.u32 %v868, %v869
        %vm871 = vcmp.lt.s32.totalorder %v852, 1
        %vm872 = vcmp.lt.s32.totalorder %v852, 2
        %vm873 = vcmp.lt.s32.totalorder %v852, 3
        %vm874 = vcmp.lt.s32.totalorder %v852, 4
        %v875 = vsel %vm871, %v855, %v858
        %v876 = vsel %vm874, %v864, 2102212464
        %v877 = vsel %vm873, %v861, %v876
        %v878 = vsel %vm872, %v875, %v877
        %v879 = vsel %vm871, %v858, %v861
        %v880 = vsel %vm874, %v867, 920167782
        %v881 = vsel %vm873, %v864, %v880
        %v882 = vsel %vm872, %v879, %v881
        %v883 = vsel %vm871, %v861, %v864
        %v884 = vsel %vm874, %v870, 1326507024
        %v885 = vsel %vm873, %v867, %v884
        %v886 = vsel %vm872, %v883, %v885
        %v887 = vshll.u32 %v847, 8
        %v888 = vmul.u32.u64.compose %v887, %v886
        %v889 = vextract.low.u32 %v888
        %v890 = vextract.high.u32 %v888
        %v891 = vmul.u32.u64.compose %v887, %v882
        %v892 = vextract.low.u32 %v891
        %v893 = vextract.high.u32 %v891
        %v894 = vmul.u32 %v887, %v878
        %v895 = vadd.s32 %v890, %v892
        %vm896 = vc.u32 %v890, %v892
        %v897 = vadd.s32 %v893, 1
        %v898 = vsel %vm896, %v897, %v893
        %v899 = vadd.s32 %v894, %v898
        %v900 = vadd.s32 %v899, 536870912
        %v901 = vshrl.u32 %v900, 30
        %v902 = vshll.u32 %v901, 30
        %v903 = vsub.s32 %v899, %v902
        %vm904 = vcmp.lt.s32.totalorder %v903, 0
        %v905 = vsub.s32 0, %v903
        %v906 = vsel %vm904, %v905, %v903
        %v907 = vclz %v906
        %v908 = vsub.s32 %v907, 2
        %vm909 = vcmp.gt.s32.totalorder 0, %v908
        %v910 = vsel %vm909, 0, %v908
        %v911 = vsub.s32 32, %v910
        %v912 = vshll.u32 %v903, %v910
        %v913 = vshrl.u32 %v895, %v911
        %v914 = vor.u32 %v912, %v913
        %v915 = vsub.s32 4294967266, %v910
        %v916 = vadd.s32 %v915, 127
        %v917 = vshll.u32 %v916, 23
        %v918 = vor.u32 4788187, %v917
        %v919 = vand.u32 2147483647, %v918
        %v921 = vcvt.s32.f32 %v914
        %v922 = vmul.f32 %v921, %v919
        %v923 = vxor.u32 %v922, 2147483648
        %v924 = vsel %vm841, %v923, %v922
        %v925 = vsub.s32 4, %v901
        %v926 = vsel %vm841, %v925, %v901
        %v927 = vsel %vm840, %v507, %v924
        %v928 = vsel %vm840, 0, %v926
        %v929 = vcosq.f32.pop %v927
        %v930 = vsinq.f32.pop %v927
        %vm931 = vweird.f32 %v507
        %v932 = vadd.s32 %v928, 3
        %v933 = vand.u32 %v932, 3
        %vm934 = vcmp.lt.s32.totalorder %v933, 2
        %vm935 = vcmp.eq.s32.totalorder %v933, 0
        %v936 = vxor.u32 %v930, 2147483648
        %v937 = vsel %vm935, %v929, %v936
        %vm938 = vcmp.eq.s32.totalorder %v933, 2
        %v939 = vxor.u32 %v929, 2147483648
        %v940 = vsel %vm938, %v939, %v930
        %v941 = vsel %vm934, %v937, %v940
        %v942 = vsel %vm931, nan, %v941
        %v943 = vand.u32 2147483647, %v422
        %vm944 = vcmp.le.f32.partialorder %v943, 0.7853982
        %vm945 = vcmp.lt.s32.totalorder %v422, 0
        %v946 = vand.u32 %v422, 2139095040
        %v947 = vshrl.u32 %v946, 23
        %v948 = vsub.s32 %v947, 127
        %v949 = vand.u32 2147483647, %v422
        %v950 = vand.u32 %v949, 8388607
        %v951 = vor.u32 %v950, 8388608
        %v952 = vsub.s32 0, %v951
        %v953 = vadd.s32 %v948, 1
        %vm954 = vcmp.gt.s32.totalorder %v953, 0
        %v955 = vsel %vm954, %v953, 0
        %v956 = vshrl.u32 %v955, 5
        %v957 = vand.u32 %v955, 31
        %v958 = vsub.s32 32, %v957
        %v959 = vshrl.u32 683565275, %v958
        %v960 = vshll.u32 683565275, %v957
        %v961 = vshrl.u32 2475754826, %v958
        %v962 = vor.u32 %v960, %v961
        %v963 = vshll.u32 2475754826, %v957
        %v964 = vshrl.u32 2131351028, %v958
        %v965 = vor.u32 %v963, %v964
        %v966 = vshll.u32 2131351028, %v957
        %v967 = vshrl.u32 2102212464, %v958
        %v968 = vor.u32 %v966, %v967
        %v969 = vshll.u32 2102212464, %v957
        %v970 = vshrl.u32 920167782, %v958
        %v971 = vor.u32 %v969, %v970
        %v972 = vshll.u32 920167782, %v957
        %v973 = vshrl.u32 1326507024, %v958
        %v974 = vor.u32 %v972, %v973
        %vm975 = vcmp.lt.s32.totalorder %v956, 1
        %vm976 = vcmp.lt.s32.totalorder %v956, 2
        %vm977 = vcmp.lt.s32.totalorder %v956, 3
        %vm978 = vcmp.lt.s32.totalorder %v956, 4
        %v979 = vsel %vm975, %v959, %v962
        %v980 = vsel %vm978, %v968, 2102212464
        %v981 = vsel %vm977, %v965, %v980
        %v982 = vsel %vm976, %v979, %v981
        %v983 = vsel %vm975, %v962, %v965
        %v984 = vsel %vm978, %v971, 920167782
        %v985 = vsel %vm977, %v968, %v984
        %v986 = vsel %vm976, %v983, %v985
        %v987 = vsel %vm975, %v965, %v968
        %v988 = vsel %vm978, %v974, 1326507024
        %v989 = vsel %vm977, %v971, %v988
        %v990 = vsel %vm976, %v987, %v989
        %v991 = vshll.u32 %v951, 8
        %v992 = vmul.u32.u64.compose %v991, %v990
        %v993 = vextract.low.u32 %v992
        %v994 = vextract.high.u32 %v992
        %v995 = vmul.u32.u64.compose %v991, %v986
        %v996 = vextract.low.u32 %v995
        %v997 = vextract.high.u32 %v995
        %v998 = vmul.u32 %v991, %v982
        %v999 = vadd.s32 %v994, %v996
        %vm1000 = vc.u32 %v994, %v996
        %v1001 = vadd.s32 %v997, 1
        %v1002 = vsel %vm1000, %v1001, %v997
        %v1003 = vadd.s32 %v998, %v1002
        %v1004 = vadd.s32 %v1003, 536870912
        %v1005 = vshrl.u32 %v1004, 30
        %v1006 = vshll.u32 %v1005, 30
        %v1007 = vsub.s32 %v1003, %v1006
        %vm1008 = vcmp.lt.s32.totalorder %v1007, 0
        %v1009 = vsub.s32 0, %v1007
        %v1010 = vsel %vm1008, %v1009, %v1007
        %v1011 = vclz %v1010
        %v1012 = vsub.s32 %v1011, 2
        %vm1013 = vcmp.gt.s32.totalorder 0, %v1012
        %v1014 = vsel %vm1013, 0, %v1012
        %v1015 = vsub.s32 32, %v1014
        %v1016 = vshll.u32 %v1007, %v1014
        %v1017 = vshrl.u32 %v999, %v1015
        %v1018 = vor.u32 %v1016, %v1017
        %v1019 = vsub.s32 4294967266, %v1014
        %v1020 = vadd.s32 %v1019, 127
        %v1021 = vshll.u32 %v1020, 23
        %v1022 = vor.u32 4788187, %v1021
        %v1023 = vand.u32 2147483647, %v1022
        %v1025 = vcvt.s32.f32 %v1018
        %v1026 = vmul.f32 %v1025, %v1023
        %v1027 = vxor.u32 %v1026, 2147483648
        %v1028 = vsel %vm945, %v1027, %v1026
        %v1029 = vsub.s32 4, %v1005
        %v1030 = vsel %vm945, %v1029, %v1005
        %v1031 = vsel %vm944, %v422, %v1028
        %v1032 = vsel %vm944, 0, %v1030
        %v1033 = vcosq.f32.pop %v1031
        %v1034 = vsinq.f32.pop %v1031
        %vm1035 = vweird.f32 %v422
        %v1036 = vadd.s32 %v1032, 3
        %v1037 = vand.u32 %v1036, 3
        %vm1038 = vcmp.lt.s32.totalorder %v1037, 2
        %vm1039 = vcmp.eq.s32.totalorder %v1037, 0
        %v1040 = vxor.u32 %v1034, 2147483648
        %v1041 = vsel %vm1039, %v1033, %v1040
        %vm1042 = vcmp.eq.s32.totalorder %v1037, 2
        %v1043 = vxor.u32 %v1033, 2147483648
        %v1044 = vsel %vm1042, %v1043, %v1034
        %v1045 = vsel %vm1038, %v1041, %v1044
        %v1046 = vsel %vm1035, nan, %v1045
        %v1047 = vand.u32 2147483647, %v424
        %vm1048 = vcmp.le.f32.partialorder %v1047, 0.7853982
        %vm1049 = vcmp.lt.s32.totalorder %v424, 0
        %v1050 = vand.u32 %v424, 2139095040
        %v1051 = vshrl.u32 %v1050, 23
        %v1052 = vsub.s32 %v1051, 127
        %v1053 = vand.u32 2147483647, %v424
        %v1054 = vand.u32 %v1053, 8388607
        %v1055 = vor.u32 %v1054, 8388608
        %v1056 = vsub.s32 0, %v1055
        %v1057 = vadd.s32 %v1052, 1
        %vm1058 = vcmp.gt.s32.totalorder %v1057, 0
        %v1059 = vsel %vm1058, %v1057, 0
        %v1060 = vshrl.u32 %v1059, 5
        %v1061 = vand.u32 %v1059, 31
        %v1062 = vsub.s32 32, %v1061
        %v1063 = vshrl.u32 683565275, %v1062
        %v1064 = vshll.u32 683565275, %v1061
        %v1065 = vshrl.u32 2475754826, %v1062
        %v1066 = vor.u32 %v1064, %v1065
        %v1067 = vshll.u32 2475754826, %v1061
        %v1068 = vshrl.u32 2131351028, %v1062
        %v1069 = vor.u32 %v1067, %v1068
        %v1070 = vshll.u32 2131351028, %v1061
        %v1071 = vshrl.u32 2102212464, %v1062
        %v1072 = vor.u32 %v1070, %v1071
        %v1073 = vshll.u32 2102212464, %v1061
        %v1074 = vshrl.u32 920167782, %v1062
        %v1075 = vor.u32 %v1073, %v1074
        %v1076 = vshll.u32 920167782, %v1061
        %v1077 = vshrl.u32 1326507024, %v1062
        %v1078 = vor.u32 %v1076, %v1077
        %vm1079 = vcmp.lt.s32.totalorder %v1060, 1
        %vm1080 = vcmp.lt.s32.totalorder %v1060, 2
        %vm1081 = vcmp.lt.s32.totalorder %v1060, 3
        %vm1082 = vcmp.lt.s32.totalorder %v1060, 4
        %v1083 = vsel %vm1079, %v1063, %v1066
        %v1084 = vsel %vm1082, %v1072, 2102212464
        %v1085 = vsel %vm1081, %v1069, %v1084
        %v1086 = vsel %vm1080, %v1083, %v1085
        %v1087 = vsel %vm1079, %v1066, %v1069
        %v1088 = vsel %vm1082, %v1075, 920167782
        %v1089 = vsel %vm1081, %v1072, %v1088
        %v1090 = vsel %vm1080, %v1087, %v1089
        %v1091 = vsel %vm1079, %v1069, %v1072
        %v1092 = vsel %vm1082, %v1078, 1326507024
        %v1093 = vsel %vm1081, %v1075, %v1092
        %v1094 = vsel %vm1080, %v1091, %v1093
        %v1095 = vshll.u32 %v1055, 8
        %v1096 = vmul.u32.u64.compose %v1095, %v1094
        %v1097 = vextract.low.u32 %v1096
        %v1098 = vextract.high.u32 %v1096
        %v1099 = vmul.u32.u64.compose %v1095, %v1090
        %v1100 = vextract.low.u32 %v1099
        %v1101 = vextract.high.u32 %v1099
        %v1102 = vmul.u32 %v1095, %v1086
        %v1103 = vadd.s32 %v1098, %v1100
        %vm1104 = vc.u32 %v1098, %v1100
        %v1105 = vadd.s32 %v1101, 1
        %v1106 = vsel %vm1104, %v1105, %v1101
        %v1107 = vadd.s32 %v1102, %v1106
        %v1108 = vadd.s32 %v1107, 536870912
        %v1109 = vshrl.u32 %v1108, 30
        %v1110 = vshll.u32 %v1109, 30
        %v1111 = vsub.s32 %v1107, %v1110
        %vm1112 = vcmp.lt.s32.totalorder %v1111, 0
        %v1113 = vsub.s32 0, %v1111
        %v1114 = vsel %vm1112, %v1113, %v1111
        %v1115 = vclz %v1114
        %v1116 = vsub.s32 %v1115, 2
        %vm1117 = vcmp.gt.s32.totalorder 0, %v1116
        %v1118 = vsel %vm1117, 0, %v1116
        %v1119 = vsub.s32 32, %v1118
        %v1120 = vshll.u32 %v1111, %v1118
        %v1121 = vshrl.u32 %v1103, %v1119
        %v1122 = vor.u32 %v1120, %v1121
        %v1123 = vsub.s32 4294967266, %v1118
        %v1124 = vadd.s32 %v1123, 127
        %v1125 = vshll.u32 %v1124, 23
        %v1126 = vor.u32 4788187, %v1125
        %v1127 = vand.u32 2147483647, %v1126
        %v1129 = vcvt.s32.f32 %v1122
        %v1130 = vmul.f32 %v1129, %v1127
        %v1131 = vxor.u32 %v1130, 2147483648
        %v1132 = vsel %vm1049, %v1131, %v1130
        %v1133 = vsub.s32 4, %v1109
        %v1134 = vsel %vm1049, %v1133, %v1109
        %v1135 = vsel %vm1048, %v424, %v1132
        %v1136 = vsel %vm1048, 0, %v1134
        %v1137 = vcosq.f32.pop %v1135
        %v1138 = vsinq.f32.pop %v1135
        %vm1139 = vweird.f32 %v424
        %v1140 = vadd.s32 %v1136, 3
        %v1141 = vand.u32 %v1140, 3
        %vm1142 = vcmp.lt.s32.totalorder %v1141, 2
        %vm1143 = vcmp.eq.s32.totalorder %v1141, 0
        %v1144 = vxor.u32 %v1138, 2147483648
        %v1145 = vsel %vm1143, %v1137, %v1144
        %vm1146 = vcmp.eq.s32.totalorder %v1141, 2
        %v1147 = vxor.u32 %v1137, 2147483648
        %v1148 = vsel %vm1146, %v1147, %v1138
        %v1149 = vsel %vm1142, %v1145, %v1148
        %v1150 = vsel %vm1139, nan, %v1149
        %v1151 = vand.u32 2147483647, %v511
        %vm1152 = vcmp.le.f32.partialorder %v1151, 0.7853982
        %vm1153 = vcmp.lt.s32.totalorder %v511, 0
        %v1154 = vand.u32 %v511, 2139095040
        %v1155 = vshrl.u32 %v1154, 23
        %v1156 = vsub.s32 %v1155, 127
        %v1157 = vand.u32 2147483647, %v511
        %v1158 = vand.u32 %v1157, 8388607
        %v1159 = vor.u32 %v1158, 8388608
        %v1160 = vsub.s32 0, %v1159
        %v1161 = vadd.s32 %v1156, 1
        %vm1162 = vcmp.gt.s32.totalorder %v1161, 0
        %v1163 = vsel %vm1162, %v1161, 0
        %v1164 = vshrl.u32 %v1163, 5
        %v1165 = vand.u32 %v1163, 31
        %v1166 = vsub.s32 32, %v1165
        %v1167 = vshrl.u32 683565275, %v1166
        %v1168 = vshll.u32 683565275, %v1165
        %v1169 = vshrl.u32 2475754826, %v1166
        %v1170 = vor.u32 %v1168, %v1169
        %v1171 = vshll.u32 2475754826, %v1165
        %v1172 = vshrl.u32 2131351028, %v1166
        %v1173 = vor.u32 %v1171, %v1172
        %v1174 = vshll.u32 2131351028, %v1165
        %v1175 = vshrl.u32 2102212464, %v1166
        %v1176 = vor.u32 %v1174, %v1175
        %v1177 = vshll.u32 2102212464, %v1165
        %v1178 = vshrl.u32 920167782, %v1166
        %v1179 = vor.u32 %v1177, %v1178
        %v1180 = vshll.u32 920167782, %v1165
        %v1181 = vshrl.u32 1326507024, %v1166
        %v1182 = vor.u32 %v1180, %v1181
        %vm1183 = vcmp.lt.s32.totalorder %v1164, 1
        %vm1184 = vcmp.lt.s32.totalorder %v1164, 2
        %vm1185 = vcmp.lt.s32.totalorder %v1164, 3
        %vm1186 = vcmp.lt.s32.totalorder %v1164, 4
        %v1187 = vsel %vm1183, %v1167, %v1170
        %v1188 = vsel %vm1186, %v1176, 2102212464
        %v1189 = vsel %vm1185, %v1173, %v1188
        %v1190 = vsel %vm1184, %v1187, %v1189
        %v1191 = vsel %vm1183, %v1170, %v1173
        %v1192 = vsel %vm1186, %v1179, 920167782
        %v1193 = vsel %vm1185, %v1176, %v1192
        %v1194 = vsel %vm1184, %v1191, %v1193
        %v1195 = vsel %vm1183, %v1173, %v1176
        %v1196 = vsel %vm1186, %v1182, 1326507024
        %v1197 = vsel %vm1185, %v1179, %v1196
        %v1198 = vsel %vm1184, %v1195, %v1197
        %v1199 = vshll.u32 %v1159, 8
        %v1200 = vmul.u32.u64.compose %v1199, %v1198
        %v1201 = vextract.low.u32 %v1200
        %v1202 = vextract.high.u32 %v1200
        %v1203 = vmul.u32.u64.compose %v1199, %v1194
        %v1204 = vextract.low.u32 %v1203
        %v1205 = vextract.high.u32 %v1203
        %v1206 = vmul.u32 %v1199, %v1190
        %v1207 = vadd.s32 %v1202, %v1204
        %vm1208 = vc.u32 %v1202, %v1204
        %v1209 = vadd.s32 %v1205, 1
        %v1210 = vsel %vm1208, %v1209, %v1205
        %v1211 = vadd.s32 %v1206, %v1210
        %v1212 = vadd.s32 %v1211, 536870912
        %v1213 = vshrl.u32 %v1212, 30
        %v1214 = vshll.u32 %v1213, 30
        %v1215 = vsub.s32 %v1211, %v1214
        %vm1216 = vcmp.lt.s32.totalorder %v1215, 0
        %v1217 = vsub.s32 0, %v1215
        %v1218 = vsel %vm1216, %v1217, %v1215
        %v1219 = vclz %v1218
        %v1220 = vsub.s32 %v1219, 2
        %vm1221 = vcmp.gt.s32.totalorder 0, %v1220
        %v1222 = vsel %vm1221, 0, %v1220
        %v1223 = vsub.s32 32, %v1222
        %v1224 = vshll.u32 %v1215, %v1222
        %v1225 = vshrl.u32 %v1207, %v1223
        %v1226 = vor.u32 %v1224, %v1225
        %v1227 = vsub.s32 4294967266, %v1222
        %v1228 = vadd.s32 %v1227, 127
        %v1229 = vshll.u32 %v1228, 23
        %v1230 = vor.u32 4788187, %v1229
        %v1231 = vand.u32 2147483647, %v1230
        %v1233 = vcvt.s32.f32 %v1226
        %v1234 = vmul.f32 %v1233, %v1231
        %v1235 = vxor.u32 %v1234, 2147483648
        %v1236 = vsel %vm1153, %v1235, %v1234
        %v1237 = vsub.s32 4, %v1213
        %v1238 = vsel %vm1153, %v1237, %v1213
        %v1239 = vsel %vm1152, %v511, %v1236
        %v1240 = vsel %vm1152, 0, %v1238
        %v1241 = vcosq.f32.pop %v1239
        %v1242 = vsinq.f32.pop %v1239
        %vm1243 = vweird.f32 %v511
        %v1244 = vadd.s32 %v1240, 3
        %v1245 = vand.u32 %v1244, 3
        %vm1246 = vcmp.lt.s32.totalorder %v1245, 2
        %vm1247 = vcmp.eq.s32.totalorder %v1245, 0
        %v1248 = vxor.u32 %v1242, 2147483648
        %v1249 = vsel %vm1247, %v1241, %v1248
        %vm1250 = vcmp.eq.s32.totalorder %v1245, 2
        %v1251 = vxor.u32 %v1241, 2147483648
        %v1252 = vsel %vm1250, %v1251, %v1242
        %v1253 = vsel %vm1246, %v1249, %v1252
        %v1254 = vsel %vm1243, nan, %v1253
        %v1255 = vand.u32 2147483647, %v513
        %vm1256 = vcmp.le.f32.partialorder %v1255, 0.7853982
        %vm1257 = vcmp.lt.s32.totalorder %v513, 0
        %v1258 = vand.u32 %v513, 2139095040
        %v1259 = vshrl.u32 %v1258, 23
        %v1260 = vsub.s32 %v1259, 127
        %v1261 = vand.u32 2147483647, %v513
        %v1262 = vand.u32 %v1261, 8388607
        %v1263 = vor.u32 %v1262, 8388608
        %v1264 = vsub.s32 0, %v1263
        %v1265 = vadd.s32 %v1260, 1
        %vm1266 = vcmp.gt.s32.totalorder %v1265, 0
        %v1267 = vsel %vm1266, %v1265, 0
        %v1268 = vshrl.u32 %v1267, 5
        %v1269 = vand.u32 %v1267, 31
        %v1270 = vsub.s32 32, %v1269
        %v1271 = vshrl.u32 683565275, %v1270
        %v1272 = vshll.u32 683565275, %v1269
        %v1273 = vshrl.u32 2475754826, %v1270
        %v1274 = vor.u32 %v1272, %v1273
        %v1275 = vshll.u32 2475754826, %v1269
        %v1276 = vshrl.u32 2131351028, %v1270
        %v1277 = vor.u32 %v1275, %v1276
        %v1278 = vshll.u32 2131351028, %v1269
        %v1279 = vshrl.u32 2102212464, %v1270
        %v1280 = vor.u32 %v1278, %v1279
        %v1281 = vshll.u32 2102212464, %v1269
        %v1282 = vshrl.u32 920167782, %v1270
        %v1283 = vor.u32 %v1281, %v1282
        %v1284 = vshll.u32 920167782, %v1269
        %v1285 = vshrl.u32 1326507024, %v1270
        %v1286 = vor.u32 %v1284, %v1285
        %vm1287 = vcmp.lt.s32.totalorder %v1268, 1
        %vm1288 = vcmp.lt.s32.totalorder %v1268, 2
        %vm1289 = vcmp.lt.s32.totalorder %v1268, 3
        %vm1290 = vcmp.lt.s32.totalorder %v1268, 4
        %v1291 = vsel %vm1287, %v1271, %v1274
        %v1292 = vsel %vm1290, %v1280, 2102212464
        %v1293 = vsel %vm1289, %v1277, %v1292
        %v1294 = vsel %vm1288, %v1291, %v1293
        %v1295 = vsel %vm1287, %v1274, %v1277
        %v1296 = vsel %vm1290, %v1283, 920167782
        %v1297 = vsel %vm1289, %v1280, %v1296
        %v1298 = vsel %vm1288, %v1295, %v1297
        %v1299 = vsel %vm1287, %v1277, %v1280
        %v1300 = vsel %vm1290, %v1286, 1326507024
        %v1301 = vsel %vm1289, %v1283, %v1300
        %v1302 = vsel %vm1288, %v1299, %v1301
        %v1303 = vshll.u32 %v1263, 8
        %v1304 = vmul.u32.u64.compose %v1303, %v1302
        %v1305 = vextract.low.u32 %v1304
        %v1306 = vextract.high.u32 %v1304
        %v1307 = vmul.u32.u64.compose %v1303, %v1298
        %v1308 = vextract.low.u32 %v1307
        %v1309 = vextract.high.u32 %v1307
        %v1310 = vmul.u32 %v1303, %v1294
        %v1311 = vadd.s32 %v1306, %v1308
        %vm1312 = vc.u32 %v1306, %v1308
        %v1313 = vadd.s32 %v1309, 1
        %v1314 = vsel %vm1312, %v1313, %v1309
        %v1315 = vadd.s32 %v1310, %v1314
        %v1316 = vadd.s32 %v1315, 536870912
        %v1317 = vshrl.u32 %v1316, 30
        %v1318 = vshll.u32 %v1317, 30
        %v1319 = vsub.s32 %v1315, %v1318
        %vm1320 = vcmp.lt.s32.totalorder %v1319, 0
        %v1321 = vsub.s32 0, %v1319
        %v1322 = vsel %vm1320, %v1321, %v1319
        %v1323 = vclz %v1322
        %v1324 = vsub.s32 %v1323, 2
        %vm1325 = vcmp.gt.s32.totalorder 0, %v1324
        %v1326 = vsel %vm1325, 0, %v1324
        %v1327 = vsub.s32 32, %v1326
        %v1328 = vshll.u32 %v1319, %v1326
        %v1329 = vshrl.u32 %v1311, %v1327
        %v1330 = vor.u32 %v1328, %v1329
        %v1331 = vsub.s32 4294967266, %v1326
        %v1332 = vadd.s32 %v1331, 127
        %v1333 = vshll.u32 %v1332, 23
        %v1334 = vor.u32 4788187, %v1333
        %v1335 = vand.u32 2147483647, %v1334
        %v1337 = vcvt.s32.f32 %v1330
        %v1338 = vmul.f32 %v1337, %v1335
        %v1339 = vxor.u32 %v1338, 2147483648
        %v1340 = vsel %vm1257, %v1339, %v1338
        %v1341 = vsub.s32 4, %v1317
        %v1342 = vsel %vm1257, %v1341, %v1317
        %v1343 = vsel %vm1256, %v513, %v1340
        %v1344 = vsel %vm1256, 0, %v1342
        %v1345 = vcosq.f32.pop %v1343
        %v1346 = vsinq.f32.pop %v1343
        %vm1347 = vweird.f32 %v513
        %v1348 = vadd.s32 %v1344, 3
        %v1349 = vand.u32 %v1348, 3
        %vm1350 = vcmp.lt.s32.totalorder %v1349, 2
        %vm1351 = vcmp.eq.s32.totalorder %v1349, 0
        %v1352 = vxor.u32 %v1346, 2147483648
        %v1353 = vsel %vm1351, %v1345, %v1352
        %vm1354 = vcmp.eq.s32.totalorder %v1349, 2
        %v1355 = vxor.u32 %v1345, 2147483648
        %v1356 = vsel %vm1354, %v1355, %v1346
        %v1357 = vsel %vm1350, %v1353, %v1356
        %v1358 = vsel %vm1347, nan, %v1357
        %v1359 = vand.u32 2147483647, %v428
        %vm1360 = vcmp.le.f32.partialorder %v1359, 0.7853982
        %vm1361 = vcmp.lt.s32.totalorder %v428, 0
        %v1362 = vand.u32 %v428, 2139095040
        %v1363 = vshrl.u32 %v1362, 23
        %v1364 = vsub.s32 %v1363, 127
        %v1365 = vand.u32 2147483647, %v428
        %v1366 = vand.u32 %v1365, 8388607
        %v1367 = vor.u32 %v1366, 8388608
        %v1368 = vsub.s32 0, %v1367
        %v1369 = vadd.s32 %v1364, 1
        %vm1370 = vcmp.gt.s32.totalorder %v1369, 0
        %v1371 = vsel %vm1370, %v1369, 0
        %v1372 = vshrl.u32 %v1371, 5
        %v1373 = vand.u32 %v1371, 31
        %v1374 = vsub.s32 32, %v1373
        %v1375 = vshrl.u32 683565275, %v1374
        %v1376 = vshll.u32 683565275, %v1373
        %v1377 = vshrl.u32 2475754826, %v1374
        %v1378 = vor.u32 %v1376, %v1377
        %v1379 = vshll.u32 2475754826, %v1373
        %v1380 = vshrl.u32 2131351028, %v1374
        %v1381 = vor.u32 %v1379, %v1380
        %v1382 = vshll.u32 2131351028, %v1373
        %v1383 = vshrl.u32 2102212464, %v1374
        %v1384 = vor.u32 %v1382, %v1383
        %v1385 = vshll.u32 2102212464, %v1373
        %v1386 = vshrl.u32 920167782, %v1374
        %v1387 = vor.u32 %v1385, %v1386
        %v1388 = vshll.u32 920167782, %v1373
        %v1389 = vshrl.u32 1326507024, %v1374
        %v1390 = vor.u32 %v1388, %v1389
        %vm1391 = vcmp.lt.s32.totalorder %v1372, 1
        %vm1392 = vcmp.lt.s32.totalorder %v1372, 2
        %vm1393 = vcmp.lt.s32.totalorder %v1372, 3
        %vm1394 = vcmp.lt.s32.totalorder %v1372, 4
        %v1395 = vsel %vm1391, %v1375, %v1378
        %v1396 = vsel %vm1394, %v1384, 2102212464
        %v1397 = vsel %vm1393, %v1381, %v1396
        %v1398 = vsel %vm1392, %v1395, %v1397
        %v1399 = vsel %vm1391, %v1378, %v1381
        %v1400 = vsel %vm1394, %v1387, 920167782
        %v1401 = vsel %vm1393, %v1384, %v1400
        %v1402 = vsel %vm1392, %v1399, %v1401
        %v1403 = vsel %vm1391, %v1381, %v1384
        %v1404 = vsel %vm1394, %v1390, 1326507024
        %v1405 = vsel %vm1393, %v1387, %v1404
        %v1406 = vsel %vm1392, %v1403, %v1405
        %v1407 = vshll.u32 %v1367, 8
        %v1408 = vmul.u32.u64.compose %v1407, %v1406
        %v1409 = vextract.low.u32 %v1408
        %v1410 = vextract.high.u32 %v1408
        %v1411 = vmul.u32.u64.compose %v1407, %v1402
        %v1412 = vextract.low.u32 %v1411
        %v1413 = vextract.high.u32 %v1411
        %v1414 = vmul.u32 %v1407, %v1398
        %v1415 = vadd.s32 %v1410, %v1412
        %vm1416 = vc.u32 %v1410, %v1412
        %v1417 = vadd.s32 %v1413, 1
        %v1418 = vsel %vm1416, %v1417, %v1413
        %v1419 = vadd.s32 %v1414, %v1418
        %v1420 = vadd.s32 %v1419, 536870912
        %v1421 = vshrl.u32 %v1420, 30
        %v1422 = vshll.u32 %v1421, 30
        %v1423 = vsub.s32 %v1419, %v1422
        %vm1424 = vcmp.lt.s32.totalorder %v1423, 0
        %v1425 = vsub.s32 0, %v1423
        %v1426 = vsel %vm1424, %v1425, %v1423
        %v1427 = vclz %v1426
        %v1428 = vsub.s32 %v1427, 2
        %vm1429 = vcmp.gt.s32.totalorder 0, %v1428
        %v1430 = vsel %vm1429, 0, %v1428
        %v1431 = vsub.s32 32, %v1430
        %v1432 = vshll.u32 %v1423, %v1430
        %v1433 = vshrl.u32 %v1415, %v1431
        %v1434 = vor.u32 %v1432, %v1433
        %v1435 = vsub.s32 4294967266, %v1430
        %v1436 = vadd.s32 %v1435, 127
        %v1437 = vshll.u32 %v1436, 23
        %v1438 = vor.u32 4788187, %v1437
        %v1439 = vand.u32 2147483647, %v1438
        %v1441 = vcvt.s32.f32 %v1434
        %v1442 = vmul.f32 %v1441, %v1439
        %v1443 = vxor.u32 %v1442, 2147483648
        %v1444 = vsel %vm1361, %v1443, %v1442
        %v1445 = vsub.s32 4, %v1421
        %v1446 = vsel %vm1361, %v1445, %v1421
        %v1447 = vsel %vm1360, %v428, %v1444
        %v1448 = vsel %vm1360, 0, %v1446
        %v1449 = vcosq.f32.pop %v1447
        %v1450 = vsinq.f32.pop %v1447
        %vm1451 = vweird.f32 %v428
        %v1452 = vadd.s32 %v1448, 3
        %v1453 = vand.u32 %v1452, 3
        %vm1454 = vcmp.lt.s32.totalorder %v1453, 2
        %vm1455 = vcmp.eq.s32.totalorder %v1453, 0
        %v1456 = vxor.u32 %v1450, 2147483648
        %v1457 = vsel %vm1455, %v1449, %v1456
        %vm1458 = vcmp.eq.s32.totalorder %v1453, 2
        %v1459 = vxor.u32 %v1449, 2147483648
        %v1460 = vsel %vm1458, %v1459, %v1450
        %v1461 = vsel %vm1454, %v1457, %v1460
        %v1462 = vsel %vm1451, nan, %v1461
        %v1463 = vand.u32 2147483647, %v430
        %vm1464 = vcmp.le.f32.partialorder %v1463, 0.7853982
        %vm1465 = vcmp.lt.s32.totalorder %v430, 0
        %v1466 = vand.u32 %v430, 2139095040
        %v1467 = vshrl.u32 %v1466, 23
        %v1468 = vsub.s32 %v1467, 127
        %v1469 = vand.u32 2147483647, %v430
        %v1470 = vand.u32 %v1469, 8388607
        %v1471 = vor.u32 %v1470, 8388608
        %v1472 = vsub.s32 0, %v1471
        %v1473 = vadd.s32 %v1468, 1
        %vm1474 = vcmp.gt.s32.totalorder %v1473, 0
        %v1475 = vsel %vm1474, %v1473, 0
        %v1476 = vshrl.u32 %v1475, 5
        %v1477 = vand.u32 %v1475, 31
        %v1478 = vsub.s32 32, %v1477
        %v1479 = vshrl.u32 683565275, %v1478
        %v1480 = vshll.u32 683565275, %v1477
        %v1481 = vshrl.u32 2475754826, %v1478
        %v1482 = vor.u32 %v1480, %v1481
        %v1483 = vshll.u32 2475754826, %v1477
        %v1484 = vshrl.u32 2131351028, %v1478
        %v1485 = vor.u32 %v1483, %v1484
        %v1486 = vshll.u32 2131351028, %v1477
        %v1487 = vshrl.u32 2102212464, %v1478
        %v1488 = vor.u32 %v1486, %v1487
        %v1489 = vshll.u32 2102212464, %v1477
        %v1490 = vshrl.u32 920167782, %v1478
        %v1491 = vor.u32 %v1489, %v1490
        %v1492 = vshll.u32 920167782, %v1477
        %v1493 = vshrl.u32 1326507024, %v1478
        %v1494 = vor.u32 %v1492, %v1493
        %vm1495 = vcmp.lt.s32.totalorder %v1476, 1
        %vm1496 = vcmp.lt.s32.totalorder %v1476, 2
        %vm1497 = vcmp.lt.s32.totalorder %v1476, 3
        %vm1498 = vcmp.lt.s32.totalorder %v1476, 4
        %v1499 = vsel %vm1495, %v1479, %v1482
        %v1500 = vsel %vm1498, %v1488, 2102212464
        %v1501 = vsel %vm1497, %v1485, %v1500
        %v1502 = vsel %vm1496, %v1499, %v1501
        %v1503 = vsel %vm1495, %v1482, %v1485
        %v1504 = vsel %vm1498, %v1491, 920167782
        %v1505 = vsel %vm1497, %v1488, %v1504
        %v1506 = vsel %vm1496, %v1503, %v1505
        %v1507 = vsel %vm1495, %v1485, %v1488
        %v1508 = vsel %vm1498, %v1494, 1326507024
        %v1509 = vsel %vm1497, %v1491, %v1508
        %v1510 = vsel %vm1496, %v1507, %v1509
        %v1511 = vshll.u32 %v1471, 8
        %v1512 = vmul.u32.u64.compose %v1511, %v1510
        %v1513 = vextract.low.u32 %v1512
        %v1514 = vextract.high.u32 %v1512
        %v1515 = vmul.u32.u64.compose %v1511, %v1506
        %v1516 = vextract.low.u32 %v1515
        %v1517 = vextract.high.u32 %v1515
        %v1518 = vmul.u32 %v1511, %v1502
        %v1519 = vadd.s32 %v1514, %v1516
        %vm1520 = vc.u32 %v1514, %v1516
        %v1521 = vadd.s32 %v1517, 1
        %v1522 = vsel %vm1520, %v1521, %v1517
        %v1523 = vadd.s32 %v1518, %v1522
        %v1524 = vadd.s32 %v1523, 536870912
        %v1525 = vshrl.u32 %v1524, 30
        %v1526 = vshll.u32 %v1525, 30
        %v1527 = vsub.s32 %v1523, %v1526
        %vm1528 = vcmp.lt.s32.totalorder %v1527, 0
        %v1529 = vsub.s32 0, %v1527
        %v1530 = vsel %vm1528, %v1529, %v1527
        %v1531 = vclz %v1530
        %v1532 = vsub.s32 %v1531, 2
        %vm1533 = vcmp.gt.s32.totalorder 0, %v1532
        %v1534 = vsel %vm1533, 0, %v1532
        %v1535 = vsub.s32 32, %v1534
        %v1536 = vshll.u32 %v1527, %v1534
        %v1537 = vshrl.u32 %v1519, %v1535
        %v1538 = vor.u32 %v1536, %v1537
        %v1539 = vsub.s32 4294967266, %v1534
        %v1540 = vadd.s32 %v1539, 127
        %v1541 = vshll.u32 %v1540, 23
        %v1542 = vor.u32 4788187, %v1541
        %v1543 = vand.u32 2147483647, %v1542
        %v1545 = vcvt.s32.f32 %v1538
        %v1546 = vmul.f32 %v1545, %v1543
        %v1547 = vxor.u32 %v1546, 2147483648
        %v1548 = vsel %vm1465, %v1547, %v1546
        %v1549 = vsub.s32 4, %v1525
        %v1550 = vsel %vm1465, %v1549, %v1525
        %v1551 = vsel %vm1464, %v430, %v1548
        %v1552 = vsel %vm1464, 0, %v1550
        %v1553 = vcosq.f32.pop %v1551
        %v1554 = vsinq.f32.pop %v1551
        %vm1555 = vweird.f32 %v430
        %v1556 = vadd.s32 %v1552, 3
        %v1557 = vand.u32 %v1556, 3
        %vm1558 = vcmp.lt.s32.totalorder %v1557, 2
        %vm1559 = vcmp.eq.s32.totalorder %v1557, 0
        %v1560 = vxor.u32 %v1554, 2147483648
        %v1561 = vsel %vm1559, %v1553, %v1560
        %vm1562 = vcmp.eq.s32.totalorder %v1557, 2
        %v1563 = vxor.u32 %v1553, 2147483648
        %v1564 = vsel %vm1562, %v1563, %v1554
        %v1565 = vsel %vm1558, %v1561, %v1564
        %v1566 = vsel %vm1555, nan, %v1565
        %v1567 = vand.u32 2147483647, %v517
        %vm1568 = vcmp.le.f32.partialorder %v1567, 0.7853982
        %vm1569 = vcmp.lt.s32.totalorder %v517, 0
        %v1570 = vand.u32 %v517, 2139095040
        %v1571 = vshrl.u32 %v1570, 23
        %v1572 = vsub.s32 %v1571, 127
        %v1573 = vand.u32 2147483647, %v517
        %v1574 = vand.u32 %v1573, 8388607
        %v1575 = vor.u32 %v1574, 8388608
        %v1576 = vsub.s32 0, %v1575
        %v1577 = vadd.s32 %v1572, 1
        %vm1578 = vcmp.gt.s32.totalorder %v1577, 0
        %v1579 = vsel %vm1578, %v1577, 0
        %v1580 = vshrl.u32 %v1579, 5
        %v1581 = vand.u32 %v1579, 31
        %v1582 = vsub.s32 32, %v1581
        %v1583 = vshrl.u32 683565275, %v1582
        %v1584 = vshll.u32 683565275, %v1581
        %v1585 = vshrl.u32 2475754826, %v1582
        %v1586 = vor.u32 %v1584, %v1585
        %v1587 = vshll.u32 2475754826, %v1581
        %v1588 = vshrl.u32 2131351028, %v1582
        %v1589 = vor.u32 %v1587, %v1588
        %v1590 = vshll.u32 2131351028, %v1581
        %v1591 = vshrl.u32 2102212464, %v1582
        %v1592 = vor.u32 %v1590, %v1591
        %v1593 = vshll.u32 2102212464, %v1581
        %v1594 = vshrl.u32 920167782, %v1582
        %v1595 = vor.u32 %v1593, %v1594
        %v1596 = vshll.u32 920167782, %v1581
        %v1597 = vshrl.u32 1326507024, %v1582
        %v1598 = vor.u32 %v1596, %v1597
        %vm1599 = vcmp.lt.s32.totalorder %v1580, 1
        %vm1600 = vcmp.lt.s32.totalorder %v1580, 2
        %vm1601 = vcmp.lt.s32.totalorder %v1580, 3
        %vm1602 = vcmp.lt.s32.totalorder %v1580, 4
        %v1603 = vsel %vm1599, %v1583, %v1586
        %v1604 = vsel %vm1602, %v1592, 2102212464
        %v1605 = vsel %vm1601, %v1589, %v1604
        %v1606 = vsel %vm1600, %v1603, %v1605
        %v1607 = vsel %vm1599, %v1586, %v1589
        %v1608 = vsel %vm1602, %v1595, 920167782
        %v1609 = vsel %vm1601, %v1592, %v1608
        %v1610 = vsel %vm1600, %v1607, %v1609
        %v1611 = vsel %vm1599, %v1589, %v1592
        %v1612 = vsel %vm1602, %v1598, 1326507024
        %v1613 = vsel %vm1601, %v1595, %v1612
        %v1614 = vsel %vm1600, %v1611, %v1613
        %v1615 = vshll.u32 %v1575, 8
        %v1616 = vmul.u32.u64.compose %v1615, %v1614
        %v1617 = vextract.low.u32 %v1616
        %v1618 = vextract.high.u32 %v1616
        %v1619 = vmul.u32.u64.compose %v1615, %v1610
        %v1620 = vextract.low.u32 %v1619
        %v1621 = vextract.high.u32 %v1619
        %v1622 = vmul.u32 %v1615, %v1606
        %v1623 = vadd.s32 %v1618, %v1620
        %vm1624 = vc.u32 %v1618, %v1620
        %v1625 = vadd.s32 %v1621, 1
        %v1626 = vsel %vm1624, %v1625, %v1621
        %v1627 = vadd.s32 %v1622, %v1626
        %v1628 = vadd.s32 %v1627, 536870912
        %v1629 = vshrl.u32 %v1628, 30
        %v1630 = vshll.u32 %v1629, 30
        %v1631 = vsub.s32 %v1627, %v1630
        %vm1632 = vcmp.lt.s32.totalorder %v1631, 0
        %v1633 = vsub.s32 0, %v1631
        %v1634 = vsel %vm1632, %v1633, %v1631
        %v1635 = vclz %v1634
        %v1636 = vsub.s32 %v1635, 2
        %vm1637 = vcmp.gt.s32.totalorder 0, %v1636
        %v1638 = vsel %vm1637, 0, %v1636
        %v1639 = vsub.s32 32, %v1638
        %v1640 = vshll.u32 %v1631, %v1638
        %v1641 = vshrl.u32 %v1623, %v1639
        %v1642 = vor.u32 %v1640, %v1641
        %v1643 = vsub.s32 4294967266, %v1638
        %v1644 = vadd.s32 %v1643, 127
        %v1645 = vshll.u32 %v1644, 23
        %v1646 = vor.u32 4788187, %v1645
        %v1647 = vand.u32 2147483647, %v1646
        %v1649 = vcvt.s32.f32 %v1642
        %v1650 = vmul.f32 %v1649, %v1647
        %v1651 = vxor.u32 %v1650, 2147483648
        %v1652 = vsel %vm1569, %v1651, %v1650
        %v1653 = vsub.s32 4, %v1629
        %v1654 = vsel %vm1569, %v1653, %v1629
        %v1655 = vsel %vm1568, %v517, %v1652
        %v1656 = vsel %vm1568, 0, %v1654
        %v1657 = vcosq.f32.pop %v1655
        %v1658 = vsinq.f32.pop %v1655
        %vm1659 = vweird.f32 %v517
        %v1660 = vadd.s32 %v1656, 3
        %v1661 = vand.u32 %v1660, 3
        %vm1662 = vcmp.lt.s32.totalorder %v1661, 2
        %vm1663 = vcmp.eq.s32.totalorder %v1661, 0
        %v1664 = vxor.u32 %v1658, 2147483648
        %v1665 = vsel %vm1663, %v1657, %v1664
        %vm1666 = vcmp.eq.s32.totalorder %v1661, 2
        %v1667 = vxor.u32 %v1657, 2147483648
        %v1668 = vsel %vm1666, %v1667, %v1658
        %v1669 = vsel %vm1662, %v1665, %v1668
        %v1670 = vsel %vm1659, nan, %v1669
        %v1671 = vand.u32 2147483647, %v519
        %vm1672 = vcmp.le.f32.partialorder %v1671, 0.7853982
        %vm1673 = vcmp.lt.s32.totalorder %v519, 0
        %v1674 = vand.u32 %v519, 2139095040
        %v1675 = vshrl.u32 %v1674, 23
        %v1676 = vsub.s32 %v1675, 127
        %v1677 = vand.u32 2147483647, %v519
        %v1678 = vand.u32 %v1677, 8388607
        %v1679 = vor.u32 %v1678, 8388608
        %v1680 = vsub.s32 0, %v1679
        %v1681 = vadd.s32 %v1676, 1
        %vm1682 = vcmp.gt.s32.totalorder %v1681, 0
        %v1683 = vsel %vm1682, %v1681, 0
        %v1684 = vshrl.u32 %v1683, 5
        %v1685 = vand.u32 %v1683, 31
        %v1686 = vsub.s32 32, %v1685
        %v1687 = vshrl.u32 683565275, %v1686
        %v1688 = vshll.u32 683565275, %v1685
        %v1689 = vshrl.u32 2475754826, %v1686
        %v1690 = vor.u32 %v1688, %v1689
        %v1691 = vshll.u32 2475754826, %v1685
        %v1692 = vshrl.u32 2131351028, %v1686
        %v1693 = vor.u32 %v1691, %v1692
        %v1694 = vshll.u32 2131351028, %v1685
        %v1695 = vshrl.u32 2102212464, %v1686
        %v1696 = vor.u32 %v1694, %v1695
        %v1697 = vshll.u32 2102212464, %v1685
        %v1698 = vshrl.u32 920167782, %v1686
        %v1699 = vor.u32 %v1697, %v1698
        %v1700 = vshll.u32 920167782, %v1685
        %v1701 = vshrl.u32 1326507024, %v1686
        %v1702 = vor.u32 %v1700, %v1701
        %vm1703 = vcmp.lt.s32.totalorder %v1684, 1
        %vm1704 = vcmp.lt.s32.totalorder %v1684, 2
        %vm1705 = vcmp.lt.s32.totalorder %v1684, 3
        %vm1706 = vcmp.lt.s32.totalorder %v1684, 4
        %v1707 = vsel %vm1703, %v1687, %v1690
        %v1708 = vsel %vm1706, %v1696, 2102212464
        %v1709 = vsel %vm1705, %v1693, %v1708
        %v1710 = vsel %vm1704, %v1707, %v1709
        %v1711 = vsel %vm1703, %v1690, %v1693
        %v1712 = vsel %vm1706, %v1699, 920167782
        %v1713 = vsel %vm1705, %v1696, %v1712
        %v1714 = vsel %vm1704, %v1711, %v1713
        %v1715 = vsel %vm1703, %v1693, %v1696
        %v1716 = vsel %vm1706, %v1702, 1326507024
        %v1717 = vsel %vm1705, %v1699, %v1716
        %v1718 = vsel %vm1704, %v1715, %v1717
        %v1719 = vshll.u32 %v1679, 8
        %v1720 = vmul.u32.u64.compose %v1719, %v1718
        %v1721 = vextract.low.u32 %v1720
        %v1722 = vextract.high.u32 %v1720
        %v1723 = vmul.u32.u64.compose %v1719, %v1714
        %v1724 = vextract.low.u32 %v1723
        %v1725 = vextract.high.u32 %v1723
        %v1726 = vmul.u32 %v1719, %v1710
        %v1727 = vadd.s32 %v1722, %v1724
        %vm1728 = vc.u32 %v1722, %v1724
        %v1729 = vadd.s32 %v1725, 1
        %v1730 = vsel %vm1728, %v1729, %v1725
        %v1731 = vadd.s32 %v1726, %v1730
        %v1732 = vadd.s32 %v1731, 536870912
        %v1733 = vshrl.u32 %v1732, 30
        %v1734 = vshll.u32 %v1733, 30
        %v1735 = vsub.s32 %v1731, %v1734
        %vm1736 = vcmp.lt.s32.totalorder %v1735, 0
        %v1737 = vsub.s32 0, %v1735
        %v1738 = vsel %vm1736, %v1737, %v1735
        %v1739 = vclz %v1738
        %v1740 = vsub.s32 %v1739, 2
        %vm1741 = vcmp.gt.s32.totalorder 0, %v1740
        %v1742 = vsel %vm1741, 0, %v1740
        %v1743 = vsub.s32 32, %v1742
        %v1744 = vshll.u32 %v1735, %v1742
        %v1745 = vshrl.u32 %v1727, %v1743
        %v1746 = vor.u32 %v1744, %v1745
        %v1747 = vsub.s32 4294967266, %v1742
        %v1748 = vadd.s32 %v1747, 127
        %v1749 = vshll.u32 %v1748, 23
        %v1750 = vor.u32 4788187, %v1749
        %v1751 = vand.u32 2147483647, %v1750
        %v1753 = vcvt.s32.f32 %v1746
        %v1754 = vmul.f32 %v1753, %v1751
        %v1755 = vxor.u32 %v1754, 2147483648
        %v1756 = vsel %vm1673, %v1755, %v1754
        %v1757 = vsub.s32 4, %v1733
        %v1758 = vsel %vm1673, %v1757, %v1733
        %v1759 = vsel %vm1672, %v519, %v1756
        %v1760 = vsel %vm1672, 0, %v1758
        %v1761 = vcosq.f32.pop %v1759
        %v1762 = vsinq.f32.pop %v1759
        %vm1763 = vweird.f32 %v519
        %v1764 = vadd.s32 %v1760, 3
        %v1765 = vand.u32 %v1764, 3
        %vm1766 = vcmp.lt.s32.totalorder %v1765, 2
        %vm1767 = vcmp.eq.s32.totalorder %v1765, 0
        %v1768 = vxor.u32 %v1762, 2147483648
        %v1769 = vsel %vm1767, %v1761, %v1768
        %vm1770 = vcmp.eq.s32.totalorder %v1765, 2
        %v1771 = vxor.u32 %v1761, 2147483648
        %v1772 = vsel %vm1770, %v1771, %v1762
        %v1773 = vsel %vm1766, %v1769, %v1772
        %v1774 = vsel %vm1763, nan, %v1773
        %v1775 = vand.u32 2147483647, %v434
        %vm1776 = vcmp.le.f32.partialorder %v1775, 0.7853982
        %vm1777 = vcmp.lt.s32.totalorder %v434, 0
        %v1778 = vand.u32 %v434, 2139095040
        %v1779 = vshrl.u32 %v1778, 23
        %v1780 = vsub.s32 %v1779, 127
        %v1781 = vand.u32 2147483647, %v434
        %v1782 = vand.u32 %v1781, 8388607
        %v1783 = vor.u32 %v1782, 8388608
        %v1784 = vsub.s32 0, %v1783
        %v1785 = vadd.s32 %v1780, 1
        %vm1786 = vcmp.gt.s32.totalorder %v1785, 0
        %v1787 = vsel %vm1786, %v1785, 0
        %v1788 = vshrl.u32 %v1787, 5
        %v1789 = vand.u32 %v1787, 31
        %v1790 = vsub.s32 32, %v1789
        %v1791 = vshrl.u32 683565275, %v1790
        %v1792 = vshll.u32 683565275, %v1789
        %v1793 = vshrl.u32 2475754826, %v1790
        %v1794 = vor.u32 %v1792, %v1793
        %v1795 = vshll.u32 2475754826, %v1789
        %v1796 = vshrl.u32 2131351028, %v1790
        %v1797 = vor.u32 %v1795, %v1796
        %v1798 = vshll.u32 2131351028, %v1789
        %v1799 = vshrl.u32 2102212464, %v1790
        %v1800 = vor.u32 %v1798, %v1799
        %v1801 = vshll.u32 2102212464, %v1789
        %v1802 = vshrl.u32 920167782, %v1790
        %v1803 = vor.u32 %v1801, %v1802
        %v1804 = vshll.u32 920167782, %v1789
        %v1805 = vshrl.u32 1326507024, %v1790
        %v1806 = vor.u32 %v1804, %v1805
        %vm1807 = vcmp.lt.s32.totalorder %v1788, 1
        %vm1808 = vcmp.lt.s32.totalorder %v1788, 2
        %vm1809 = vcmp.lt.s32.totalorder %v1788, 3
        %vm1810 = vcmp.lt.s32.totalorder %v1788, 4
        %v1811 = vsel %vm1807, %v1791, %v1794
        %v1812 = vsel %vm1810, %v1800, 2102212464
        %v1813 = vsel %vm1809, %v1797, %v1812
        %v1814 = vsel %vm1808, %v1811, %v1813
        %v1815 = vsel %vm1807, %v1794, %v1797
        %v1816 = vsel %vm1810, %v1803, 920167782
        %v1817 = vsel %vm1809, %v1800, %v1816
        %v1818 = vsel %vm1808, %v1815, %v1817
        %v1819 = vsel %vm1807, %v1797, %v1800
        %v1820 = vsel %vm1810, %v1806, 1326507024
        %v1821 = vsel %vm1809, %v1803, %v1820
        %v1822 = vsel %vm1808, %v1819, %v1821
        %v1823 = vshll.u32 %v1783, 8
        %v1824 = vmul.u32.u64.compose %v1823, %v1822
        %v1825 = vextract.low.u32 %v1824
        %v1826 = vextract.high.u32 %v1824
        %v1827 = vmul.u32.u64.compose %v1823, %v1818
        %v1828 = vextract.low.u32 %v1827
        %v1829 = vextract.high.u32 %v1827
        %v1830 = vmul.u32 %v1823, %v1814
        %v1831 = vadd.s32 %v1826, %v1828
        %vm1832 = vc.u32 %v1826, %v1828
        %v1833 = vadd.s32 %v1829, 1
        %v1834 = vsel %vm1832, %v1833, %v1829
        %v1835 = vadd.s32 %v1830, %v1834
        %v1836 = vadd.s32 %v1835, 536870912
        %v1837 = vshrl.u32 %v1836, 30
        %v1838 = vshll.u32 %v1837, 30
        %v1839 = vsub.s32 %v1835, %v1838
        %vm1840 = vcmp.lt.s32.totalorder %v1839, 0
        %v1841 = vsub.s32 0, %v1839
        %v1842 = vsel %vm1840, %v1841, %v1839
        %v1843 = vclz %v1842
        %v1844 = vsub.s32 %v1843, 2
        %vm1845 = vcmp.gt.s32.totalorder 0, %v1844
        %v1846 = vsel %vm1845, 0, %v1844
        %v1847 = vsub.s32 32, %v1846
        %v1848 = vshll.u32 %v1839, %v1846
        %v1849 = vshrl.u32 %v1831, %v1847
        %v1850 = vor.u32 %v1848, %v1849
        %v1851 = vsub.s32 4294967266, %v1846
        %v1852 = vadd.s32 %v1851, 127
        %v1853 = vshll.u32 %v1852, 23
        %v1854 = vor.u32 4788187, %v1853
        %v1855 = vand.u32 2147483647, %v1854
        %v1857 = vcvt.s32.f32 %v1850
        %v1858 = vmul.f32 %v1857, %v1855
        %v1859 = vxor.u32 %v1858, 2147483648
        %v1860 = vsel %vm1777, %v1859, %v1858
        %v1861 = vsub.s32 4, %v1837
        %v1862 = vsel %vm1777, %v1861, %v1837
        %v1863 = vsel %vm1776, %v434, %v1860
        %v1864 = vsel %vm1776, 0, %v1862
        %v1865 = vcosq.f32.pop %v1863
        %v1866 = vsinq.f32.pop %v1863
        %vm1867 = vweird.f32 %v434
        %v1868 = vadd.s32 %v1864, 3
        %v1869 = vand.u32 %v1868, 3
        %vm1870 = vcmp.lt.s32.totalorder %v1869, 2
        %vm1871 = vcmp.eq.s32.totalorder %v1869, 0
        %v1872 = vxor.u32 %v1866, 2147483648
        %v1873 = vsel %vm1871, %v1865, %v1872
        %vm1874 = vcmp.eq.s32.totalorder %v1869, 2
        %v1875 = vxor.u32 %v1865, 2147483648
        %v1876 = vsel %vm1874, %v1875, %v1866
        %v1877 = vsel %vm1870, %v1873, %v1876
        %v1878 = vsel %vm1867, nan, %v1877
        %v1879 = vand.u32 2147483647, %v436
        %vm1880 = vcmp.le.f32.partialorder %v1879, 0.7853982
        %vm1881 = vcmp.lt.s32.totalorder %v436, 0
        %v1882 = vand.u32 %v436, 2139095040
        %v1883 = vshrl.u32 %v1882, 23
        %v1884 = vsub.s32 %v1883, 127
        %v1885 = vand.u32 2147483647, %v436
        %v1886 = vand.u32 %v1885, 8388607
        %v1887 = vor.u32 %v1886, 8388608
        %v1888 = vsub.s32 0, %v1887
        %v1889 = vadd.s32 %v1884, 1
        %vm1890 = vcmp.gt.s32.totalorder %v1889, 0
        %v1891 = vsel %vm1890, %v1889, 0
        %v1892 = vshrl.u32 %v1891, 5
        %v1893 = vand.u32 %v1891, 31
        %v1894 = vsub.s32 32, %v1893
        %v1895 = vshrl.u32 683565275, %v1894
        %v1896 = vshll.u32 683565275, %v1893
        %v1897 = vshrl.u32 2475754826, %v1894
        %v1898 = vor.u32 %v1896, %v1897
        %v1899 = vshll.u32 2475754826, %v1893
        %v1900 = vshrl.u32 2131351028, %v1894
        %v1901 = vor.u32 %v1899, %v1900
        %v1902 = vshll.u32 2131351028, %v1893
        %v1903 = vshrl.u32 2102212464, %v1894
        %v1904 = vor.u32 %v1902, %v1903
        %v1905 = vshll.u32 2102212464, %v1893
        %v1906 = vshrl.u32 920167782, %v1894
        %v1907 = vor.u32 %v1905, %v1906
        %v1908 = vshll.u32 920167782, %v1893
        %v1909 = vshrl.u32 1326507024, %v1894
        %v1910 = vor.u32 %v1908, %v1909
        %vm1911 = vcmp.lt.s32.totalorder %v1892, 1
        %vm1912 = vcmp.lt.s32.totalorder %v1892, 2
        %vm1913 = vcmp.lt.s32.totalorder %v1892, 3
        %vm1914 = vcmp.lt.s32.totalorder %v1892, 4
        %v1915 = vsel %vm1911, %v1895, %v1898
        %v1916 = vsel %vm1914, %v1904, 2102212464
        %v1917 = vsel %vm1913, %v1901, %v1916
        %v1918 = vsel %vm1912, %v1915, %v1917
        %v1919 = vsel %vm1911, %v1898, %v1901
        %v1920 = vsel %vm1914, %v1907, 920167782
        %v1921 = vsel %vm1913, %v1904, %v1920
        %v1922 = vsel %vm1912, %v1919, %v1921
        %v1923 = vsel %vm1911, %v1901, %v1904
        %v1924 = vsel %vm1914, %v1910, 1326507024
        %v1925 = vsel %vm1913, %v1907, %v1924
        %v1926 = vsel %vm1912, %v1923, %v1925
        %v1927 = vshll.u32 %v1887, 8
        %v1928 = vmul.u32.u64.compose %v1927, %v1926
        %v1929 = vextract.low.u32 %v1928
        %v1930 = vextract.high.u32 %v1928
        %v1931 = vmul.u32.u64.compose %v1927, %v1922
        %v1932 = vextract.low.u32 %v1931
        %v1933 = vextract.high.u32 %v1931
        %v1934 = vmul.u32 %v1927, %v1918
        %v1935 = vadd.s32 %v1930, %v1932
        %vm1936 = vc.u32 %v1930, %v1932
        %v1937 = vadd.s32 %v1933, 1
        %v1938 = vsel %vm1936, %v1937, %v1933
        %v1939 = vadd.s32 %v1934, %v1938
        %v1940 = vadd.s32 %v1939, 536870912
        %v1941 = vshrl.u32 %v1940, 30
        %v1942 = vshll.u32 %v1941, 30
        %v1943 = vsub.s32 %v1939, %v1942
        %vm1944 = vcmp.lt.s32.totalorder %v1943, 0
        %v1945 = vsub.s32 0, %v1943
        %v1946 = vsel %vm1944, %v1945, %v1943
        %v1947 = vclz %v1946
        %v1948 = vsub.s32 %v1947, 2
        %vm1949 = vcmp.gt.s32.totalorder 0, %v1948
        %v1950 = vsel %vm1949, 0, %v1948
        %v1951 = vsub.s32 32, %v1950
        %v1952 = vshll.u32 %v1943, %v1950
        %v1953 = vshrl.u32 %v1935, %v1951
        %v1954 = vor.u32 %v1952, %v1953
        %v1955 = vsub.s32 4294967266, %v1950
        %v1956 = vadd.s32 %v1955, 127
        %v1957 = vshll.u32 %v1956, 23
        %v1958 = vor.u32 4788187, %v1957
        %v1959 = vand.u32 2147483647, %v1958
        %v1961 = vcvt.s32.f32 %v1954
        %v1962 = vmul.f32 %v1961, %v1959
        %v1963 = vxor.u32 %v1962, 2147483648
        %v1964 = vsel %vm1881, %v1963, %v1962
        %v1965 = vsub.s32 4, %v1941
        %v1966 = vsel %vm1881, %v1965, %v1941
        %v1967 = vsel %vm1880, %v436, %v1964
        %v1968 = vsel %vm1880, 0, %v1966
        %v1969 = vcosq.f32.pop %v1967
        %v1970 = vsinq.f32.pop %v1967
        %vm1971 = vweird.f32 %v436
        %v1972 = vadd.s32 %v1968, 3
        %v1973 = vand.u32 %v1972, 3
        %vm1974 = vcmp.lt.s32.totalorder %v1973, 2
        %vm1975 = vcmp.eq.s32.totalorder %v1973, 0
        %v1976 = vxor.u32 %v1970, 2147483648
        %v1977 = vsel %vm1975, %v1969, %v1976
        %vm1978 = vcmp.eq.s32.totalorder %v1973, 2
        %v1979 = vxor.u32 %v1969, 2147483648
        %v1980 = vsel %vm1978, %v1979, %v1970
        %v1981 = vsel %vm1974, %v1977, %v1980
        %v1982 = vsel %vm1971, nan, %v1981
        %v1983 = vand.u32 2147483647, %v523
        %vm1984 = vcmp.le.f32.partialorder %v1983, 0.7853982
        %vm1985 = vcmp.lt.s32.totalorder %v523, 0
        %v1986 = vand.u32 %v523, 2139095040
        %v1987 = vshrl.u32 %v1986, 23
        %v1988 = vsub.s32 %v1987, 127
        %v1989 = vand.u32 2147483647, %v523
        %v1990 = vand.u32 %v1989, 8388607
        %v1991 = vor.u32 %v1990, 8388608
        %v1992 = vsub.s32 0, %v1991
        %v1993 = vadd.s32 %v1988, 1
        %vm1994 = vcmp.gt.s32.totalorder %v1993, 0
        %v1995 = vsel %vm1994, %v1993, 0
        %v1996 = vshrl.u32 %v1995, 5
        %v1997 = vand.u32 %v1995, 31
        %v1998 = vsub.s32 32, %v1997
        %v1999 = vshrl.u32 683565275, %v1998
        %v2000 = vshll.u32 683565275, %v1997
        %v2001 = vshrl.u32 2475754826, %v1998
        %v2002 = vor.u32 %v2000, %v2001
        %v2003 = vshll.u32 2475754826, %v1997
        %v2004 = vshrl.u32 2131351028, %v1998
        %v2005 = vor.u32 %v2003, %v2004
        %v2006 = vshll.u32 2131351028, %v1997
        %v2007 = vshrl.u32 2102212464, %v1998
        %v2008 = vor.u32 %v2006, %v2007
        %v2009 = vshll.u32 2102212464, %v1997
        %v2010 = vshrl.u32 920167782, %v1998
        %v2011 = vor.u32 %v2009, %v2010
        %v2012 = vshll.u32 920167782, %v1997
        %v2013 = vshrl.u32 1326507024, %v1998
        %v2014 = vor.u32 %v2012, %v2013
        %vm2015 = vcmp.lt.s32.totalorder %v1996, 1
        %vm2016 = vcmp.lt.s32.totalorder %v1996, 2
        %vm2017 = vcmp.lt.s32.totalorder %v1996, 3
        %vm2018 = vcmp.lt.s32.totalorder %v1996, 4
        %v2019 = vsel %vm2015, %v1999, %v2002
        %v2020 = vsel %vm2018, %v2008, 2102212464
        %v2021 = vsel %vm2017, %v2005, %v2020
        %v2022 = vsel %vm2016, %v2019, %v2021
        %v2023 = vsel %vm2015, %v2002, %v2005
        %v2024 = vsel %vm2018, %v2011, 920167782
        %v2025 = vsel %vm2017, %v2008, %v2024
        %v2026 = vsel %vm2016, %v2023, %v2025
        %v2027 = vsel %vm2015, %v2005, %v2008
        %v2028 = vsel %vm2018, %v2014, 1326507024
        %v2029 = vsel %vm2017, %v2011, %v2028
        %v2030 = vsel %vm2016, %v2027, %v2029
        %v2031 = vshll.u32 %v1991, 8
        %v2032 = vmul.u32.u64.compose %v2031, %v2030
        %v2033 = vextract.low.u32 %v2032
        %v2034 = vextract.high.u32 %v2032
        %v2035 = vmul.u32.u64.compose %v2031, %v2026
        %v2036 = vextract.low.u32 %v2035
        %v2037 = vextract.high.u32 %v2035
        %v2038 = vmul.u32 %v2031, %v2022
        %v2039 = vadd.s32 %v2034, %v2036
        %vm2040 = vc.u32 %v2034, %v2036
        %v2041 = vadd.s32 %v2037, 1
        %v2042 = vsel %vm2040, %v2041, %v2037
        %v2043 = vadd.s32 %v2038, %v2042
        %v2044 = vadd.s32 %v2043, 536870912
        %v2045 = vshrl.u32 %v2044, 30
        %v2046 = vshll.u32 %v2045, 30
        %v2047 = vsub.s32 %v2043, %v2046
        %vm2048 = vcmp.lt.s32.totalorder %v2047, 0
        %v2049 = vsub.s32 0, %v2047
        %v2050 = vsel %vm2048, %v2049, %v2047
        %v2051 = vclz %v2050
        %v2052 = vsub.s32 %v2051, 2
        %vm2053 = vcmp.gt.s32.totalorder 0, %v2052
        %v2054 = vsel %vm2053, 0, %v2052
        %v2055 = vsub.s32 32, %v2054
        %v2056 = vshll.u32 %v2047, %v2054
        %v2057 = vshrl.u32 %v2039, %v2055
        %v2058 = vor.u32 %v2056, %v2057
        %v2059 = vsub.s32 4294967266, %v2054
        %v2060 = vadd.s32 %v2059, 127
        %v2061 = vshll.u32 %v2060, 23
        %v2062 = vor.u32 4788187, %v2061
        %v2063 = vand.u32 2147483647, %v2062
        %v2065 = vcvt.s32.f32 %v2058
        %v2066 = vmul.f32 %v2065, %v2063
        %v2067 = vxor.u32 %v2066, 2147483648
        %v2068 = vsel %vm1985, %v2067, %v2066
        %v2069 = vsub.s32 4, %v2045
        %v2070 = vsel %vm1985, %v2069, %v2045
        %v2071 = vsel %vm1984, %v523, %v2068
        %v2072 = vsel %vm1984, 0, %v2070
        %v2073 = vcosq.f32.pop %v2071
        %v2074 = vsinq.f32.pop %v2071
        %vm2075 = vweird.f32 %v523
        %v2076 = vadd.s32 %v2072, 3
        %v2077 = vand.u32 %v2076, 3
        %vm2078 = vcmp.lt.s32.totalorder %v2077, 2
        %vm2079 = vcmp.eq.s32.totalorder %v2077, 0
        %v2080 = vxor.u32 %v2074, 2147483648
        %v2081 = vsel %vm2079, %v2073, %v2080
        %vm2082 = vcmp.eq.s32.totalorder %v2077, 2
        %v2083 = vxor.u32 %v2073, 2147483648
        %v2084 = vsel %vm2082, %v2083, %v2074
        %v2085 = vsel %vm2078, %v2081, %v2084
        %v2086 = vsel %vm2075, nan, %v2085
        %v2087 = vand.u32 2147483647, %v525
        %vm2088 = vcmp.le.f32.partialorder %v2087, 0.7853982
        %vm2089 = vcmp.lt.s32.totalorder %v525, 0
        %v2090 = vand.u32 %v525, 2139095040
        %v2091 = vshrl.u32 %v2090, 23
        %v2092 = vsub.s32 %v2091, 127
        %v2093 = vand.u32 2147483647, %v525
        %v2094 = vand.u32 %v2093, 8388607
        %v2095 = vor.u32 %v2094, 8388608
        %v2096 = vsub.s32 0, %v2095
        %v2097 = vadd.s32 %v2092, 1
        %vm2098 = vcmp.gt.s32.totalorder %v2097, 0
        %v2099 = vsel %vm2098, %v2097, 0
        %v2100 = vshrl.u32 %v2099, 5
        %v2101 = vand.u32 %v2099, 31
        %v2102 = vsub.s32 32, %v2101
        %v2103 = vshrl.u32 683565275, %v2102
        %v2104 = vshll.u32 683565275, %v2101
        %v2105 = vshrl.u32 2475754826, %v2102
        %v2106 = vor.u32 %v2104, %v2105
        %v2107 = vshll.u32 2475754826, %v2101
        %v2108 = vshrl.u32 2131351028, %v2102
        %v2109 = vor.u32 %v2107, %v2108
        %v2110 = vshll.u32 2131351028, %v2101
        %v2111 = vshrl.u32 2102212464, %v2102
        %v2112 = vor.u32 %v2110, %v2111
        %v2113 = vshll.u32 2102212464, %v2101
        %v2114 = vshrl.u32 920167782, %v2102
        %v2115 = vor.u32 %v2113, %v2114
        %v2116 = vshll.u32 920167782, %v2101
        %v2117 = vshrl.u32 1326507024, %v2102
        %v2118 = vor.u32 %v2116, %v2117
        %vm2119 = vcmp.lt.s32.totalorder %v2100, 1
        %vm2120 = vcmp.lt.s32.totalorder %v2100, 2
        %vm2121 = vcmp.lt.s32.totalorder %v2100, 3
        %vm2122 = vcmp.lt.s32.totalorder %v2100, 4
        %v2123 = vsel %vm2119, %v2103, %v2106
        %v2124 = vsel %vm2122, %v2112, 2102212464
        %v2125 = vsel %vm2121, %v2109, %v2124
        %v2126 = vsel %vm2120, %v2123, %v2125
        %v2127 = vsel %vm2119, %v2106, %v2109
        %v2128 = vsel %vm2122, %v2115, 920167782
        %v2129 = vsel %vm2121, %v2112, %v2128
        %v2130 = vsel %vm2120, %v2127, %v2129
        %v2131 = vsel %vm2119, %v2109, %v2112
        %v2132 = vsel %vm2122, %v2118, 1326507024
        %v2133 = vsel %vm2121, %v2115, %v2132
        %v2134 = vsel %vm2120, %v2131, %v2133
        %v2135 = vshll.u32 %v2095, 8
        %v2136 = vmul.u32.u64.compose %v2135, %v2134
        %v2137 = vextract.low.u32 %v2136
        %v2138 = vextract.high.u32 %v2136
        %v2139 = vmul.u32.u64.compose %v2135, %v2130
        %v2140 = vextract.low.u32 %v2139
        %v2141 = vextract.high.u32 %v2139
        %v2142 = vmul.u32 %v2135, %v2126
        %v2143 = vadd.s32 %v2138, %v2140
        %vm2144 = vc.u32 %v2138, %v2140
        %v2145 = vadd.s32 %v2141, 1
        %v2146 = vsel %vm2144, %v2145, %v2141
        %v2147 = vadd.s32 %v2142, %v2146
        %v2148 = vadd.s32 %v2147, 536870912
        %v2149 = vshrl.u32 %v2148, 30
        %v2150 = vshll.u32 %v2149, 30
        %v2151 = vsub.s32 %v2147, %v2150
        %vm2152 = vcmp.lt.s32.totalorder %v2151, 0
        %v2153 = vsub.s32 0, %v2151
        %v2154 = vsel %vm2152, %v2153, %v2151
        %v2155 = vclz %v2154
        %v2156 = vsub.s32 %v2155, 2
        %vm2157 = vcmp.gt.s32.totalorder 0, %v2156
        %v2158 = vsel %vm2157, 0, %v2156
        %v2159 = vsub.s32 32, %v2158
        %v2160 = vshll.u32 %v2151, %v2158
        %v2161 = vshrl.u32 %v2143, %v2159
        %v2162 = vor.u32 %v2160, %v2161
        %v2163 = vsub.s32 4294967266, %v2158
        %v2164 = vadd.s32 %v2163, 127
        %v2165 = vshll.u32 %v2164, 23
        %v2166 = vor.u32 4788187, %v2165
        %v2167 = vand.u32 2147483647, %v2166
        %v2169 = vcvt.s32.f32 %v2162
        %v2170 = vmul.f32 %v2169, %v2167
        %v2171 = vxor.u32 %v2170, 2147483648
        %v2172 = vsel %vm2089, %v2171, %v2170
        %v2173 = vsub.s32 4, %v2149
        %v2174 = vsel %vm2089, %v2173, %v2149
        %v2175 = vsel %vm2088, %v525, %v2172
        %v2176 = vsel %vm2088, 0, %v2174
        %v2177 = vcosq.f32.pop %v2175
        %v2178 = vsinq.f32.pop %v2175
        %vm2179 = vweird.f32 %v525
        %v2180 = vadd.s32 %v2176, 3
        %v2181 = vand.u32 %v2180, 3
        %vm2182 = vcmp.lt.s32.totalorder %v2181, 2
        %vm2183 = vcmp.eq.s32.totalorder %v2181, 0
        %v2184 = vxor.u32 %v2178, 2147483648
        %v2185 = vsel %vm2183, %v2177, %v2184
        %vm2186 = vcmp.eq.s32.totalorder %v2181, 2
        %v2187 = vxor.u32 %v2177, 2147483648
        %v2188 = vsel %vm2186, %v2187, %v2178
        %v2189 = vsel %vm2182, %v2185, %v2188
        %v2190 = vsel %vm2179, nan, %v2189
        %v2191 = vld [vmem:[%s3] sm:$0xff]
        %v2192 = vld [vmem:[%s3 + $0x8] sm:$0xff]
        %v2193 = vld [vmem:[%s3 + $0x10] sm:$0xff]
        %v2194 = vld [vmem:[%s3 + $0x18] sm:$0xff]
        %v2195 = vld [vmem:[%s4] sm:$0xff]
        %v2196 = vld [vmem:[%s4 + $0x8] sm:$0xff]
        %v2197 = vld [vmem:[%s4 + $0x10] sm:$0xff]
        %v2198 = vld [vmem:[%s4 + $0x18] sm:$0xff]
        %2200 = vset.pattern.permute.xlu0 0
        %2201 = vperm.xlu0 %2200, %v2195
        %v2202 = vpop.permute.xlu0 %2201
        %2205 = vset.pattern.permute.xlu0 0
        %2206 = vperm.xlu0 %2205, %v2196
        %v2207 = vpop.permute.xlu0 %2206
        %2210 = vset.pattern.permute.xlu0 0
        %2211 = vperm.xlu0 %2210, %v2197
        %v2212 = vpop.permute.xlu0 %2211
        %2215 = vset.pattern.permute.xlu0 0
        %2216 = vperm.xlu0 %2215, %v2198
        %v2217 = vpop.permute.xlu0 %2216
        %vm2219 = vcmask 261120
        %v2221 = vsel %vm2219, %v2191, 0
        %v2224 = vsel %vm2219, %v2192, 0
        %v2227 = vsel %vm2219, %v2193, 0
        %v2230 = vsel %vm2219, %v2194, 0
        %2232 = vmatprep.subr.mxu0 %v734
        %2233 = vmatpush1.msra.mxu0 %v630
        %2234 = vmatprep.subr.mxu0 %v1150
        %2235 = vmatpush1.msra.mxu0 %v1046
        %2236 = vmatprep.subr.mxu0 %v1566
        %2237 = vmatpush1.msra.mxu0 %v1462
        %2238 = vmatprep.subr.mxu0 %v1982
        %2239 = vmatpush1.msra.mxu0 %v1878
        %2240 = vmatprep.subr.mxu0 0.0
        %2241 = vmatpush1.msra.mxu0 0.0
        %2242 = vmatprep.subr.mxu0 0.0
        %2243 = vmatpush1.msra.mxu0 0.0
        %2244 = vmatprep.subr.mxu0 0.0
        %2245 = vmatpush1.msra.mxu0 0.0
        %2246 = vmatprep.subr.mxu0 0.0
        %2247 = vmatpush1.msra.mxu0 0.0
        %2248 = vmatprep.subr.mxu0 0.0
        %2249 = vmatpush1.msra.mxu0 0.0
        %2250 = vmatprep.subr.mxu0 0.0
        %2251 = vmatpush1.msra.mxu0 0.0
        %2252 = vmatprep.subr.mxu0 0.0
        %2253 = vmatpush1.msra.mxu0 0.0
        %2254 = vmatprep.subr.mxu0 0.0
        %2255 = vmatpush1.msra.mxu0 0.0
        %2256 = vmatprep.subr.mxu0 0.0
        %2257 = vmatpush1.msra.mxu0 0.0
        %2258 = vmatprep.subr.mxu0 0.0
        %2259 = vmatpush1.msra.mxu0 0.0
        %2260 = vmatprep.subr.mxu0 0.0
        %2261 = vmatpush1.msra.mxu0 0.0
        %2262 = vmatprep.subr.mxu0 0.0
        %2263 = vmatpush1.msra.mxu0 0.0
        %2264 = vmatprep.subr.mxu0 0.0
        %2265 = vmatpush1.msra.mxu0 0.0
        %2266 = vmatprep.subr.mxu0 0.0
        %2267 = vmatpush1.msra.mxu0 0.0
        %2268 = vmatprep.subr.mxu0 0.0
        %2269 = vmatpush1.msra.mxu0 0.0
        %2270 = vmatprep.subr.mxu0 0.0
        %2271 = vmatpush1.msra.mxu0 0.0
        %2272 = vmatprep.subr.mxu0 0.0
        %2273 = vmatpush1.msra.mxu0 0.0
        %2274 = vmatprep.subr.mxu0 0.0
        %2275 = vmatpush1.msra.mxu0 0.0
        %2276 = vmatprep.subr.mxu0 0.0
        %2277 = vmatpush1.msra.mxu0 0.0
        %2278 = vmatprep.subr.mxu0 0.0
        %2279 = vmatpush1.msra.mxu0 0.0
        %2280 = vmatprep.subr.mxu0 0.0
        %2281 = vmatpush1.msra.mxu0 0.0
        %2282 = vmatprep.subr.mxu0 0.0
        %2283 = vmatpush1.msra.mxu0 0.0
        %2284 = vmatprep.subr.mxu0 0.0
        %2285 = vmatpush1.msra.mxu0 0.0
        %2286 = vmatprep.subr.mxu0 0.0
        %2287 = vmatpush1.msra.mxu0 0.0
        %2288 = vmatprep.subr.mxu0 0.0
        %2289 = vmatpush1.msra.mxu0 0.0
        %2290 = vmatprep.subr.mxu0 0.0
        %2291 = vmatpush1.msra.mxu0 0.0
        %2292 = vmatprep.subr.mxu0 0.0
        %2293 = vmatpush1.msra.mxu0 0.0
        %2294 = vmatprep.subr.mxu0 0.0
        %2295 = vmatpush1.msra.mxu0 0.0
        %2296 = vmatprep.mubr.f32.mxu0 0.0
        %2297 = vmatmul.mubr.f32.gmra.mrb[0].mxu0 %v2221
        %v2298 = vpop.f32.mrb[0].mxu0
        %v2299 = vadd.f32 %v2202, %v2298
        %v2300 = vpop.f32.mrb[0].mxu0
        %v2301 = vadd.f32 %v2202, %v2300
        %2302 = vmatprep.mubr.f32.mxu0 0.0
        %2303 = vmatmul.mubr.f32.gmra.mrb[0].mxu0 %v2224
        %v2304 = vpop.f32.mrb[0].mxu0
        %v2305 = vadd.f32 %v2207, %v2304
        %v2306 = vpop.f32.mrb[0].mxu0
        %v2307 = vadd.f32 %v2207, %v2306
        %2308 = vmatprep.mubr.f32.mxu0 0.0
        %2309 = vmatmul.mubr.f32.gmra.mrb[0].mxu0 %v2227
        %v2310 = vpop.f32.mrb[0].mxu0
        %v2311 = vadd.f32 %v2212, %v2310
        %v2312 = vpop.f32.mrb[0].mxu0
        %v2313 = vadd.f32 %v2212, %v2312
        %2314 = vmatprep.mubr.f32.mxu0 0.0
        %2315 = vmatmul.mubr.f32.gmra.mrb[0].mxu0 %v2230
        %v2316 = vpop.f32.mrb[0].mxu0
        %v2317 = vadd.f32 %v2217, %v2316
        %v2318 = vpop.f32.mrb[0].mxu0
        %v2319 = vadd.f32 %v2217, %v2318
        %2320 = vdwg.mxu0
        %2321 = vmatprep.subr.mxu0 %v942
        %2322 = vmatpush1.msra.mxu0 %v838
        %2323 = vmatprep.subr.mxu0 %v1358
        %2324 = vmatpush1.msra.mxu0 %v1254
        %2325 = vmatprep.subr.mxu0 %v1774
        %2326 = vmatpush1.msra.mxu0 %v1670
        %2327 = vmatprep.subr.mxu0 %v2190
        %2328 = vmatpush1.msra.mxu0 %v2086
        %2329 = vmatprep.subr.mxu0 0.0
        %2330 = vmatpush1.msra.mxu0 0.0
        %2331 = vmatprep.subr.mxu0 0.0
        %2332 = vmatpush1.msra.mxu0 0.0
        %2333 = vmatprep.subr.mxu0 0.0
        %2334 = vmatpush1.msra.mxu0 0.0
        %2335 = vmatprep.subr.mxu0 0.0
        %2336 = vmatpush1.msra.mxu0 0.0
        %2337 = vmatprep.subr.mxu0 0.0
        %2338 = vmatpush1.msra.mxu0 0.0
        %2339 = vmatprep.subr.mxu0 0.0
        %2340 = vmatpush1.msra.mxu0 0.0
        %2341 = vmatprep.subr.mxu0 0.0
        %2342 = vmatpush1.msra.mxu0 0.0
        %2343 = vmatprep.subr.mxu0 0.0
        %2344 = vmatpush1.msra.mxu0 0.0
        %2345 = vmatprep.subr.mxu0 0.0
        %2346 = vmatpush1.msra.mxu0 0.0
        %2347 = vmatprep.subr.mxu0 0.0
        %2348 = vmatpush1.msra.mxu0 0.0
        %2349 = vmatprep.subr.mxu0 0.0
        %2350 = vmatpush1.msra.mxu0 0.0
        %2351 = vmatprep.subr.mxu0 0.0
        %2352 = vmatpush1.msra.mxu0 0.0
        %2353 = vmatprep.subr.mxu0 0.0
        %2354 = vmatpush1.msra.mxu0 0.0
        %2355 = vmatprep.subr.mxu0 0.0
        %2356 = vmatpush1.msra.mxu0 0.0
        %2357 = vmatprep.subr.mxu0 0.0
        %2358 = vmatpush1.msra.mxu0 0.0
        %2359 = vmatprep.subr.mxu0 0.0
        %2360 = vmatpush1.msra.mxu0 0.0
        %2361 = vmatprep.subr.mxu0 0.0
        %2362 = vmatpush1.msra.mxu0 0.0
        %2363 = vmatprep.subr.mxu0 0.0
        %2364 = vmatpush1.msra.mxu0 0.0
        %2365 = vmatprep.subr.mxu0 0.0
        %2366 = vmatpush1.msra.mxu0 0.0
        %2367 = vmatprep.subr.mxu0 0.0
        %2368 = vmatpush1.msra.mxu0 0.0
        %2369 = vmatprep.subr.mxu0 0.0
        %2370 = vmatpush1.msra.mxu0 0.0
        %2371 = vmatprep.subr.mxu0 0.0
        %2372 = vmatpush1.msra.mxu0 0.0
        %2373 = vmatprep.subr.mxu0 0.0
        %2374 = vmatpush1.msra.mxu0 0.0
        %2375 = vmatprep.subr.mxu0 0.0
        %2376 = vmatpush1.msra.mxu0 0.0
        %2377 = vmatprep.subr.mxu0 0.0
        %2378 = vmatpush1.msra.mxu0 0.0
        %2379 = vmatprep.subr.mxu0 0.0
        %2380 = vmatpush1.msra.mxu0 0.0
        %2381 = vmatprep.subr.mxu0 0.0
        %2382 = vmatpush1.msra.mxu0 0.0
        %2383 = vmatprep.subr.mxu0 0.0
        %2384 = vmatpush1.msra.mxu0 0.0
        %2385 = vmatprep.mubr.f32.mxu0 0.0
        %2386 = vmatmul.mubr.f32.gmra.mrb[0].mxu0 %v2221
        %v2387 = vpop.f32.mrb[0].mxu0
        %v2388 = vadd.f32 %v2202, %v2387
        %v2389 = vpop.f32.mrb[0].mxu0
        %v2390 = vadd.f32 %v2202, %v2389
        %2391 = vmatprep.mubr.f32.mxu0 0.0
        %2392 = vmatmul.mubr.f32.gmra.mrb[0].mxu0 %v2224
        %v2393 = vpop.f32.mrb[0].mxu0
        %v2394 = vadd.f32 %v2207, %v2393
        %v2395 = vpop.f32.mrb[0].mxu0
        %v2396 = vadd.f32 %v2207, %v2395
        %2397 = vmatprep.mubr.f32.mxu0 0.0
        %2398 = vmatmul.mubr.f32.gmra.mrb[0].mxu0 %v2227
        %v2399 = vpop.f32.mrb[0].mxu0
        %v2400 = vadd.f32 %v2212, %v2399
        %v2401 = vpop.f32.mrb[0].mxu0
        %v2402 = vadd.f32 %v2212, %v2401
        %2403 = vmatprep.mubr.f32.mxu0 0.0
        %2404 = vmatmul.mubr.f32.gmra.mrb[0].mxu0 %v2230
        %v2405 = vpop.f32.mrb[0].mxu0
        %v2406 = vadd.f32 %v2217, %v2405
        %v2407 = vpop.f32.mrb[0].mxu0
        %v2408 = vadd.f32 %v2217, %v2407
        %2409 = vdwg.mxu0
        %v2410 = vand.u32 2147483647, %v2299
        %vm2411 = vcmp.le.f32.partialorder %v2410, 0.7853982
        %vm2412 = vcmp.lt.s32.totalorder %v2299, 0
        %v2413 = vand.u32 %v2299, 2139095040
        %v2414 = vshrl.u32 %v2413, 23
        %v2415 = vsub.s32 %v2414, 127
        %v2416 = vand.u32 2147483647, %v2299
        %v2417 = vand.u32 %v2416, 8388607
        %v2418 = vor.u32 %v2417, 8388608
        %v2419 = vsub.s32 0, %v2418
        %v2420 = vadd.s32 %v2415, 1
        %vm2421 = vcmp.gt.s32.totalorder %v2420, 0
        %v2422 = vsel %vm2421, %v2420, 0
        %v2423 = vshrl.u32 %v2422, 5
        %v2424 = vand.u32 %v2422, 31
        %v2425 = vsub.s32 32, %v2424
        %v2426 = vshrl.u32 683565275, %v2425
        %v2427 = vshll.u32 683565275, %v2424
        %v2428 = vshrl.u32 2475754826, %v2425
        %v2429 = vor.u32 %v2427, %v2428
        %v2430 = vshll.u32 2475754826, %v2424
        %v2431 = vshrl.u32 2131351028, %v2425
        %v2432 = vor.u32 %v2430, %v2431
        %v2433 = vshll.u32 2131351028, %v2424
        %v2434 = vshrl.u32 2102212464, %v2425
        %v2435 = vor.u32 %v2433, %v2434
        %v2436 = vshll.u32 2102212464, %v2424
        %v2437 = vshrl.u32 920167782, %v2425
        %v2438 = vor.u32 %v2436, %v2437
        %v2439 = vshll.u32 920167782, %v2424
        %v2440 = vshrl.u32 1326507024, %v2425
        %v2441 = vor.u32 %v2439, %v2440
        %vm2442 = vcmp.lt.s32.totalorder %v2423, 1
        %vm2443 = vcmp.lt.s32.totalorder %v2423, 2
        %vm2444 = vcmp.lt.s32.totalorder %v2423, 3
        %vm2445 = vcmp.lt.s32.totalorder %v2423, 4
        %v2446 = vsel %vm2442, %v2426, %v2429
        %v2447 = vsel %vm2445, %v2435, 2102212464
        %v2448 = vsel %vm2444, %v2432, %v2447
        %v2449 = vsel %vm2443, %v2446, %v2448
        %v2450 = vsel %vm2442, %v2429, %v2432
        %v2451 = vsel %vm2445, %v2438, 920167782
        %v2452 = vsel %vm2444, %v2435, %v2451
        %v2453 = vsel %vm2443, %v2450, %v2452
        %v2454 = vsel %vm2442, %v2432, %v2435
        %v2455 = vsel %vm2445, %v2441, 1326507024
        %v2456 = vsel %vm2444, %v2438, %v2455
        %v2457 = vsel %vm2443, %v2454, %v2456
        %v2458 = vshll.u32 %v2418, 8
        %v2459 = vmul.u32.u64.compose %v2458, %v2457
        %v2460 = vextract.low.u32 %v2459
        %v2461 = vextract.high.u32 %v2459
        %v2462 = vmul.u32.u64.compose %v2458, %v2453
        %v2463 = vextract.low.u32 %v2462
        %v2464 = vextract.high.u32 %v2462
        %v2465 = vmul.u32 %v2458, %v2449
        %v2466 = vadd.s32 %v2461, %v2463
        %vm2467 = vc.u32 %v2461, %v2463
        %v2468 = vadd.s32 %v2464, 1
        %v2469 = vsel %vm2467, %v2468, %v2464
        %v2470 = vadd.s32 %v2465, %v2469
        %v2471 = vadd.s32 %v2470, 536870912
        %v2472 = vshrl.u32 %v2471, 30
        %v2473 = vshll.u32 %v2472, 30
        %v2474 = vsub.s32 %v2470, %v2473
        %vm2475 = vcmp.lt.s32.totalorder %v2474, 0
        %v2476 = vsub.s32 0, %v2474
        %v2477 = vsel %vm2475, %v2476, %v2474
        %v2478 = vclz %v2477
        %v2479 = vsub.s32 %v2478, 2
        %vm2480 = vcmp.gt.s32.totalorder 0, %v2479
        %v2481 = vsel %vm2480, 0, %v2479
        %v2482 = vsub.s32 32, %v2481
        %v2483 = vshll.u32 %v2474, %v2481
        %v2484 = vshrl.u32 %v2466, %v2482
        %v2485 = vor.u32 %v2483, %v2484
        %v2486 = vsub.s32 4294967266, %v2481
        %v2487 = vadd.s32 %v2486, 127
        %v2488 = vshll.u32 %v2487, 23
        %v2489 = vor.u32 4788187, %v2488
        %v2490 = vand.u32 2147483647, %v2489
        %v2492 = vcvt.s32.f32 %v2485
        %v2493 = vmul.f32 %v2492, %v2490
        %v2494 = vxor.u32 %v2493, 2147483648
        %v2495 = vsel %vm2412, %v2494, %v2493
        %v2496 = vsub.s32 4, %v2472
        %v2497 = vsel %vm2412, %v2496, %v2472
        %v2498 = vsel %vm2411, %v2299, %v2495
        %v2499 = vsel %vm2411, 0, %v2497
        %v2500 = vcosq.f32.pop %v2498
        %v2501 = vsinq.f32.pop %v2498
        %vm2502 = vweird.f32 %v2299
        %v2503 = vadd.s32 %v2499, 3
        %v2504 = vand.u32 %v2503, 3
        %vm2505 = vcmp.lt.s32.totalorder %v2504, 2
        %vm2506 = vcmp.eq.s32.totalorder %v2504, 0
        %v2507 = vxor.u32 %v2501, 2147483648
        %v2508 = vsel %vm2506, %v2500, %v2507
        %vm2509 = vcmp.eq.s32.totalorder %v2504, 2
        %v2510 = vxor.u32 %v2500, 2147483648
        %v2511 = vsel %vm2509, %v2510, %v2501
        %v2512 = vsel %vm2505, %v2508, %v2511
        %v2513 = vsel %vm2502, nan, %v2512
        %v2514 = vand.u32 2147483647, %v2301
        %vm2515 = vcmp.le.f32.partialorder %v2514, 0.7853982
        %vm2516 = vcmp.lt.s32.totalorder %v2301, 0
        %v2517 = vand.u32 %v2301, 2139095040
        %v2518 = vshrl.u32 %v2517, 23
        %v2519 = vsub.s32 %v2518, 127
        %v2520 = vand.u32 2147483647, %v2301
        %v2521 = vand.u32 %v2520, 8388607
        %v2522 = vor.u32 %v2521, 8388608
        %v2523 = vsub.s32 0, %v2522
        %v2524 = vadd.s32 %v2519, 1
        %vm2525 = vcmp.gt.s32.totalorder %v2524, 0
        %v2526 = vsel %vm2525, %v2524, 0
        %v2527 = vshrl.u32 %v2526, 5
        %v2528 = vand.u32 %v2526, 31
        %v2529 = vsub.s32 32, %v2528
        %v2530 = vshrl.u32 683565275, %v2529
        %v2531 = vshll.u32 683565275, %v2528
        %v2532 = vshrl.u32 2475754826, %v2529
        %v2533 = vor.u32 %v2531, %v2532
        %v2534 = vshll.u32 2475754826, %v2528
        %v2535 = vshrl.u32 2131351028, %v2529
        %v2536 = vor.u32 %v2534, %v2535
        %v2537 = vshll.u32 2131351028, %v2528
        %v2538 = vshrl.u32 2102212464, %v2529
        %v2539 = vor.u32 %v2537, %v2538
        %v2540 = vshll.u32 2102212464, %v2528
        %v2541 = vshrl.u32 920167782, %v2529
        %v2542 = vor.u32 %v2540, %v2541
        %v2543 = vshll.u32 920167782, %v2528
        %v2544 = vshrl.u32 1326507024, %v2529
        %v2545 = vor.u32 %v2543, %v2544
        %vm2546 = vcmp.lt.s32.totalorder %v2527, 1
        %vm2547 = vcmp.lt.s32.totalorder %v2527, 2
        %vm2548 = vcmp.lt.s32.totalorder %v2527, 3
        %vm2549 = vcmp.lt.s32.totalorder %v2527, 4
        %v2550 = vsel %vm2546, %v2530, %v2533
        %v2551 = vsel %vm2549, %v2539, 2102212464
        %v2552 = vsel %vm2548, %v2536, %v2551
        %v2553 = vsel %vm2547, %v2550, %v2552
        %v2554 = vsel %vm2546, %v2533, %v2536
        %v2555 = vsel %vm2549, %v2542, 920167782
        %v2556 = vsel %vm2548, %v2539, %v2555
        %v2557 = vsel %vm2547, %v2554, %v2556
        %v2558 = vsel %vm2546, %v2536, %v2539
        %v2559 = vsel %vm2549, %v2545, 1326507024
        %v2560 = vsel %vm2548, %v2542, %v2559
        %v2561 = vsel %vm2547, %v2558, %v2560
        %v2562 = vshll.u32 %v2522, 8
        %v2563 = vmul.u32.u64.compose %v2562, %v2561
        %v2564 = vextract.low.u32 %v2563
        %v2565 = vextract.high.u32 %v2563
        %v2566 = vmul.u32.u64.compose %v2562, %v2557
        %v2567 = vextract.low.u32 %v2566
        %v2568 = vextract.high.u32 %v2566
        %v2569 = vmul.u32 %v2562, %v2553
        %v2570 = vadd.s32 %v2565, %v2567
        %vm2571 = vc.u32 %v2565, %v2567
        %v2572 = vadd.s32 %v2568, 1
        %v2573 = vsel %vm2571, %v2572, %v2568
        %v2574 = vadd.s32 %v2569, %v2573
        %v2575 = vadd.s32 %v2574, 536870912
        %v2576 = vshrl.u32 %v2575, 30
        %v2577 = vshll.u32 %v2576, 30
        %v2578 = vsub.s32 %v2574, %v2577
        %vm2579 = vcmp.lt.s32.totalorder %v2578, 0
        %v2580 = vsub.s32 0, %v2578
        %v2581 = vsel %vm2579, %v2580, %v2578
        %v2582 = vclz %v2581
        %v2583 = vsub.s32 %v2582, 2
        %vm2584 = vcmp.gt.s32.totalorder 0, %v2583
        %v2585 = vsel %vm2584, 0, %v2583
        %v2586 = vsub.s32 32, %v2585
        %v2587 = vshll.u32 %v2578, %v2585
        %v2588 = vshrl.u32 %v2570, %v2586
        %v2589 = vor.u32 %v2587, %v2588
        %v2590 = vsub.s32 4294967266, %v2585
        %v2591 = vadd.s32 %v2590, 127
        %v2592 = vshll.u32 %v2591, 23
        %v2593 = vor.u32 4788187, %v2592
        %v2594 = vand.u32 2147483647, %v2593
        %v2596 = vcvt.s32.f32 %v2589
        %v2597 = vmul.f32 %v2596, %v2594
        %v2598 = vxor.u32 %v2597, 2147483648
        %v2599 = vsel %vm2516, %v2598, %v2597
        %v2600 = vsub.s32 4, %v2576
        %v2601 = vsel %vm2516, %v2600, %v2576
        %v2602 = vsel %vm2515, %v2301, %v2599
        %v2603 = vsel %vm2515, 0, %v2601
        %v2604 = vcosq.f32.pop %v2602
        %v2605 = vsinq.f32.pop %v2602
        %vm2606 = vweird.f32 %v2301
        %v2607 = vadd.s32 %v2603, 3
        %v2608 = vand.u32 %v2607, 3
        %vm2609 = vcmp.lt.s32.totalorder %v2608, 2
        %vm2610 = vcmp.eq.s32.totalorder %v2608, 0
        %v2611 = vxor.u32 %v2605, 2147483648
        %v2612 = vsel %vm2610, %v2604, %v2611
        %vm2613 = vcmp.eq.s32.totalorder %v2608, 2
        %v2614 = vxor.u32 %v2604, 2147483648
        %v2615 = vsel %vm2613, %v2614, %v2605
        %v2616 = vsel %vm2609, %v2612, %v2615
        %v2617 = vsel %vm2606, nan, %v2616
        %v2618 = vand.u32 2147483647, %v2388
        %vm2619 = vcmp.le.f32.partialorder %v2618, 0.7853982
        %vm2620 = vcmp.lt.s32.totalorder %v2388, 0
        %v2621 = vand.u32 %v2388, 2139095040
        %v2622 = vshrl.u32 %v2621, 23
        %v2623 = vsub.s32 %v2622, 127
        %v2624 = vand.u32 2147483647, %v2388
        %v2625 = vand.u32 %v2624, 8388607
        %v2626 = vor.u32 %v2625, 8388608
        %v2627 = vsub.s32 0, %v2626
        %v2628 = vadd.s32 %v2623, 1
        %vm2629 = vcmp.gt.s32.totalorder %v2628, 0
        %v2630 = vsel %vm2629, %v2628, 0
        %v2631 = vshrl.u32 %v2630, 5
        %v2632 = vand.u32 %v2630, 31
        %v2633 = vsub.s32 32, %v2632
        %v2634 = vshrl.u32 683565275, %v2633
        %v2635 = vshll.u32 683565275, %v2632
        %v2636 = vshrl.u32 2475754826, %v2633
        %v2637 = vor.u32 %v2635, %v2636
        %v2638 = vshll.u32 2475754826, %v2632
        %v2639 = vshrl.u32 2131351028, %v2633
        %v2640 = vor.u32 %v2638, %v2639
        %v2641 = vshll.u32 2131351028, %v2632
        %v2642 = vshrl.u32 2102212464, %v2633
        %v2643 = vor.u32 %v2641, %v2642
        %v2644 = vshll.u32 2102212464, %v2632
        %v2645 = vshrl.u32 920167782, %v2633
        %v2646 = vor.u32 %v2644, %v2645
        %v2647 = vshll.u32 920167782, %v2632
        %v2648 = vshrl.u32 1326507024, %v2633
        %v2649 = vor.u32 %v2647, %v2648
        %vm2650 = vcmp.lt.s32.totalorder %v2631, 1
        %vm2651 = vcmp.lt.s32.totalorder %v2631, 2
        %vm2652 = vcmp.lt.s32.totalorder %v2631, 3
        %vm2653 = vcmp.lt.s32.totalorder %v2631, 4
        %v2654 = vsel %vm2650, %v2634, %v2637
        %v2655 = vsel %vm2653, %v2643, 2102212464
        %v2656 = vsel %vm2652, %v2640, %v2655
        %v2657 = vsel %vm2651, %v2654, %v2656
        %v2658 = vsel %vm2650, %v2637, %v2640
        %v2659 = vsel %vm2653, %v2646, 920167782
        %v2660 = vsel %vm2652, %v2643, %v2659
        %v2661 = vsel %vm2651, %v2658, %v2660
        %v2662 = vsel %vm2650, %v2640, %v2643
        %v2663 = vsel %vm2653, %v2649, 1326507024
        %v2664 = vsel %vm2652, %v2646, %v2663
        %v2665 = vsel %vm2651, %v2662, %v2664
        %v2666 = vshll.u32 %v2626, 8
        %v2667 = vmul.u32.u64.compose %v2666, %v2665
        %v2668 = vextract.low.u32 %v2667
        %v2669 = vextract.high.u32 %v2667
        %v2670 = vmul.u32.u64.compose %v2666, %v2661
        %v2671 = vextract.low.u32 %v2670
        %v2672 = vextract.high.u32 %v2670
        %v2673 = vmul.u32 %v2666, %v2657
        %v2674 = vadd.s32 %v2669, %v2671
        %vm2675 = vc.u32 %v2669, %v2671
        %v2676 = vadd.s32 %v2672, 1
        %v2677 = vsel %vm2675, %v2676, %v2672
        %v2678 = vadd.s32 %v2673, %v2677
        %v2679 = vadd.s32 %v2678, 536870912
        %v2680 = vshrl.u32 %v2679, 30
        %v2681 = vshll.u32 %v2680, 30
        %v2682 = vsub.s32 %v2678, %v2681
        %vm2683 = vcmp.lt.s32.totalorder %v2682, 0
        %v2684 = vsub.s32 0, %v2682
        %v2685 = vsel %vm2683, %v2684, %v2682
        %v2686 = vclz %v2685
        %v2687 = vsub.s32 %v2686, 2
        %vm2688 = vcmp.gt.s32.totalorder 0, %v2687
        %v2689 = vsel %vm2688, 0, %v2687
        %v2690 = vsub.s32 32, %v2689
        %v2691 = vshll.u32 %v2682, %v2689
        %v2692 = vshrl.u32 %v2674, %v2690
        %v2693 = vor.u32 %v2691, %v2692
        %v2694 = vsub.s32 4294967266, %v2689
        %v2695 = vadd.s32 %v2694, 127
        %v2696 = vshll.u32 %v2695, 23
        %v2697 = vor.u32 4788187, %v2696
        %v2698 = vand.u32 2147483647, %v2697
        %v2700 = vcvt.s32.f32 %v2693
        %v2701 = vmul.f32 %v2700, %v2698
        %v2702 = vxor.u32 %v2701, 2147483648
        %v2703 = vsel %vm2620, %v2702, %v2701
        %v2704 = vsub.s32 4, %v2680
        %v2705 = vsel %vm2620, %v2704, %v2680
        %v2706 = vsel %vm2619, %v2388, %v2703
        %v2707 = vsel %vm2619, 0, %v2705
        %v2708 = vcosq.f32.pop %v2706
        %v2709 = vsinq.f32.pop %v2706
        %vm2710 = vweird.f32 %v2388
        %v2711 = vadd.s32 %v2707, 3
        %v2712 = vand.u32 %v2711, 3
        %vm2713 = vcmp.lt.s32.totalorder %v2712, 2
        %vm2714 = vcmp.eq.s32.totalorder %v2712, 0
        %v2715 = vxor.u32 %v2709, 2147483648
        %v2716 = vsel %vm2714, %v2708, %v2715
        %vm2717 = vcmp.eq.s32.totalorder %v2712, 2
        %v2718 = vxor.u32 %v2708, 2147483648
        %v2719 = vsel %vm2717, %v2718, %v2709
        %v2720 = vsel %vm2713, %v2716, %v2719
        %v2721 = vsel %vm2710, nan, %v2720
        %v2722 = vand.u32 2147483647, %v2390
        %vm2723 = vcmp.le.f32.partialorder %v2722, 0.7853982
        %vm2724 = vcmp.lt.s32.totalorder %v2390, 0
        %v2725 = vand.u32 %v2390, 2139095040
        %v2726 = vshrl.u32 %v2725, 23
        %v2727 = vsub.s32 %v2726, 127
        %v2728 = vand.u32 2147483647, %v2390
        %v2729 = vand.u32 %v2728, 8388607
        %v2730 = vor.u32 %v2729, 8388608
        %v2731 = vsub.s32 0, %v2730
        %v2732 = vadd.s32 %v2727, 1
        %vm2733 = vcmp.gt.s32.totalorder %v2732, 0
        %v2734 = vsel %vm2733, %v2732, 0
        %v2735 = vshrl.u32 %v2734, 5
        %v2736 = vand.u32 %v2734, 31
        %v2737 = vsub.s32 32, %v2736
        %v2738 = vshrl.u32 683565275, %v2737
        %v2739 = vshll.u32 683565275, %v2736
        %v2740 = vshrl.u32 2475754826, %v2737
        %v2741 = vor.u32 %v2739, %v2740
        %v2742 = vshll.u32 2475754826, %v2736
        %v2743 = vshrl.u32 2131351028, %v2737
        %v2744 = vor.u32 %v2742, %v2743
        %v2745 = vshll.u32 2131351028, %v2736
        %v2746 = vshrl.u32 2102212464, %v2737
        %v2747 = vor.u32 %v2745, %v2746
        %v2748 = vshll.u32 2102212464, %v2736
        %v2749 = vshrl.u32 920167782, %v2737
        %v2750 = vor.u32 %v2748, %v2749
        %v2751 = vshll.u32 920167782, %v2736
        %v2752 = vshrl.u32 1326507024, %v2737
        %v2753 = vor.u32 %v2751, %v2752
        %vm2754 = vcmp.lt.s32.totalorder %v2735, 1
        %vm2755 = vcmp.lt.s32.totalorder %v2735, 2
        %vm2756 = vcmp.lt.s32.totalorder %v2735, 3
        %vm2757 = vcmp.lt.s32.totalorder %v2735, 4
        %v2758 = vsel %vm2754, %v2738, %v2741
        %v2759 = vsel %vm2757, %v2747, 2102212464
        %v2760 = vsel %vm2756, %v2744, %v2759
        %v2761 = vsel %vm2755, %v2758, %v2760
        %v2762 = vsel %vm2754, %v2741, %v2744
        %v2763 = vsel %vm2757, %v2750, 920167782
        %v2764 = vsel %vm2756, %v2747, %v2763
        %v2765 = vsel %vm2755, %v2762, %v2764
        %v2766 = vsel %vm2754, %v2744, %v2747
        %v2767 = vsel %vm2757, %v2753, 1326507024
        %v2768 = vsel %vm2756, %v2750, %v2767
        %v2769 = vsel %vm2755, %v2766, %v2768
        %v2770 = vshll.u32 %v2730, 8
        %v2771 = vmul.u32.u64.compose %v2770, %v2769
        %v2772 = vextract.low.u32 %v2771
        %v2773 = vextract.high.u32 %v2771
        %v2774 = vmul.u32.u64.compose %v2770, %v2765
        %v2775 = vextract.low.u32 %v2774
        %v2776 = vextract.high.u32 %v2774
        %v2777 = vmul.u32 %v2770, %v2761
        %v2778 = vadd.s32 %v2773, %v2775
        %vm2779 = vc.u32 %v2773, %v2775
        %v2780 = vadd.s32 %v2776, 1
        %v2781 = vsel %vm2779, %v2780, %v2776
        %v2782 = vadd.s32 %v2777, %v2781
        %v2783 = vadd.s32 %v2782, 536870912
        %v2784 = vshrl.u32 %v2783, 30
        %v2785 = vshll.u32 %v2784, 30
        %v2786 = vsub.s32 %v2782, %v2785
        %vm2787 = vcmp.lt.s32.totalorder %v2786, 0
        %v2788 = vsub.s32 0, %v2786
        %v2789 = vsel %vm2787, %v2788, %v2786
        %v2790 = vclz %v2789
        %v2791 = vsub.s32 %v2790, 2
        %vm2792 = vcmp.gt.s32.totalorder 0, %v2791
        %v2793 = vsel %vm2792, 0, %v2791
        %v2794 = vsub.s32 32, %v2793
        %v2795 = vshll.u32 %v2786, %v2793
        %v2796 = vshrl.u32 %v2778, %v2794
        %v2797 = vor.u32 %v2795, %v2796
        %v2798 = vsub.s32 4294967266, %v2793
        %v2799 = vadd.s32 %v2798, 127
        %v2800 = vshll.u32 %v2799, 23
        %v2801 = vor.u32 4788187, %v2800
        %v2802 = vand.u32 2147483647, %v2801
        %v2804 = vcvt.s32.f32 %v2797
        %v2805 = vmul.f32 %v2804, %v2802
        %v2806 = vxor.u32 %v2805, 2147483648
        %v2807 = vsel %vm2724, %v2806, %v2805
        %v2808 = vsub.s32 4, %v2784
        %v2809 = vsel %vm2724, %v2808, %v2784
        %v2810 = vsel %vm2723, %v2390, %v2807
        %v2811 = vsel %vm2723, 0, %v2809
        %v2812 = vcosq.f32.pop %v2810
        %v2813 = vsinq.f32.pop %v2810
        %vm2814 = vweird.f32 %v2390
        %v2815 = vadd.s32 %v2811, 3
        %v2816 = vand.u32 %v2815, 3
        %vm2817 = vcmp.lt.s32.totalorder %v2816, 2
        %vm2818 = vcmp.eq.s32.totalorder %v2816, 0
        %v2819 = vxor.u32 %v2813, 2147483648
        %v2820 = vsel %vm2818, %v2812, %v2819
        %vm2821 = vcmp.eq.s32.totalorder %v2816, 2
        %v2822 = vxor.u32 %v2812, 2147483648
        %v2823 = vsel %vm2821, %v2822, %v2813
        %v2824 = vsel %vm2817, %v2820, %v2823
        %v2825 = vsel %vm2814, nan, %v2824
        %v2826 = vand.u32 2147483647, %v2305
        %vm2827 = vcmp.le.f32.partialorder %v2826, 0.7853982
        %vm2828 = vcmp.lt.s32.totalorder %v2305, 0
        %v2829 = vand.u32 %v2305, 2139095040
        %v2830 = vshrl.u32 %v2829, 23
        %v2831 = vsub.s32 %v2830, 127
        %v2832 = vand.u32 2147483647, %v2305
        %v2833 = vand.u32 %v2832, 8388607
        %v2834 = vor.u32 %v2833, 8388608
        %v2835 = vsub.s32 0, %v2834
        %v2836 = vadd.s32 %v2831, 1
        %vm2837 = vcmp.gt.s32.totalorder %v2836, 0
        %v2838 = vsel %vm2837, %v2836, 0
        %v2839 = vshrl.u32 %v2838, 5
        %v2840 = vand.u32 %v2838, 31
        %v2841 = vsub.s32 32, %v2840
        %v2842 = vshrl.u32 683565275, %v2841
        %v2843 = vshll.u32 683565275, %v2840
        %v2844 = vshrl.u32 2475754826, %v2841
        %v2845 = vor.u32 %v2843, %v2844
        %v2846 = vshll.u32 2475754826, %v2840
        %v2847 = vshrl.u32 2131351028, %v2841
        %v2848 = vor.u32 %v2846, %v2847
        %v2849 = vshll.u32 2131351028, %v2840
        %v2850 = vshrl.u32 2102212464, %v2841
        %v2851 = vor.u32 %v2849, %v2850
        %v2852 = vshll.u32 2102212464, %v2840
        %v2853 = vshrl.u32 920167782, %v2841
        %v2854 = vor.u32 %v2852, %v2853
        %v2855 = vshll.u32 920167782, %v2840
        %v2856 = vshrl.u32 1326507024, %v2841
        %v2857 = vor.u32 %v2855, %v2856
        %vm2858 = vcmp.lt.s32.totalorder %v2839, 1
        %vm2859 = vcmp.lt.s32.totalorder %v2839, 2
        %vm2860 = vcmp.lt.s32.totalorder %v2839, 3
        %vm2861 = vcmp.lt.s32.totalorder %v2839, 4
        %v2862 = vsel %vm2858, %v2842, %v2845
        %v2863 = vsel %vm2861, %v2851, 2102212464
        %v2864 = vsel %vm2860, %v2848, %v2863
        %v2865 = vsel %vm2859, %v2862, %v2864
        %v2866 = vsel %vm2858, %v2845, %v2848
        %v2867 = vsel %vm2861, %v2854, 920167782
        %v2868 = vsel %vm2860, %v2851, %v2867
        %v2869 = vsel %vm2859, %v2866, %v2868
        %v2870 = vsel %vm2858, %v2848, %v2851
        %v2871 = vsel %vm2861, %v2857, 1326507024
        %v2872 = vsel %vm2860, %v2854, %v2871
        %v2873 = vsel %vm2859, %v2870, %v2872
        %v2874 = vshll.u32 %v2834, 8
        %v2875 = vmul.u32.u64.compose %v2874, %v2873
        %v2876 = vextract.low.u32 %v2875
        %v2877 = vextract.high.u32 %v2875
        %v2878 = vmul.u32.u64.compose %v2874, %v2869
        %v2879 = vextract.low.u32 %v2878
        %v2880 = vextract.high.u32 %v2878
        %v2881 = vmul.u32 %v2874, %v2865
        %v2882 = vadd.s32 %v2877, %v2879
        %vm2883 = vc.u32 %v2877, %v2879
        %v2884 = vadd.s32 %v2880, 1
        %v2885 = vsel %vm2883, %v2884, %v2880
        %v2886 = vadd.s32 %v2881, %v2885
        %v2887 = vadd.s32 %v2886, 536870912
        %v2888 = vshrl.u32 %v2887, 30
        %v2889 = vshll.u32 %v2888, 30
        %v2890 = vsub.s32 %v2886, %v2889
        %vm2891 = vcmp.lt.s32.totalorder %v2890, 0
        %v2892 = vsub.s32 0, %v2890
        %v2893 = vsel %vm2891, %v2892, %v2890
        %v2894 = vclz %v2893
        %v2895 = vsub.s32 %v2894, 2
        %vm2896 = vcmp.gt.s32.totalorder 0, %v2895
        %v2897 = vsel %vm2896, 0, %v2895
        %v2898 = vsub.s32 32, %v2897
        %v2899 = vshll.u32 %v2890, %v2897
        %v2900 = vshrl.u32 %v2882, %v2898
        %v2901 = vor.u32 %v2899, %v2900
        %v2902 = vsub.s32 4294967266, %v2897
        %v2903 = vadd.s32 %v2902, 127
        %v2904 = vshll.u32 %v2903, 23
        %v2905 = vor.u32 4788187, %v2904
        %v2906 = vand.u32 2147483647, %v2905
        %v2908 = vcvt.s32.f32 %v2901
        %v2909 = vmul.f32 %v2908, %v2906
        %v2910 = vxor.u32 %v2909, 2147483648
        %v2911 = vsel %vm2828, %v2910, %v2909
        %v2912 = vsub.s32 4, %v2888
        %v2913 = vsel %vm2828, %v2912, %v2888
        %v2914 = vsel %vm2827, %v2305, %v2911
        %v2915 = vsel %vm2827, 0, %v2913
        %v2916 = vcosq.f32.pop %v2914
        %v2917 = vsinq.f32.pop %v2914
        %vm2918 = vweird.f32 %v2305
        %v2919 = vadd.s32 %v2915, 3
        %v2920 = vand.u32 %v2919, 3
        %vm2921 = vcmp.lt.s32.totalorder %v2920, 2
        %vm2922 = vcmp.eq.s32.totalorder %v2920, 0
        %v2923 = vxor.u32 %v2917, 2147483648
        %v2924 = vsel %vm2922, %v2916, %v2923
        %vm2925 = vcmp.eq.s32.totalorder %v2920, 2
        %v2926 = vxor.u32 %v2916, 2147483648
        %v2927 = vsel %vm2925, %v2926, %v2917
        %v2928 = vsel %vm2921, %v2924, %v2927
        %v2929 = vsel %vm2918, nan, %v2928
        %v2930 = vand.u32 2147483647, %v2307
        %vm2931 = vcmp.le.f32.partialorder %v2930, 0.7853982
        %vm2932 = vcmp.lt.s32.totalorder %v2307, 0
        %v2933 = vand.u32 %v2307, 2139095040
        %v2934 = vshrl.u32 %v2933, 23
        %v2935 = vsub.s32 %v2934, 127
        %v2936 = vand.u32 2147483647, %v2307
        %v2937 = vand.u32 %v2936, 8388607
        %v2938 = vor.u32 %v2937, 8388608
        %v2939 = vsub.s32 0, %v2938
        %v2940 = vadd.s32 %v2935, 1
        %vm2941 = vcmp.gt.s32.totalorder %v2940, 0
        %v2942 = vsel %vm2941, %v2940, 0
        %v2943 = vshrl.u32 %v2942, 5
        %v2944 = vand.u32 %v2942, 31
        %v2945 = vsub.s32 32, %v2944
        %v2946 = vshrl.u32 683565275, %v2945
        %v2947 = vshll.u32 683565275, %v2944
        %v2948 = vshrl.u32 2475754826, %v2945
        %v2949 = vor.u32 %v2947, %v2948
        %v2950 = vshll.u32 2475754826, %v2944
        %v2951 = vshrl.u32 2131351028, %v2945
        %v2952 = vor.u32 %v2950, %v2951
        %v2953 = vshll.u32 2131351028, %v2944
        %v2954 = vshrl.u32 2102212464, %v2945
        %v2955 = vor.u32 %v2953, %v2954
        %v2956 = vshll.u32 2102212464, %v2944
        %v2957 = vshrl.u32 920167782, %v2945
        %v2958 = vor.u32 %v2956, %v2957
        %v2959 = vshll.u32 920167782, %v2944
        %v2960 = vshrl.u32 1326507024, %v2945
        %v2961 = vor.u32 %v2959, %v2960
        %vm2962 = vcmp.lt.s32.totalorder %v2943, 1
        %vm2963 = vcmp.lt.s32.totalorder %v2943, 2
        %vm2964 = vcmp.lt.s32.totalorder %v2943, 3
        %vm2965 = vcmp.lt.s32.totalorder %v2943, 4
        %v2966 = vsel %vm2962, %v2946, %v2949
        %v2967 = vsel %vm2965, %v2955, 2102212464
        %v2968 = vsel %vm2964, %v2952, %v2967
        %v2969 = vsel %vm2963, %v2966, %v2968
        %v2970 = vsel %vm2962, %v2949, %v2952
        %v2971 = vsel %vm2965, %v2958, 920167782
        %v2972 = vsel %vm2964, %v2955, %v2971
        %v2973 = vsel %vm2963, %v2970, %v2972
        %v2974 = vsel %vm2962, %v2952, %v2955
        %v2975 = vsel %vm2965, %v2961, 1326507024
        %v2976 = vsel %vm2964, %v2958, %v2975
        %v2977 = vsel %vm2963, %v2974, %v2976
        %v2978 = vshll.u32 %v2938, 8
        %v2979 = vmul.u32.u64.compose %v2978, %v2977
        %v2980 = vextract.low.u32 %v2979
        %v2981 = vextract.high.u32 %v2979
        %v2982 = vmul.u32.u64.compose %v2978, %v2973
        %v2983 = vextract.low.u32 %v2982
        %v2984 = vextract.high.u32 %v2982
        %v2985 = vmul.u32 %v2978, %v2969
        %v2986 = vadd.s32 %v2981, %v2983
        %vm2987 = vc.u32 %v2981, %v2983
        %v2988 = vadd.s32 %v2984, 1
        %v2989 = vsel %vm2987, %v2988, %v2984
        %v2990 = vadd.s32 %v2985, %v2989
        %v2991 = vadd.s32 %v2990, 536870912
        %v2992 = vshrl.u32 %v2991, 30
        %v2993 = vshll.u32 %v2992, 30
        %v2994 = vsub.s32 %v2990, %v2993
        %vm2995 = vcmp.lt.s32.totalorder %v2994, 0
        %v2996 = vsub.s32 0, %v2994
        %v2997 = vsel %vm2995, %v2996, %v2994
        %v2998 = vclz %v2997
        %v2999 = vsub.s32 %v2998, 2
        %vm3000 = vcmp.gt.s32.totalorder 0, %v2999
        %v3001 = vsel %vm3000, 0, %v2999
        %v3002 = vsub.s32 32, %v3001
        %v3003 = vshll.u32 %v2994, %v3001
        %v3004 = vshrl.u32 %v2986, %v3002
        %v3005 = vor.u32 %v3003, %v3004
        %v3006 = vsub.s32 4294967266, %v3001
        %v3007 = vadd.s32 %v3006, 127
        %v3008 = vshll.u32 %v3007, 23
        %v3009 = vor.u32 4788187, %v3008
        %v3010 = vand.u32 2147483647, %v3009
        %v3012 = vcvt.s32.f32 %v3005
        %v3013 = vmul.f32 %v3012, %v3010
        %v3014 = vxor.u32 %v3013, 2147483648
        %v3015 = vsel %vm2932, %v3014, %v3013
        %v3016 = vsub.s32 4, %v2992
        %v3017 = vsel %vm2932, %v3016, %v2992
        %v3018 = vsel %vm2931, %v2307, %v3015
        %v3019 = vsel %vm2931, 0, %v3017
        %v3020 = vcosq.f32.pop %v3018
        %v3021 = vsinq.f32.pop %v3018
        %vm3022 = vweird.f32 %v2307
        %v3023 = vadd.s32 %v3019, 3
        %v3024 = vand.u32 %v3023, 3
        %vm3025 = vcmp.lt.s32.totalorder %v3024, 2
        %vm3026 = vcmp.eq.s32.totalorder %v3024, 0
        %v3027 = vxor.u32 %v3021, 2147483648
        %v3028 = vsel %vm3026, %v3020, %v3027
        %vm3029 = vcmp.eq.s32.totalorder %v3024, 2
        %v3030 = vxor.u32 %v3020, 2147483648
        %v3031 = vsel %vm3029, %v3030, %v3021
        %v3032 = vsel %vm3025, %v3028, %v3031
        %v3033 = vsel %vm3022, nan, %v3032
        %v3034 = vand.u32 2147483647, %v2394
        %vm3035 = vcmp.le.f32.partialorder %v3034, 0.7853982
        %vm3036 = vcmp.lt.s32.totalorder %v2394, 0
        %v3037 = vand.u32 %v2394, 2139095040
        %v3038 = vshrl.u32 %v3037, 23
        %v3039 = vsub.s32 %v3038, 127
        %v3040 = vand.u32 2147483647, %v2394
        %v3041 = vand.u32 %v3040, 8388607
        %v3042 = vor.u32 %v3041, 8388608
        %v3043 = vsub.s32 0, %v3042
        %v3044 = vadd.s32 %v3039, 1
        %vm3045 = vcmp.gt.s32.totalorder %v3044, 0
        %v3046 = vsel %vm3045, %v3044, 0
        %v3047 = vshrl.u32 %v3046, 5
        %v3048 = vand.u32 %v3046, 31
        %v3049 = vsub.s32 32, %v3048
        %v3050 = vshrl.u32 683565275, %v3049
        %v3051 = vshll.u32 683565275, %v3048
        %v3052 = vshrl.u32 2475754826, %v3049
        %v3053 = vor.u32 %v3051, %v3052
        %v3054 = vshll.u32 2475754826, %v3048
        %v3055 = vshrl.u32 2131351028, %v3049
        %v3056 = vor.u32 %v3054, %v3055
        %v3057 = vshll.u32 2131351028, %v3048
        %v3058 = vshrl.u32 2102212464, %v3049
        %v3059 = vor.u32 %v3057, %v3058
        %v3060 = vshll.u32 2102212464, %v3048
        %v3061 = vshrl.u32 920167782, %v3049
        %v3062 = vor.u32 %v3060, %v3061
        %v3063 = vshll.u32 920167782, %v3048
        %v3064 = vshrl.u32 1326507024, %v3049
        %v3065 = vor.u32 %v3063, %v3064
        %vm3066 = vcmp.lt.s32.totalorder %v3047, 1
        %vm3067 = vcmp.lt.s32.totalorder %v3047, 2
        %vm3068 = vcmp.lt.s32.totalorder %v3047, 3
        %vm3069 = vcmp.lt.s32.totalorder %v3047, 4
        %v3070 = vsel %vm3066, %v3050, %v3053
        %v3071 = vsel %vm3069, %v3059, 2102212464
        %v3072 = vsel %vm3068, %v3056, %v3071
        %v3073 = vsel %vm3067, %v3070, %v3072
        %v3074 = vsel %vm3066, %v3053, %v3056
        %v3075 = vsel %vm3069, %v3062, 920167782
        %v3076 = vsel %vm3068, %v3059, %v3075
        %v3077 = vsel %vm3067, %v3074, %v3076
        %v3078 = vsel %vm3066, %v3056, %v3059
        %v3079 = vsel %vm3069, %v3065, 1326507024
        %v3080 = vsel %vm3068, %v3062, %v3079
        %v3081 = vsel %vm3067, %v3078, %v3080
        %v3082 = vshll.u32 %v3042, 8
        %v3083 = vmul.u32.u64.compose %v3082, %v3081
        %v3084 = vextract.low.u32 %v3083
        %v3085 = vextract.high.u32 %v3083
        %v3086 = vmul.u32.u64.compose %v3082, %v3077
        %v3087 = vextract.low.u32 %v3086
        %v3088 = vextract.high.u32 %v3086
        %v3089 = vmul.u32 %v3082, %v3073
        %v3090 = vadd.s32 %v3085, %v3087
        %vm3091 = vc.u32 %v3085, %v3087
        %v3092 = vadd.s32 %v3088, 1
        %v3093 = vsel %vm3091, %v3092, %v3088
        %v3094 = vadd.s32 %v3089, %v3093
        %v3095 = vadd.s32 %v3094, 536870912
        %v3096 = vshrl.u32 %v3095, 30
        %v3097 = vshll.u32 %v3096, 30
        %v3098 = vsub.s32 %v3094, %v3097
        %vm3099 = vcmp.lt.s32.totalorder %v3098, 0
        %v3100 = vsub.s32 0, %v3098
        %v3101 = vsel %vm3099, %v3100, %v3098
        %v3102 = vclz %v3101
        %v3103 = vsub.s32 %v3102, 2
        %vm3104 = vcmp.gt.s32.totalorder 0, %v3103
        %v3105 = vsel %vm3104, 0, %v3103
        %v3106 = vsub.s32 32, %v3105
        %v3107 = vshll.u32 %v3098, %v3105
        %v3108 = vshrl.u32 %v3090, %v3106
        %v3109 = vor.u32 %v3107, %v3108
        %v3110 = vsub.s32 4294967266, %v3105
        %v3111 = vadd.s32 %v3110, 127
        %v3112 = vshll.u32 %v3111, 23
        %v3113 = vor.u32 4788187, %v3112
        %v3114 = vand.u32 2147483647, %v3113
        %v3116 = vcvt.s32.f32 %v3109
        %v3117 = vmul.f32 %v3116, %v3114
        %v3118 = vxor.u32 %v3117, 2147483648
        %v3119 = vsel %vm3036, %v3118, %v3117
        %v3120 = vsub.s32 4, %v3096
        %v3121 = vsel %vm3036, %v3120, %v3096
        %v3122 = vsel %vm3035, %v2394, %v3119
        %v3123 = vsel %vm3035, 0, %v3121
        %v3124 = vcosq.f32.pop %v3122
        %v3125 = vsinq.f32.pop %v3122
        %vm3126 = vweird.f32 %v2394
        %v3127 = vadd.s32 %v3123, 3
        %v3128 = vand.u32 %v3127, 3
        %vm3129 = vcmp.lt.s32.totalorder %v3128, 2
        %vm3130 = vcmp.eq.s32.totalorder %v3128, 0
        %v3131 = vxor.u32 %v3125, 2147483648
        %v3132 = vsel %vm3130, %v3124, %v3131
        %vm3133 = vcmp.eq.s32.totalorder %v3128, 2
        %v3134 = vxor.u32 %v3124, 2147483648
        %v3135 = vsel %vm3133, %v3134, %v3125
        %v3136 = vsel %vm3129, %v3132, %v3135
        %v3137 = vsel %vm3126, nan, %v3136
        %v3138 = vand.u32 2147483647, %v2396
        %vm3139 = vcmp.le.f32.partialorder %v3138, 0.7853982
        %vm3140 = vcmp.lt.s32.totalorder %v2396, 0
        %v3141 = vand.u32 %v2396, 2139095040
        %v3142 = vshrl.u32 %v3141, 23
        %v3143 = vsub.s32 %v3142, 127
        %v3144 = vand.u32 2147483647, %v2396
        %v3145 = vand.u32 %v3144, 8388607
        %v3146 = vor.u32 %v3145, 8388608
        %v3147 = vsub.s32 0, %v3146
        %v3148 = vadd.s32 %v3143, 1
        %vm3149 = vcmp.gt.s32.totalorder %v3148, 0
        %v3150 = vsel %vm3149, %v3148, 0
        %v3151 = vshrl.u32 %v3150, 5
        %v3152 = vand.u32 %v3150, 31
        %v3153 = vsub.s32 32, %v3152
        %v3154 = vshrl.u32 683565275, %v3153
        %v3155 = vshll.u32 683565275, %v3152
        %v3156 = vshrl.u32 2475754826, %v3153
        %v3157 = vor.u32 %v3155, %v3156
        %v3158 = vshll.u32 2475754826, %v3152
        %v3159 = vshrl.u32 2131351028, %v3153
        %v3160 = vor.u32 %v3158, %v3159
        %v3161 = vshll.u32 2131351028, %v3152
        %v3162 = vshrl.u32 2102212464, %v3153
        %v3163 = vor.u32 %v3161, %v3162
        %v3164 = vshll.u32 2102212464, %v3152
        %v3165 = vshrl.u32 920167782, %v3153
        %v3166 = vor.u32 %v3164, %v3165
        %v3167 = vshll.u32 920167782, %v3152
        %v3168 = vshrl.u32 1326507024, %v3153
        %v3169 = vor.u32 %v3167, %v3168
        %vm3170 = vcmp.lt.s32.totalorder %v3151, 1
        %vm3171 = vcmp.lt.s32.totalorder %v3151, 2
        %vm3172 = vcmp.lt.s32.totalorder %v3151, 3
        %vm3173 = vcmp.lt.s32.totalorder %v3151, 4
        %v3174 = vsel %vm3170, %v3154, %v3157
        %v3175 = vsel %vm3173, %v3163, 2102212464
        %v3176 = vsel %vm3172, %v3160, %v3175
        %v3177 = vsel %vm3171, %v3174, %v3176
        %v3178 = vsel %vm3170, %v3157, %v3160
        %v3179 = vsel %vm3173, %v3166, 920167782
        %v3180 = vsel %vm3172, %v3163, %v3179
        %v3181 = vsel %vm3171, %v3178, %v3180
        %v3182 = vsel %vm3170, %v3160, %v3163
        %v3183 = vsel %vm3173, %v3169, 1326507024
        %v3184 = vsel %vm3172, %v3166, %v3183
        %v3185 = vsel %vm3171, %v3182, %v3184
        %v3186 = vshll.u32 %v3146, 8
        %v3187 = vmul.u32.u64.compose %v3186, %v3185
        %v3188 = vextract.low.u32 %v3187
        %v3189 = vextract.high.u32 %v3187
        %v3190 = vmul.u32.u64.compose %v3186, %v3181
        %v3191 = vextract.low.u32 %v3190
        %v3192 = vextract.high.u32 %v3190
        %v3193 = vmul.u32 %v3186, %v3177
        %v3194 = vadd.s32 %v3189, %v3191
        %vm3195 = vc.u32 %v3189, %v3191
        %v3196 = vadd.s32 %v3192, 1
        %v3197 = vsel %vm3195, %v3196, %v3192
        %v3198 = vadd.s32 %v3193, %v3197
        %v3199 = vadd.s32 %v3198, 536870912
        %v3200 = vshrl.u32 %v3199, 30
        %v3201 = vshll.u32 %v3200, 30
        %v3202 = vsub.s32 %v3198, %v3201
        %vm3203 = vcmp.lt.s32.totalorder %v3202, 0
        %v3204 = vsub.s32 0, %v3202
        %v3205 = vsel %vm3203, %v3204, %v3202
        %v3206 = vclz %v3205
        %v3207 = vsub.s32 %v3206, 2
        %vm3208 = vcmp.gt.s32.totalorder 0, %v3207
        %v3209 = vsel %vm3208, 0, %v3207
        %v3210 = vsub.s32 32, %v3209
        %v3211 = vshll.u32 %v3202, %v3209
        %v3212 = vshrl.u32 %v3194, %v3210
        %v3213 = vor.u32 %v3211, %v3212
        %v3214 = vsub.s32 4294967266, %v3209
        %v3215 = vadd.s32 %v3214, 127
        %v3216 = vshll.u32 %v3215, 23
        %v3217 = vor.u32 4788187, %v3216
        %v3218 = vand.u32 2147483647, %v3217
        %v3220 = vcvt.s32.f32 %v3213
        %v3221 = vmul.f32 %v3220, %v3218
        %v3222 = vxor.u32 %v3221, 2147483648
        %v3223 = vsel %vm3140, %v3222, %v3221
        %v3224 = vsub.s32 4, %v3200
        %v3225 = vsel %vm3140, %v3224, %v3200
        %v3226 = vsel %vm3139, %v2396, %v3223
        %v3227 = vsel %vm3139, 0, %v3225
        %v3228 = vcosq.f32.pop %v3226
        %v3229 = vsinq.f32.pop %v3226
        %vm3230 = vweird.f32 %v2396
        %v3231 = vadd.s32 %v3227, 3
        %v3232 = vand.u32 %v3231, 3
        %vm3233 = vcmp.lt.s32.totalorder %v3232, 2
        %vm3234 = vcmp.eq.s32.totalorder %v3232, 0
        %v3235 = vxor.u32 %v3229, 2147483648
        %v3236 = vsel %vm3234, %v3228, %v3235
        %vm3237 = vcmp.eq.s32.totalorder %v3232, 2
        %v3238 = vxor.u32 %v3228, 2147483648
        %v3239 = vsel %vm3237, %v3238, %v3229
        %v3240 = vsel %vm3233, %v3236, %v3239
        %v3241 = vsel %vm3230, nan, %v3240
        %v3242 = vand.u32 2147483647, %v2311
        %vm3243 = vcmp.le.f32.partialorder %v3242, 0.7853982
        %vm3244 = vcmp.lt.s32.totalorder %v2311, 0
        %v3245 = vand.u32 %v2311, 2139095040
        %v3246 = vshrl.u32 %v3245, 23
        %v3247 = vsub.s32 %v3246, 127
        %v3248 = vand.u32 2147483647, %v2311
        %v3249 = vand.u32 %v3248, 8388607
        %v3250 = vor.u32 %v3249, 8388608
        %v3251 = vsub.s32 0, %v3250
        %v3252 = vadd.s32 %v3247, 1
        %vm3253 = vcmp.gt.s32.totalorder %v3252, 0
        %v3254 = vsel %vm3253, %v3252, 0
        %v3255 = vshrl.u32 %v3254, 5
        %v3256 = vand.u32 %v3254, 31
        %v3257 = vsub.s32 32, %v3256
        %v3258 = vshrl.u32 683565275, %v3257
        %v3259 = vshll.u32 683565275, %v3256
        %v3260 = vshrl.u32 2475754826, %v3257
        %v3261 = vor.u32 %v3259, %v3260
        %v3262 = vshll.u32 2475754826, %v3256
        %v3263 = vshrl.u32 2131351028, %v3257
        %v3264 = vor.u32 %v3262, %v3263
        %v3265 = vshll.u32 2131351028, %v3256
        %v3266 = vshrl.u32 2102212464, %v3257
        %v3267 = vor.u32 %v3265, %v3266
        %v3268 = vshll.u32 2102212464, %v3256
        %v3269 = vshrl.u32 920167782, %v3257
        %v3270 = vor.u32 %v3268, %v3269
        %v3271 = vshll.u32 920167782, %v3256
        %v3272 = vshrl.u32 1326507024, %v3257
        %v3273 = vor.u32 %v3271, %v3272
        %vm3274 = vcmp.lt.s32.totalorder %v3255, 1
        %vm3275 = vcmp.lt.s32.totalorder %v3255, 2
        %vm3276 = vcmp.lt.s32.totalorder %v3255, 3
        %vm3277 = vcmp.lt.s32.totalorder %v3255, 4
        %v3278 = vsel %vm3274, %v3258, %v3261
        %v3279 = vsel %vm3277, %v3267, 2102212464
        %v3280 = vsel %vm3276, %v3264, %v3279
        %v3281 = vsel %vm3275, %v3278, %v3280
        %v3282 = vsel %vm3274, %v3261, %v3264
        %v3283 = vsel %vm3277, %v3270, 920167782
        %v3284 = vsel %vm3276, %v3267, %v3283
        %v3285 = vsel %vm3275, %v3282, %v3284
        %v3286 = vsel %vm3274, %v3264, %v3267
        %v3287 = vsel %vm3277, %v3273, 1326507024
        %v3288 = vsel %vm3276, %v3270, %v3287
        %v3289 = vsel %vm3275, %v3286, %v3288
        %v3290 = vshll.u32 %v3250, 8
        %v3291 = vmul.u32.u64.compose %v3290, %v3289
        %v3292 = vextract.low.u32 %v3291
        %v3293 = vextract.high.u32 %v3291
        %v3294 = vmul.u32.u64.compose %v3290, %v3285
        %v3295 = vextract.low.u32 %v3294
        %v3296 = vextract.high.u32 %v3294
        %v3297 = vmul.u32 %v3290, %v3281
        %v3298 = vadd.s32 %v3293, %v3295
        %vm3299 = vc.u32 %v3293, %v3295
        %v3300 = vadd.s32 %v3296, 1
        %v3301 = vsel %vm3299, %v3300, %v3296
        %v3302 = vadd.s32 %v3297, %v3301
        %v3303 = vadd.s32 %v3302, 536870912
        %v3304 = vshrl.u32 %v3303, 30
        %v3305 = vshll.u32 %v3304, 30
        %v3306 = vsub.s32 %v3302, %v3305
        %vm3307 = vcmp.lt.s32.totalorder %v3306, 0
        %v3308 = vsub.s32 0, %v3306
        %v3309 = vsel %vm3307, %v3308, %v3306
        %v3310 = vclz %v3309
        %v3311 = vsub.s32 %v3310, 2
        %vm3312 = vcmp.gt.s32.totalorder 0, %v3311
        %v3313 = vsel %vm3312, 0, %v3311
        %v3314 = vsub.s32 32, %v3313
        %v3315 = vshll.u32 %v3306, %v3313
        %v3316 = vshrl.u32 %v3298, %v3314
        %v3317 = vor.u32 %v3315, %v3316
        %v3318 = vsub.s32 4294967266, %v3313
        %v3319 = vadd.s32 %v3318, 127
        %v3320 = vshll.u32 %v3319, 23
        %v3321 = vor.u32 4788187, %v3320
        %v3322 = vand.u32 2147483647, %v3321
        %v3324 = vcvt.s32.f32 %v3317
        %v3325 = vmul.f32 %v3324, %v3322
        %v3326 = vxor.u32 %v3325, 2147483648
        %v3327 = vsel %vm3244, %v3326, %v3325
        %v3328 = vsub.s32 4, %v3304
        %v3329 = vsel %vm3244, %v3328, %v3304
        %v3330 = vsel %vm3243, %v2311, %v3327
        %v3331 = vsel %vm3243, 0, %v3329
        %v3332 = vcosq.f32.pop %v3330
        %v3333 = vsinq.f32.pop %v3330
        %vm3334 = vweird.f32 %v2311
        %v3335 = vadd.s32 %v3331, 3
        %v3336 = vand.u32 %v3335, 3
        %vm3337 = vcmp.lt.s32.totalorder %v3336, 2
        %vm3338 = vcmp.eq.s32.totalorder %v3336, 0
        %v3339 = vxor.u32 %v3333, 2147483648
        %v3340 = vsel %vm3338, %v3332, %v3339
        %vm3341 = vcmp.eq.s32.totalorder %v3336, 2
        %v3342 = vxor.u32 %v3332, 2147483648
        %v3343 = vsel %vm3341, %v3342, %v3333
        %v3344 = vsel %vm3337, %v3340, %v3343
        %v3345 = vsel %vm3334, nan, %v3344
        %v3346 = vand.u32 2147483647, %v2313
        %vm3347 = vcmp.le.f32.partialorder %v3346, 0.7853982
        %vm3348 = vcmp.lt.s32.totalorder %v2313, 0
        %v3349 = vand.u32 %v2313, 2139095040
        %v3350 = vshrl.u32 %v3349, 23
        %v3351 = vsub.s32 %v3350, 127
        %v3352 = vand.u32 2147483647, %v2313
        %v3353 = vand.u32 %v3352, 8388607
        %v3354 = vor.u32 %v3353, 8388608
        %v3355 = vsub.s32 0, %v3354
        %v3356 = vadd.s32 %v3351, 1
        %vm3357 = vcmp.gt.s32.totalorder %v3356, 0
        %v3358 = vsel %vm3357, %v3356, 0
        %v3359 = vshrl.u32 %v3358, 5
        %v3360 = vand.u32 %v3358, 31
        %v3361 = vsub.s32 32, %v3360
        %v3362 = vshrl.u32 683565275, %v3361
        %v3363 = vshll.u32 683565275, %v3360
        %v3364 = vshrl.u32 2475754826, %v3361
        %v3365 = vor.u32 %v3363, %v3364
        %v3366 = vshll.u32 2475754826, %v3360
        %v3367 = vshrl.u32 2131351028, %v3361
        %v3368 = vor.u32 %v3366, %v3367
        %v3369 = vshll.u32 2131351028, %v3360
        %v3370 = vshrl.u32 2102212464, %v3361
        %v3371 = vor.u32 %v3369, %v3370
        %v3372 = vshll.u32 2102212464, %v3360
        %v3373 = vshrl.u32 920167782, %v3361
        %v3374 = vor.u32 %v3372, %v3373
        %v3375 = vshll.u32 920167782, %v3360
        %v3376 = vshrl.u32 1326507024, %v3361
        %v3377 = vor.u32 %v3375, %v3376
        %vm3378 = vcmp.lt.s32.totalorder %v3359, 1
        %vm3379 = vcmp.lt.s32.totalorder %v3359, 2
        %vm3380 = vcmp.lt.s32.totalorder %v3359, 3
        %vm3381 = vcmp.lt.s32.totalorder %v3359, 4
        %v3382 = vsel %vm3378, %v3362, %v3365
        %v3383 = vsel %vm3381, %v3371, 2102212464
        %v3384 = vsel %vm3380, %v3368, %v3383
        %v3385 = vsel %vm3379, %v3382, %v3384
        %v3386 = vsel %vm3378, %v3365, %v3368
        %v3387 = vsel %vm3381, %v3374, 920167782
        %v3388 = vsel %vm3380, %v3371, %v3387
        %v3389 = vsel %vm3379, %v3386, %v3388
        %v3390 = vsel %vm3378, %v3368, %v3371
        %v3391 = vsel %vm3381, %v3377, 1326507024
        %v3392 = vsel %vm3380, %v3374, %v3391
        %v3393 = vsel %vm3379, %v3390, %v3392
        %v3394 = vshll.u32 %v3354, 8
        %v3395 = vmul.u32.u64.compose %v3394, %v3393
        %v3396 = vextract.low.u32 %v3395
        %v3397 = vextract.high.u32 %v3395
        %v3398 = vmul.u32.u64.compose %v3394, %v3389
        %v3399 = vextract.low.u32 %v3398
        %v3400 = vextract.high.u32 %v3398
        %v3401 = vmul.u32 %v3394, %v3385
        %v3402 = vadd.s32 %v3397, %v3399
        %vm3403 = vc.u32 %v3397, %v3399
        %v3404 = vadd.s32 %v3400, 1
        %v3405 = vsel %vm3403, %v3404, %v3400
        %v3406 = vadd.s32 %v3401, %v3405
        %v3407 = vadd.s32 %v3406, 536870912
        %v3408 = vshrl.u32 %v3407, 30
        %v3409 = vshll.u32 %v3408, 30
        %v3410 = vsub.s32 %v3406, %v3409
        %vm3411 = vcmp.lt.s32.totalorder %v3410, 0
        %v3412 = vsub.s32 0, %v3410
        %v3413 = vsel %vm3411, %v3412, %v3410
        %v3414 = vclz %v3413
        %v3415 = vsub.s32 %v3414, 2
        %vm3416 = vcmp.gt.s32.totalorder 0, %v3415
        %v3417 = vsel %vm3416, 0, %v3415
        %v3418 = vsub.s32 32, %v3417
        %v3419 = vshll.u32 %v3410, %v3417
        %v3420 = vshrl.u32 %v3402, %v3418
        %v3421 = vor.u32 %v3419, %v3420
        %v3422 = vsub.s32 4294967266, %v3417
        %v3423 = vadd.s32 %v3422, 127
        %v3424 = vshll.u32 %v3423, 23
        %v3425 = vor.u32 4788187, %v3424
        %v3426 = vand.u32 2147483647, %v3425
        %v3428 = vcvt.s32.f32 %v3421
        %v3429 = vmul.f32 %v3428, %v3426
        %v3430 = vxor.u32 %v3429, 2147483648
        %v3431 = vsel %vm3348, %v3430, %v3429
        %v3432 = vsub.s32 4, %v3408
        %v3433 = vsel %vm3348, %v3432, %v3408
        %v3434 = vsel %vm3347, %v2313, %v3431
        %v3435 = vsel %vm3347, 0, %v3433
        %v3436 = vcosq.f32.pop %v3434
        %v3437 = vsinq.f32.pop %v3434
        %vm3438 = vweird.f32 %v2313
        %v3439 = vadd.s32 %v3435, 3
        %v3440 = vand.u32 %v3439, 3
        %vm3441 = vcmp.lt.s32.totalorder %v3440, 2
        %vm3442 = vcmp.eq.s32.totalorder %v3440, 0
        %v3443 = vxor.u32 %v3437, 2147483648
        %v3444 = vsel %vm3442, %v3436, %v3443
        %vm3445 = vcmp.eq.s32.totalorder %v3440, 2
        %v3446 = vxor.u32 %v3436, 2147483648
        %v3447 = vsel %vm3445, %v3446, %v3437
        %v3448 = vsel %vm3441, %v3444, %v3447
        %v3449 = vsel %vm3438, nan, %v3448
        %v3450 = vand.u32 2147483647, %v2400
        %vm3451 = vcmp.le.f32.partialorder %v3450, 0.7853982
        %vm3452 = vcmp.lt.s32.totalorder %v2400, 0
        %v3453 = vand.u32 %v2400, 2139095040
        %v3454 = vshrl.u32 %v3453, 23
        %v3455 = vsub.s32 %v3454, 127
        %v3456 = vand.u32 2147483647, %v2400
        %v3457 = vand.u32 %v3456, 8388607
        %v3458 = vor.u32 %v3457, 8388608
        %v3459 = vsub.s32 0, %v3458
        %v3460 = vadd.s32 %v3455, 1
        %vm3461 = vcmp.gt.s32.totalorder %v3460, 0
        %v3462 = vsel %vm3461, %v3460, 0
        %v3463 = vshrl.u32 %v3462, 5
        %v3464 = vand.u32 %v3462, 31
        %v3465 = vsub.s32 32, %v3464
        %v3466 = vshrl.u32 683565275, %v3465
        %v3467 = vshll.u32 683565275, %v3464
        %v3468 = vshrl.u32 2475754826, %v3465
        %v3469 = vor.u32 %v3467, %v3468
        %v3470 = vshll.u32 2475754826, %v3464
        %v3471 = vshrl.u32 2131351028, %v3465
        %v3472 = vor.u32 %v3470, %v3471
        %v3473 = vshll.u32 2131351028, %v3464
        %v3474 = vshrl.u32 2102212464, %v3465
        %v3475 = vor.u32 %v3473, %v3474
        %v3476 = vshll.u32 2102212464, %v3464
        %v3477 = vshrl.u32 920167782, %v3465
        %v3478 = vor.u32 %v3476, %v3477
        %v3479 = vshll.u32 920167782, %v3464
        %v3480 = vshrl.u32 1326507024, %v3465
        %v3481 = vor.u32 %v3479, %v3480
        %vm3482 = vcmp.lt.s32.totalorder %v3463, 1
        %vm3483 = vcmp.lt.s32.totalorder %v3463, 2
        %vm3484 = vcmp.lt.s32.totalorder %v3463, 3
        %vm3485 = vcmp.lt.s32.totalorder %v3463, 4
        %v3486 = vsel %vm3482, %v3466, %v3469
        %v3487 = vsel %vm3485, %v3475, 2102212464
        %v3488 = vsel %vm3484, %v3472, %v3487
        %v3489 = vsel %vm3483, %v3486, %v3488
        %v3490 = vsel %vm3482, %v3469, %v3472
        %v3491 = vsel %vm3485, %v3478, 920167782
        %v3492 = vsel %vm3484, %v3475, %v3491
        %v3493 = vsel %vm3483, %v3490, %v3492
        %v3494 = vsel %vm3482, %v3472, %v3475
        %v3495 = vsel %vm3485, %v3481, 1326507024
        %v3496 = vsel %vm3484, %v3478, %v3495
        %v3497 = vsel %vm3483, %v3494, %v3496
        %v3498 = vshll.u32 %v3458, 8
        %v3499 = vmul.u32.u64.compose %v3498, %v3497
        %v3500 = vextract.low.u32 %v3499
        %v3501 = vextract.high.u32 %v3499
        %v3502 = vmul.u32.u64.compose %v3498, %v3493
        %v3503 = vextract.low.u32 %v3502
        %v3504 = vextract.high.u32 %v3502
        %v3505 = vmul.u32 %v3498, %v3489
        %v3506 = vadd.s32 %v3501, %v3503
        %vm3507 = vc.u32 %v3501, %v3503
        %v3508 = vadd.s32 %v3504, 1
        %v3509 = vsel %vm3507, %v3508, %v3504
        %v3510 = vadd.s32 %v3505, %v3509
        %v3511 = vadd.s32 %v3510, 536870912
        %v3512 = vshrl.u32 %v3511, 30
        %v3513 = vshll.u32 %v3512, 30
        %v3514 = vsub.s32 %v3510, %v3513
        %vm3515 = vcmp.lt.s32.totalorder %v3514, 0
        %v3516 = vsub.s32 0, %v3514
        %v3517 = vsel %vm3515, %v3516, %v3514
        %v3518 = vclz %v3517
        %v3519 = vsub.s32 %v3518, 2
        %vm3520 = vcmp.gt.s32.totalorder 0, %v3519
        %v3521 = vsel %vm3520, 0, %v3519
        %v3522 = vsub.s32 32, %v3521
        %v3523 = vshll.u32 %v3514, %v3521
        %v3524 = vshrl.u32 %v3506, %v3522
        %v3525 = vor.u32 %v3523, %v3524
        %v3526 = vsub.s32 4294967266, %v3521
        %v3527 = vadd.s32 %v3526, 127
        %v3528 = vshll.u32 %v3527, 23
        %v3529 = vor.u32 4788187, %v3528
        %v3530 = vand.u32 2147483647, %v3529
        %v3532 = vcvt.s32.f32 %v3525
        %v3533 = vmul.f32 %v3532, %v3530
        %v3534 = vxor.u32 %v3533, 2147483648
        %v3535 = vsel %vm3452, %v3534, %v3533
        %v3536 = vsub.s32 4, %v3512
        %v3537 = vsel %vm3452, %v3536, %v3512
        %v3538 = vsel %vm3451, %v2400, %v3535
        %v3539 = vsel %vm3451, 0, %v3537
        %v3540 = vcosq.f32.pop %v3538
        %v3541 = vsinq.f32.pop %v3538
        %vm3542 = vweird.f32 %v2400
        %v3543 = vadd.s32 %v3539, 3
        %v3544 = vand.u32 %v3543, 3
        %vm3545 = vcmp.lt.s32.totalorder %v3544, 2
        %vm3546 = vcmp.eq.s32.totalorder %v3544, 0
        %v3547 = vxor.u32 %v3541, 2147483648
        %v3548 = vsel %vm3546, %v3540, %v3547
        %vm3549 = vcmp.eq.s32.totalorder %v3544, 2
        %v3550 = vxor.u32 %v3540, 2147483648
        %v3551 = vsel %vm3549, %v3550, %v3541
        %v3552 = vsel %vm3545, %v3548, %v3551
        %v3553 = vsel %vm3542, nan, %v3552
        %v3554 = vand.u32 2147483647, %v2402
        %vm3555 = vcmp.le.f32.partialorder %v3554, 0.7853982
        %vm3556 = vcmp.lt.s32.totalorder %v2402, 0
        %v3557 = vand.u32 %v2402, 2139095040
        %v3558 = vshrl.u32 %v3557, 23
        %v3559 = vsub.s32 %v3558, 127
        %v3560 = vand.u32 2147483647, %v2402
        %v3561 = vand.u32 %v3560, 8388607
        %v3562 = vor.u32 %v3561, 8388608
        %v3563 = vsub.s32 0, %v3562
        %v3564 = vadd.s32 %v3559, 1
        %vm3565 = vcmp.gt.s32.totalorder %v3564, 0
        %v3566 = vsel %vm3565, %v3564, 0
        %v3567 = vshrl.u32 %v3566, 5
        %v3568 = vand.u32 %v3566, 31
        %v3569 = vsub.s32 32, %v3568
        %v3570 = vshrl.u32 683565275, %v3569
        %v3571 = vshll.u32 683565275, %v3568
        %v3572 = vshrl.u32 2475754826, %v3569
        %v3573 = vor.u32 %v3571, %v3572
        %v3574 = vshll.u32 2475754826, %v3568
        %v3575 = vshrl.u32 2131351028, %v3569
        %v3576 = vor.u32 %v3574, %v3575
        %v3577 = vshll.u32 2131351028, %v3568
        %v3578 = vshrl.u32 2102212464, %v3569
        %v3579 = vor.u32 %v3577, %v3578
        %v3580 = vshll.u32 2102212464, %v3568
        %v3581 = vshrl.u32 920167782, %v3569
        %v3582 = vor.u32 %v3580, %v3581
        %v3583 = vshll.u32 920167782, %v3568
        %v3584 = vshrl.u32 1326507024, %v3569
        %v3585 = vor.u32 %v3583, %v3584
        %vm3586 = vcmp.lt.s32.totalorder %v3567, 1
        %vm3587 = vcmp.lt.s32.totalorder %v3567, 2
        %vm3588 = vcmp.lt.s32.totalorder %v3567, 3
        %vm3589 = vcmp.lt.s32.totalorder %v3567, 4
        %v3590 = vsel %vm3586, %v3570, %v3573
        %v3591 = vsel %vm3589, %v3579, 2102212464
        %v3592 = vsel %vm3588, %v3576, %v3591
        %v3593 = vsel %vm3587, %v3590, %v3592
        %v3594 = vsel %vm3586, %v3573, %v3576
        %v3595 = vsel %vm3589, %v3582, 920167782
        %v3596 = vsel %vm3588, %v3579, %v3595
        %v3597 = vsel %vm3587, %v3594, %v3596
        %v3598 = vsel %vm3586, %v3576, %v3579
        %v3599 = vsel %vm3589, %v3585, 1326507024
        %v3600 = vsel %vm3588, %v3582, %v3599
        %v3601 = vsel %vm3587, %v3598, %v3600
        %v3602 = vshll.u32 %v3562, 8
        %v3603 = vmul.u32.u64.compose %v3602, %v3601
        %v3604 = vextract.low.u32 %v3603
        %v3605 = vextract.high.u32 %v3603
        %v3606 = vmul.u32.u64.compose %v3602, %v3597
        %v3607 = vextract.low.u32 %v3606
        %v3608 = vextract.high.u32 %v3606
        %v3609 = vmul.u32 %v3602, %v3593
        %v3610 = vadd.s32 %v3605, %v3607
        %vm3611 = vc.u32 %v3605, %v3607
        %v3612 = vadd.s32 %v3608, 1
        %v3613 = vsel %vm3611, %v3612, %v3608
        %v3614 = vadd.s32 %v3609, %v3613
        %v3615 = vadd.s32 %v3614, 536870912
        %v3616 = vshrl.u32 %v3615, 30
        %v3617 = vshll.u32 %v3616, 30
        %v3618 = vsub.s32 %v3614, %v3617
        %vm3619 = vcmp.lt.s32.totalorder %v3618, 0
        %v3620 = vsub.s32 0, %v3618
        %v3621 = vsel %vm3619, %v3620, %v3618
        %v3622 = vclz %v3621
        %v3623 = vsub.s32 %v3622, 2
        %vm3624 = vcmp.gt.s32.totalorder 0, %v3623
        %v3625 = vsel %vm3624, 0, %v3623
        %v3626 = vsub.s32 32, %v3625
        %v3627 = vshll.u32 %v3618, %v3625
        %v3628 = vshrl.u32 %v3610, %v3626
        %v3629 = vor.u32 %v3627, %v3628
        %v3630 = vsub.s32 4294967266, %v3625
        %v3631 = vadd.s32 %v3630, 127
        %v3632 = vshll.u32 %v3631, 23
        %v3633 = vor.u32 4788187, %v3632
        %v3634 = vand.u32 2147483647, %v3633
        %v3636 = vcvt.s32.f32 %v3629
        %v3637 = vmul.f32 %v3636, %v3634
        %v3638 = vxor.u32 %v3637, 2147483648
        %v3639 = vsel %vm3556, %v3638, %v3637
        %v3640 = vsub.s32 4, %v3616
        %v3641 = vsel %vm3556, %v3640, %v3616
        %v3642 = vsel %vm3555, %v2402, %v3639
        %v3643 = vsel %vm3555, 0, %v3641
        %v3644 = vcosq.f32.pop %v3642
        %v3645 = vsinq.f32.pop %v3642
        %vm3646 = vweird.f32 %v2402
        %v3647 = vadd.s32 %v3643, 3
        %v3648 = vand.u32 %v3647, 3
        %vm3649 = vcmp.lt.s32.totalorder %v3648, 2
        %vm3650 = vcmp.eq.s32.totalorder %v3648, 0
        %v3651 = vxor.u32 %v3645, 2147483648
        %v3652 = vsel %vm3650, %v3644, %v3651
        %vm3653 = vcmp.eq.s32.totalorder %v3648, 2
        %v3654 = vxor.u32 %v3644, 2147483648
        %v3655 = vsel %vm3653, %v3654, %v3645
        %v3656 = vsel %vm3649, %v3652, %v3655
        %v3657 = vsel %vm3646, nan, %v3656
        %v3658 = vand.u32 2147483647, %v2317
        %vm3659 = vcmp.le.f32.partialorder %v3658, 0.7853982
        %vm3660 = vcmp.lt.s32.totalorder %v2317, 0
        %v3661 = vand.u32 %v2317, 2139095040
        %v3662 = vshrl.u32 %v3661, 23
        %v3663 = vsub.s32 %v3662, 127
        %v3664 = vand.u32 2147483647, %v2317
        %v3665 = vand.u32 %v3664, 8388607
        %v3666 = vor.u32 %v3665, 8388608
        %v3667 = vsub.s32 0, %v3666
        %v3668 = vadd.s32 %v3663, 1
        %vm3669 = vcmp.gt.s32.totalorder %v3668, 0
        %v3670 = vsel %vm3669, %v3668, 0
        %v3671 = vshrl.u32 %v3670, 5
        %v3672 = vand.u32 %v3670, 31
        %v3673 = vsub.s32 32, %v3672
        %v3674 = vshrl.u32 683565275, %v3673
        %v3675 = vshll.u32 683565275, %v3672
        %v3676 = vshrl.u32 2475754826, %v3673
        %v3677 = vor.u32 %v3675, %v3676
        %v3678 = vshll.u32 2475754826, %v3672
        %v3679 = vshrl.u32 2131351028, %v3673
        %v3680 = vor.u32 %v3678, %v3679
        %v3681 = vshll.u32 2131351028, %v3672
        %v3682 = vshrl.u32 2102212464, %v3673
        %v3683 = vor.u32 %v3681, %v3682
        %v3684 = vshll.u32 2102212464, %v3672
        %v3685 = vshrl.u32 920167782, %v3673
        %v3686 = vor.u32 %v3684, %v3685
        %v3687 = vshll.u32 920167782, %v3672
        %v3688 = vshrl.u32 1326507024, %v3673
        %v3689 = vor.u32 %v3687, %v3688
        %vm3690 = vcmp.lt.s32.totalorder %v3671, 1
        %vm3691 = vcmp.lt.s32.totalorder %v3671, 2
        %vm3692 = vcmp.lt.s32.totalorder %v3671, 3
        %vm3693 = vcmp.lt.s32.totalorder %v3671, 4
        %v3694 = vsel %vm3690, %v3674, %v3677
        %v3695 = vsel %vm3693, %v3683, 2102212464
        %v3696 = vsel %vm3692, %v3680, %v3695
        %v3697 = vsel %vm3691, %v3694, %v3696
        %v3698 = vsel %vm3690, %v3677, %v3680
        %v3699 = vsel %vm3693, %v3686, 920167782
        %v3700 = vsel %vm3692, %v3683, %v3699
        %v3701 = vsel %vm3691, %v3698, %v3700
        %v3702 = vsel %vm3690, %v3680, %v3683
        %v3703 = vsel %vm3693, %v3689, 1326507024
        %v3704 = vsel %vm3692, %v3686, %v3703
        %v3705 = vsel %vm3691, %v3702, %v3704
        %v3706 = vshll.u32 %v3666, 8
        %v3707 = vmul.u32.u64.compose %v3706, %v3705
        %v3708 = vextract.low.u32 %v3707
        %v3709 = vextract.high.u32 %v3707
        %v3710 = vmul.u32.u64.compose %v3706, %v3701
        %v3711 = vextract.low.u32 %v3710
        %v3712 = vextract.high.u32 %v3710
        %v3713 = vmul.u32 %v3706, %v3697
        %v3714 = vadd.s32 %v3709, %v3711
        %vm3715 = vc.u32 %v3709, %v3711
        %v3716 = vadd.s32 %v3712, 1
        %v3717 = vsel %vm3715, %v3716, %v3712
        %v3718 = vadd.s32 %v3713, %v3717
        %v3719 = vadd.s32 %v3718, 536870912
        %v3720 = vshrl.u32 %v3719, 30
        %v3721 = vshll.u32 %v3720, 30
        %v3722 = vsub.s32 %v3718, %v3721
        %vm3723 = vcmp.lt.s32.totalorder %v3722, 0
        %v3724 = vsub.s32 0, %v3722
        %v3725 = vsel %vm3723, %v3724, %v3722
        %v3726 = vclz %v3725
        %v3727 = vsub.s32 %v3726, 2
        %vm3728 = vcmp.gt.s32.totalorder 0, %v3727
        %v3729 = vsel %vm3728, 0, %v3727
        %v3730 = vsub.s32 32, %v3729
        %v3731 = vshll.u32 %v3722, %v3729
        %v3732 = vshrl.u32 %v3714, %v3730
        %v3733 = vor.u32 %v3731, %v3732
        %v3734 = vsub.s32 4294967266, %v3729
        %v3735 = vadd.s32 %v3734, 127
        %v3736 = vshll.u32 %v3735, 23
        %v3737 = vor.u32 4788187, %v3736
        %v3738 = vand.u32 2147483647, %v3737
        %v3740 = vcvt.s32.f32 %v3733
        %v3741 = vmul.f32 %v3740, %v3738
        %v3742 = vxor.u32 %v3741, 2147483648
        %v3743 = vsel %vm3660, %v3742, %v3741
        %v3744 = vsub.s32 4, %v3720
        %v3745 = vsel %vm3660, %v3744, %v3720
        %v3746 = vsel %vm3659, %v2317, %v3743
        %v3747 = vsel %vm3659, 0, %v3745
        %v3748 = vcosq.f32.pop %v3746
        %v3749 = vsinq.f32.pop %v3746
        %vm3750 = vweird.f32 %v2317
        %v3751 = vadd.s32 %v3747, 3
        %v3752 = vand.u32 %v3751, 3
        %vm3753 = vcmp.lt.s32.totalorder %v3752, 2
        %vm3754 = vcmp.eq.s32.totalorder %v3752, 0
        %v3755 = vxor.u32 %v3749, 2147483648
        %v3756 = vsel %vm3754, %v3748, %v3755
        %vm3757 = vcmp.eq.s32.totalorder %v3752, 2
        %v3758 = vxor.u32 %v3748, 2147483648
        %v3759 = vsel %vm3757, %v3758, %v3749
        %v3760 = vsel %vm3753, %v3756, %v3759
        %v3761 = vsel %vm3750, nan, %v3760
        %v3762 = vand.u32 2147483647, %v2319
        %vm3763 = vcmp.le.f32.partialorder %v3762, 0.7853982
        %vm3764 = vcmp.lt.s32.totalorder %v2319, 0
        %v3765 = vand.u32 %v2319, 2139095040
        %v3766 = vshrl.u32 %v3765, 23
        %v3767 = vsub.s32 %v3766, 127
        %v3768 = vand.u32 2147483647, %v2319
        %v3769 = vand.u32 %v3768, 8388607
        %v3770 = vor.u32 %v3769, 8388608
        %v3771 = vsub.s32 0, %v3770
        %v3772 = vadd.s32 %v3767, 1
        %vm3773 = vcmp.gt.s32.totalorder %v3772, 0
        %v3774 = vsel %vm3773, %v3772, 0
        %v3775 = vshrl.u32 %v3774, 5
        %v3776 = vand.u32 %v3774, 31
        %v3777 = vsub.s32 32, %v3776
        %v3778 = vshrl.u32 683565275, %v3777
        %v3779 = vshll.u32 683565275, %v3776
        %v3780 = vshrl.u32 2475754826, %v3777
        %v3781 = vor.u32 %v3779, %v3780
        %v3782 = vshll.u32 2475754826, %v3776
        %v3783 = vshrl.u32 2131351028, %v3777
        %v3784 = vor.u32 %v3782, %v3783
        %v3785 = vshll.u32 2131351028, %v3776
        %v3786 = vshrl.u32 2102212464, %v3777
        %v3787 = vor.u32 %v3785, %v3786
        %v3788 = vshll.u32 2102212464, %v3776
        %v3789 = vshrl.u32 920167782, %v3777
        %v3790 = vor.u32 %v3788, %v3789
        %v3791 = vshll.u32 920167782, %v3776
        %v3792 = vshrl.u32 1326507024, %v3777
        %v3793 = vor.u32 %v3791, %v3792
        %vm3794 = vcmp.lt.s32.totalorder %v3775, 1
        %vm3795 = vcmp.lt.s32.totalorder %v3775, 2
        %vm3796 = vcmp.lt.s32.totalorder %v3775, 3
        %vm3797 = vcmp.lt.s32.totalorder %v3775, 4
        %v3798 = vsel %vm3794, %v3778, %v3781
        %v3799 = vsel %vm3797, %v3787, 2102212464
        %v3800 = vsel %vm3796, %v3784, %v3799
        %v3801 = vsel %vm3795, %v3798, %v3800
        %v3802 = vsel %vm3794, %v3781, %v3784
        %v3803 = vsel %vm3797, %v3790, 920167782
        %v3804 = vsel %vm3796, %v3787, %v3803
        %v3805 = vsel %vm3795, %v3802, %v3804
        %v3806 = vsel %vm3794, %v3784, %v3787
        %v3807 = vsel %vm3797, %v3793, 1326507024
        %v3808 = vsel %vm3796, %v3790, %v3807
        %v3809 = vsel %vm3795, %v3806, %v3808
        %v3810 = vshll.u32 %v3770, 8
        %v3811 = vmul.u32.u64.compose %v3810, %v3809
        %v3812 = vextract.low.u32 %v3811
        %v3813 = vextract.high.u32 %v3811
        %v3814 = vmul.u32.u64.compose %v3810, %v3805
        %v3815 = vextract.low.u32 %v3814
        %v3816 = vextract.high.u32 %v3814
        %v3817 = vmul.u32 %v3810, %v3801
        %v3818 = vadd.s32 %v3813, %v3815
        %vm3819 = vc.u32 %v3813, %v3815
        %v3820 = vadd.s32 %v3816, 1
        %v3821 = vsel %vm3819, %v3820, %v3816
        %v3822 = vadd.s32 %v3817, %v3821
        %v3823 = vadd.s32 %v3822, 536870912
        %v3824 = vshrl.u32 %v3823, 30
        %v3825 = vshll.u32 %v3824, 30
        %v3826 = vsub.s32 %v3822, %v3825
        %vm3827 = vcmp.lt.s32.totalorder %v3826, 0
        %v3828 = vsub.s32 0, %v3826
        %v3829 = vsel %vm3827, %v3828, %v3826
        %v3830 = vclz %v3829
        %v3831 = vsub.s32 %v3830, 2
        %vm3832 = vcmp.gt.s32.totalorder 0, %v3831
        %v3833 = vsel %vm3832, 0, %v3831
        %v3834 = vsub.s32 32, %v3833
        %v3835 = vshll.u32 %v3826, %v3833
        %v3836 = vshrl.u32 %v3818, %v3834
        %v3837 = vor.u32 %v3835, %v3836
        %v3838 = vsub.s32 4294967266, %v3833
        %v3839 = vadd.s32 %v3838, 127
        %v3840 = vshll.u32 %v3839, 23
        %v3841 = vor.u32 4788187, %v3840
        %v3842 = vand.u32 2147483647, %v3841
        %v3844 = vcvt.s32.f32 %v3837
        %v3845 = vmul.f32 %v3844, %v3842
        %v3846 = vxor.u32 %v3845, 2147483648
        %v3847 = vsel %vm3764, %v3846, %v3845
        %v3848 = vsub.s32 4, %v3824
        %v3849 = vsel %vm3764, %v3848, %v3824
        %v3850 = vsel %vm3763, %v2319, %v3847
        %v3851 = vsel %vm3763, 0, %v3849
        %v3852 = vcosq.f32.pop %v3850
        %v3853 = vsinq.f32.pop %v3850
        %vm3854 = vweird.f32 %v2319
        %v3855 = vadd.s32 %v3851, 3
        %v3856 = vand.u32 %v3855, 3
        %vm3857 = vcmp.lt.s32.totalorder %v3856, 2
        %vm3858 = vcmp.eq.s32.totalorder %v3856, 0
        %v3859 = vxor.u32 %v3853, 2147483648
        %v3860 = vsel %vm3858, %v3852, %v3859
        %vm3861 = vcmp.eq.s32.totalorder %v3856, 2
        %v3862 = vxor.u32 %v3852, 2147483648
        %v3863 = vsel %vm3861, %v3862, %v3853
        %v3864 = vsel %vm3857, %v3860, %v3863
        %v3865 = vsel %vm3854, nan, %v3864
        %v3866 = vand.u32 2147483647, %v2406
        %vm3867 = vcmp.le.f32.partialorder %v3866, 0.7853982
        %vm3868 = vcmp.lt.s32.totalorder %v2406, 0
        %v3869 = vand.u32 %v2406, 2139095040
        %v3870 = vshrl.u32 %v3869, 23
        %v3871 = vsub.s32 %v3870, 127
        %v3872 = vand.u32 2147483647, %v2406
        %v3873 = vand.u32 %v3872, 8388607
        %v3874 = vor.u32 %v3873, 8388608
        %v3875 = vsub.s32 0, %v3874
        %v3876 = vadd.s32 %v3871, 1
        %vm3877 = vcmp.gt.s32.totalorder %v3876, 0
        %v3878 = vsel %vm3877, %v3876, 0
        %v3879 = vshrl.u32 %v3878, 5
        %v3880 = vand.u32 %v3878, 31
        %v3881 = vsub.s32 32, %v3880
        %v3882 = vshrl.u32 683565275, %v3881
        %v3883 = vshll.u32 683565275, %v3880
        %v3884 = vshrl.u32 2475754826, %v3881
        %v3885 = vor.u32 %v3883, %v3884
        %v3886 = vshll.u32 2475754826, %v3880
        %v3887 = vshrl.u32 2131351028, %v3881
        %v3888 = vor.u32 %v3886, %v3887
        %v3889 = vshll.u32 2131351028, %v3880
        %v3890 = vshrl.u32 2102212464, %v3881
        %v3891 = vor.u32 %v3889, %v3890
        %v3892 = vshll.u32 2102212464, %v3880
        %v3893 = vshrl.u32 920167782, %v3881
        %v3894 = vor.u32 %v3892, %v3893
        %v3895 = vshll.u32 920167782, %v3880
        %v3896 = vshrl.u32 1326507024, %v3881
        %v3897 = vor.u32 %v3895, %v3896
        %vm3898 = vcmp.lt.s32.totalorder %v3879, 1
        %vm3899 = vcmp.lt.s32.totalorder %v3879, 2
        %vm3900 = vcmp.lt.s32.totalorder %v3879, 3
        %vm3901 = vcmp.lt.s32.totalorder %v3879, 4
        %v3902 = vsel %vm3898, %v3882, %v3885
        %v3903 = vsel %vm3901, %v3891, 2102212464
        %v3904 = vsel %vm3900, %v3888, %v3903
        %v3905 = vsel %vm3899, %v3902, %v3904
        %v3906 = vsel %vm3898, %v3885, %v3888
        %v3907 = vsel %vm3901, %v3894, 920167782
        %v3908 = vsel %vm3900, %v3891, %v3907
        %v3909 = vsel %vm3899, %v3906, %v3908
        %v3910 = vsel %vm3898, %v3888, %v3891
        %v3911 = vsel %vm3901, %v3897, 1326507024
        %v3912 = vsel %vm3900, %v3894, %v3911
        %v3913 = vsel %vm3899, %v3910, %v3912
        %v3914 = vshll.u32 %v3874, 8
        %v3915 = vmul.u32.u64.compose %v3914, %v3913
        %v3916 = vextract.low.u32 %v3915
        %v3917 = vextract.high.u32 %v3915
        %v3918 = vmul.u32.u64.compose %v3914, %v3909
        %v3919 = vextract.low.u32 %v3918
        %v3920 = vextract.high.u32 %v3918
        %v3921 = vmul.u32 %v3914, %v3905
        %v3922 = vadd.s32 %v3917, %v3919
        %vm3923 = vc.u32 %v3917, %v3919
        %v3924 = vadd.s32 %v3920, 1
        %v3925 = vsel %vm3923, %v3924, %v3920
        %v3926 = vadd.s32 %v3921, %v3925
        %v3927 = vadd.s32 %v3926, 536870912
        %v3928 = vshrl.u32 %v3927, 30
        %v3929 = vshll.u32 %v3928, 30
        %v3930 = vsub.s32 %v3926, %v3929
        %vm3931 = vcmp.lt.s32.totalorder %v3930, 0
        %v3932 = vsub.s32 0, %v3930
        %v3933 = vsel %vm3931, %v3932, %v3930
        %v3934 = vclz %v3933
        %v3935 = vsub.s32 %v3934, 2
        %vm3936 = vcmp.gt.s32.totalorder 0, %v3935
        %v3937 = vsel %vm3936, 0, %v3935
        %v3938 = vsub.s32 32, %v3937
        %v3939 = vshll.u32 %v3930, %v3937
        %v3940 = vshrl.u32 %v3922, %v3938
        %v3941 = vor.u32 %v3939, %v3940
        %v3942 = vsub.s32 4294967266, %v3937
        %v3943 = vadd.s32 %v3942, 127
        %v3944 = vshll.u32 %v3943, 23
        %v3945 = vor.u32 4788187, %v3944
        %v3946 = vand.u32 2147483647, %v3945
        %v3948 = vcvt.s32.f32 %v3941
        %v3949 = vmul.f32 %v3948, %v3946
        %v3950 = vxor.u32 %v3949, 2147483648
        %v3951 = vsel %vm3868, %v3950, %v3949
        %v3952 = vsub.s32 4, %v3928
        %v3953 = vsel %vm3868, %v3952, %v3928
        %v3954 = vsel %vm3867, %v2406, %v3951
        %v3955 = vsel %vm3867, 0, %v3953
        %v3956 = vcosq.f32.pop %v3954
        %v3957 = vsinq.f32.pop %v3954
        %vm3958 = vweird.f32 %v2406
        %v3959 = vadd.s32 %v3955, 3
        %v3960 = vand.u32 %v3959, 3
        %vm3961 = vcmp.lt.s32.totalorder %v3960, 2
        %vm3962 = vcmp.eq.s32.totalorder %v3960, 0
        %v3963 = vxor.u32 %v3957, 2147483648
        %v3964 = vsel %vm3962, %v3956, %v3963
        %vm3965 = vcmp.eq.s32.totalorder %v3960, 2
        %v3966 = vxor.u32 %v3956, 2147483648
        %v3967 = vsel %vm3965, %v3966, %v3957
        %v3968 = vsel %vm3961, %v3964, %v3967
        %v3969 = vsel %vm3958, nan, %v3968
        %v3970 = vand.u32 2147483647, %v2408
        %vm3971 = vcmp.le.f32.partialorder %v3970, 0.7853982
        %vm3972 = vcmp.lt.s32.totalorder %v2408, 0
        %v3973 = vand.u32 %v2408, 2139095040
        %v3974 = vshrl.u32 %v3973, 23
        %v3975 = vsub.s32 %v3974, 127
        %v3976 = vand.u32 2147483647, %v2408
        %v3977 = vand.u32 %v3976, 8388607
        %v3978 = vor.u32 %v3977, 8388608
        %v3979 = vsub.s32 0, %v3978
        %v3980 = vadd.s32 %v3975, 1
        %vm3981 = vcmp.gt.s32.totalorder %v3980, 0
        %v3982 = vsel %vm3981, %v3980, 0
        %v3983 = vshrl.u32 %v3982, 5
        %v3984 = vand.u32 %v3982, 31
        %v3985 = vsub.s32 32, %v3984
        %v3986 = vshrl.u32 683565275, %v3985
        %v3987 = vshll.u32 683565275, %v3984
        %v3988 = vshrl.u32 2475754826, %v3985
        %v3989 = vor.u32 %v3987, %v3988
        %v3990 = vshll.u32 2475754826, %v3984
        %v3991 = vshrl.u32 2131351028, %v3985
        %v3992 = vor.u32 %v3990, %v3991
        %v3993 = vshll.u32 2131351028, %v3984
        %v3994 = vshrl.u32 2102212464, %v3985
        %v3995 = vor.u32 %v3993, %v3994
        %v3996 = vshll.u32 2102212464, %v3984
        %v3997 = vshrl.u32 920167782, %v3985
        %v3998 = vor.u32 %v3996, %v3997
        %v3999 = vshll.u32 920167782, %v3984
        %v4000 = vshrl.u32 1326507024, %v3985
        %v4001 = vor.u32 %v3999, %v4000
        %vm4002 = vcmp.lt.s32.totalorder %v3983, 1
        %vm4003 = vcmp.lt.s32.totalorder %v3983, 2
        %vm4004 = vcmp.lt.s32.totalorder %v3983, 3
        %vm4005 = vcmp.lt.s32.totalorder %v3983, 4
        %v4006 = vsel %vm4002, %v3986, %v3989
        %v4007 = vsel %vm4005, %v3995, 2102212464
        %v4008 = vsel %vm4004, %v3992, %v4007
        %v4009 = vsel %vm4003, %v4006, %v4008
        %v4010 = vsel %vm4002, %v3989, %v3992
        %v4011 = vsel %vm4005, %v3998, 920167782
        %v4012 = vsel %vm4004, %v3995, %v4011
        %v4013 = vsel %vm4003, %v4010, %v4012
        %v4014 = vsel %vm4002, %v3992, %v3995
        %v4015 = vsel %vm4005, %v4001, 1326507024
        %v4016 = vsel %vm4004, %v3998, %v4015
        %v4017 = vsel %vm4003, %v4014, %v4016
        %v4018 = vshll.u32 %v3978, 8
        %v4019 = vmul.u32.u64.compose %v4018, %v4017
        %v4020 = vextract.low.u32 %v4019
        %v4021 = vextract.high.u32 %v4019
        %v4022 = vmul.u32.u64.compose %v4018, %v4013
        %v4023 = vextract.low.u32 %v4022
        %v4024 = vextract.high.u32 %v4022
        %v4025 = vmul.u32 %v4018, %v4009
        %v4026 = vadd.s32 %v4021, %v4023
        %vm4027 = vc.u32 %v4021, %v4023
        %v4028 = vadd.s32 %v4024, 1
        %v4029 = vsel %vm4027, %v4028, %v4024
        %v4030 = vadd.s32 %v4025, %v4029
        %v4031 = vadd.s32 %v4030, 536870912
        %v4032 = vshrl.u32 %v4031, 30
        %v4033 = vshll.u32 %v4032, 30
        %v4034 = vsub.s32 %v4030, %v4033
        %vm4035 = vcmp.lt.s32.totalorder %v4034, 0
        %v4036 = vsub.s32 0, %v4034
        %v4037 = vsel %vm4035, %v4036, %v4034
        %v4038 = vclz %v4037
        %v4039 = vsub.s32 %v4038, 2
        %vm4040 = vcmp.gt.s32.totalorder 0, %v4039
        %v4041 = vsel %vm4040, 0, %v4039
        %v4042 = vsub.s32 32, %v4041
        %v4043 = vshll.u32 %v4034, %v4041
        %v4044 = vshrl.u32 %v4026, %v4042
        %v4045 = vor.u32 %v4043, %v4044
        %v4046 = vsub.s32 4294967266, %v4041
        %v4047 = vadd.s32 %v4046, 127
        %v4048 = vshll.u32 %v4047, 23
        %v4049 = vor.u32 4788187, %v4048
        %v4050 = vand.u32 2147483647, %v4049
        %v4052 = vcvt.s32.f32 %v4045
        %v4053 = vmul.f32 %v4052, %v4050
        %v4054 = vxor.u32 %v4053, 2147483648
        %v4055 = vsel %vm3972, %v4054, %v4053
        %v4056 = vsub.s32 4, %v4032
        %v4057 = vsel %vm3972, %v4056, %v4032
        %v4058 = vsel %vm3971, %v2408, %v4055
        %v4059 = vsel %vm3971, 0, %v4057
        %v4060 = vcosq.f32.pop %v4058
        %v4061 = vsinq.f32.pop %v4058
        %vm4062 = vweird.f32 %v2408
        %v4063 = vadd.s32 %v4059, 3
        %v4064 = vand.u32 %v4063, 3
        %vm4065 = vcmp.lt.s32.totalorder %v4064, 2
        %vm4066 = vcmp.eq.s32.totalorder %v4064, 0
        %v4067 = vxor.u32 %v4061, 2147483648
        %v4068 = vsel %vm4066, %v4060, %v4067
        %vm4069 = vcmp.eq.s32.totalorder %v4064, 2
        %v4070 = vxor.u32 %v4060, 2147483648
        %v4071 = vsel %vm4069, %v4070, %v4061
        %v4072 = vsel %vm4065, %v4068, %v4071
        %v4073 = vsel %vm4062, nan, %v4072
        %v4074 = vld [vmem:[%s5] sm:$0x7]
        %v4075 = vld [vmem:[%s6] sm:$0x7]
        %4077 = vset.pattern.permute.xlu0 0
        %4078 = vperm.xlu0 %4077, %v4075
        %v4079 = vpop.permute.xlu0 %4078
        %v4082 = vsel %vm2219, %v4074, 0
        %4084 = vmatprep.subr.mxu0 %v2617
        %4085 = vmatpush1.msra.mxu0 %v2513
        %4086 = vmatprep.subr.mxu0 %v3033
        %4087 = vmatpush1.msra.mxu0 %v2929
        %4088 = vmatprep.subr.mxu0 %v3449
        %4089 = vmatpush1.msra.mxu0 %v3345
        %4090 = vmatprep.subr.mxu0 %v3865
        %4091 = vmatpush1.msra.mxu0 %v3761
        %4092 = vmatprep.subr.mxu0 0.0
        %4093 = vmatpush1.msra.mxu0 0.0
        %4094 = vmatprep.subr.mxu0 0.0
        %4095 = vmatpush1.msra.mxu0 0.0
        %4096 = vmatprep.subr.mxu0 0.0
        %4097 = vmatpush1.msra.mxu0 0.0
        %4098 = vmatprep.subr.mxu0 0.0
        %4099 = vmatpush1.msra.mxu0 0.0
        %4100 = vmatprep.subr.mxu0 0.0
        %4101 = vmatpush1.msra.mxu0 0.0
        %4102 = vmatprep.subr.mxu0 0.0
        %4103 = vmatpush1.msra.mxu0 0.0
        %4104 = vmatprep.subr.mxu0 0.0
        %4105 = vmatpush1.msra.mxu0 0.0
        %4106 = vmatprep.subr.mxu0 0.0
        %4107 = vmatpush1.msra.mxu0 0.0
        %4108 = vmatprep.subr.mxu0 0.0
        %4109 = vmatpush1.msra.mxu0 0.0
        %4110 = vmatprep.subr.mxu0 0.0
        %4111 = vmatpush1.msra.mxu0 0.0
        %4112 = vmatprep.subr.mxu0 0.0
        %4113 = vmatpush1.msra.mxu0 0.0
        %4114 = vmatprep.subr.mxu0 0.0
        %4115 = vmatpush1.msra.mxu0 0.0
        %4116 = vmatprep.subr.mxu0 0.0
        %4117 = vmatpush1.msra.mxu0 0.0
        %4118 = vmatprep.subr.mxu0 0.0
        %4119 = vmatpush1.msra.mxu0 0.0
        %4120 = vmatprep.subr.mxu0 0.0
        %4121 = vmatpush1.msra.mxu0 0.0
        %4122 = vmatprep.subr.mxu0 0.0
        %4123 = vmatpush1.msra.mxu0 0.0
        %4124 = vmatprep.subr.mxu0 0.0
        %4125 = vmatpush1.msra.mxu0 0.0
        %4126 = vmatprep.subr.mxu0 0.0
        %4127 = vmatpush1.msra.mxu0 0.0
        %4128 = vmatprep.subr.mxu0 0.0
        %4129 = vmatpush1.msra.mxu0 0.0
        %4130 = vmatprep.subr.mxu0 0.0
        %4131 = vmatpush1.msra.mxu0 0.0
        %4132 = vmatprep.subr.mxu0 0.0
        %4133 = vmatpush1.msra.mxu0 0.0
        %4134 = vmatprep.subr.mxu0 0.0
        %4135 = vmatpush1.msra.mxu0 0.0
        %4136 = vmatprep.subr.mxu0 0.0
        %4137 = vmatpush1.msra.mxu0 0.0
        %4138 = vmatprep.subr.mxu0 0.0
        %4139 = vmatpush1.msra.mxu0 0.0
        %4140 = vmatprep.subr.mxu0 0.0
        %4141 = vmatpush1.msra.mxu0 0.0
        %4142 = vmatprep.subr.mxu0 0.0
        %4143 = vmatpush1.msra.mxu0 0.0
        %4144 = vmatprep.subr.mxu0 0.0
        %4145 = vmatpush1.msra.mxu0 0.0
        %4146 = vmatprep.subr.mxu0 0.0
        %4147 = vmatpush1.msra.mxu0 0.0
        %4148 = vmatprep.mubr.f32.mxu0 0.0
        %4149 = vmatmul.mubr.f32.gmra.mrb[0].mxu0 %v4082
        %v4150 = vpop.f32.mrb[0].mxu0
        %v4151 = vadd.f32 %v4079, %v4150
        %v4152 = vpop.f32.mrb[0].mxu0
        %v4153 = vadd.f32 %v4079, %v4152
        %4154 = vdwg.mxu0
        %4155 = vmatprep.subr.mxu0 %v2825
        %4156 = vmatpush1.msra.mxu0 %v2721
        %4157 = vmatprep.subr.mxu0 %v3241
        %4158 = vmatpush1.msra.mxu0 %v3137
        %4159 = vmatprep.subr.mxu0 %v3657
        %4160 = vmatpush1.msra.mxu0 %v3553
        %4161 = vmatprep.subr.mxu0 %v4073
        %4162 = vmatpush1.msra.mxu0 %v3969
        %4163 = vmatprep.subr.mxu0 0.0
        %4164 = vmatpush1.msra.mxu0 0.0
        %4165 = vmatprep.subr.mxu0 0.0
        %4166 = vmatpush1.msra.mxu0 0.0
        %4167 = vmatprep.subr.mxu0 0.0
        %4168 = vmatpush1.msra.mxu0 0.0
        %4169 = vmatprep.subr.mxu0 0.0
        %4170 = vmatpush1.msra.mxu0 0.0
        %4171 = vmatprep.subr.mxu0 0.0
        %4172 = vmatpush1.msra.mxu0 0.0
        %4173 = vmatprep.subr.mxu0 0.0
        %4174 = vmatpush1.msra.mxu0 0.0
        %4175 = vmatprep.subr.mxu0 0.0
        %4176 = vmatpush1.msra.mxu0 0.0
        %4177 = vmatprep.subr.mxu0 0.0
        %4178 = vmatpush1.msra.mxu0 0.0
        %4179 = vmatprep.subr.mxu0 0.0
        %4180 = vmatpush1.msra.mxu0 0.0
        %4181 = vmatprep.subr.mxu0 0.0
        %4182 = vmatpush1.msra.mxu0 0.0
        %4183 = vmatprep.subr.mxu0 0.0
        %4184 = vmatpush1.msra.mxu0 0.0
        %4185 = vmatprep.subr.mxu0 0.0
        %4186 = vmatpush1.msra.mxu0 0.0
        %4187 = vmatprep.subr.mxu0 0.0
        %4188 = vmatpush1.msra.mxu0 0.0
        %4189 = vmatprep.subr.mxu0 0.0
        %4190 = vmatpush1.msra.mxu0 0.0
        %4191 = vmatprep.subr.mxu0 0.0
        %4192 = vmatpush1.msra.mxu0 0.0
        %4193 = vmatprep.subr.mxu0 0.0
        %4194 = vmatpush1.msra.mxu0 0.0
        %4195 = vmatprep.subr.mxu0 0.0
        %4196 = vmatpush1.msra.mxu0 0.0
        %4197 = vmatprep.subr.mxu0 0.0
        %4198 = vmatpush1.msra.mxu0 0.0
        %4199 = vmatprep.subr.mxu0 0.0
        %4200 = vmatpush1.msra.mxu0 0.0
        %4201 = vmatprep.subr.mxu0 0.0
        %4202 = vmatpush1.msra.mxu0 0.0
        %4203 = vmatprep.subr.mxu0 0.0
        %4204 = vmatpush1.msra.mxu0 0.0
        %4205 = vmatprep.subr.mxu0 0.0
        %4206 = vmatpush1.msra.mxu0 0.0
        %4207 = vmatprep.subr.mxu0 0.0
        %4208 = vmatpush1.msra.mxu0 0.0
        %4209 = vmatprep.subr.mxu0 0.0
        %4210 = vmatpush1.msra.mxu0 0.0
        %4211 = vmatprep.subr.mxu0 0.0
        %4212 = vmatpush1.msra.mxu0 0.0
        %4213 = vmatprep.subr.mxu0 0.0
        %4214 = vmatpush1.msra.mxu0 0.0
        %4215 = vmatprep.subr.mxu0 0.0
        %4216 = vmatpush1.msra.mxu0 0.0
        %4217 = vmatprep.subr.mxu0 0.0
        %4218 = vmatpush1.msra.mxu0 0.0
        %4219 = vmatprep.mubr.f32.mxu0 0.0
        %4220 = vmatmul.mubr.f32.gmra.mrb[0].mxu0 %v4082
        %v4221 = vpop.f32.mrb[0].mxu0
        %v4222 = vadd.f32 %v4079, %v4221
        %v4223 = vpop.f32.mrb[0].mxu0
        %v4224 = vadd.f32 %v4079, %v4223
        %4225 = vdwg.mxu0
        %v4230 = vcombine.low %v4151, %v4153
        %v4231 = vcombine.low %v4222, %v4224
        %4234 = vst [vmem:[%s272] sm:$0x77] %v4230
        %4235 = vst [vmem:[%s272 + $0x8] sm:$0x77] %v4231
        %s4236 = sand.u32 %s181, 1
        %s4237 = scalar_lea.sflag [#allocation3], %s4236
        %s4238 = sand.u32 %s181, 1
        %s4239 = smul.addr %s4238, 16
        %s4240 = scalar_lea.vmem [#allocation2], %s4239
        // Predicated region
        $region49: #{tpu_custom_call.1} parent=47 // pred_check
          %p4241 = pneg %p191
        $region50: #{tpu_custom_call.1} parent=47 // pred_check_branch
          %4243 = sbr.rel (%p4241) target = $region52
        $region51: #{tpu_custom_call.1} parent=47 // pred_region
          %s4244 = smul.u32 4, %s21
          %s4246 = ssub.s32 256, 256
          %4247 = vsyncadd %s4237, %s4246
          %s4248 = smul.addr %s4244, 64
          %s4249 = scalar_lea.hbm %s7, %s4248
          %s4251 = sshll.u32 %s4240, 4
          %s4252 = int_to_ptr.vmem [resolvable:$true] %s4251
          %4254 = dma.vmem_to_hbm [thread:$0]  %s4252, 256, %s4249, %s4237
        $region52: #{tpu_custom_call.1} parent=47 // pred_fallthru
          _
      $region48: #{tpu_custom_call.1} parent=5 // pred_fallthru
        _
      %p4255 = scmp.le.s32.totalorder 2, %s16
      // Predicated region
      $region53: #{tpu_custom_call.1} parent=5 // pred_check
        %p4256 = pneg %p4255
      $region54: #{tpu_custom_call.1} parent=5 // pred_check_branch
        %4258 = sbr.rel (%p4256) target = $region56
      $region55: #{tpu_custom_call.1} parent=5 // pred_region
        %s4259 = ssub.s32 %s16, 2
        // Predicated region
        $region57: #{tpu_custom_call.1} parent=55 // pred_check
          %p4260 = pneg %p197
        $region58: #{tpu_custom_call.1} parent=55 // pred_check_branch
          %4262 = sbr.rel (%p4260) target = $region60
        $region59: #{tpu_custom_call.1} parent=55 // pred_region
          %s4263 = sand.u32 %s182, 1
          %s4264 = scalar_lea.sflag [#allocation3], %s4263
          %s4265 = sand.u32 %s182, 1
          %s4266 = smul.addr %s4265, 16
          %s4267 = scalar_lea.vmem [#allocation2], %s4266
          %4268 = dma.done %s4264, 256
        $region60: #{tpu_custom_call.1} parent=55 // pred_fallthru
          _
      $region56: #{tpu_custom_call.1} parent=5 // pred_fallthru
        _
    $region6: #{tpu_custom_call.1} parent=1 // loop_footer
      %s20 = sadd.s32 1, %s16
    $region7: #{tpu_custom_call.1} parent=1 // loop_footer_branch
      %15 = sbr.rel target = $region3
    $region8: #{tpu_custom_call.1} parent=1 // loop_exit
      _
    %4269 = vsyncpa [#allocation3], 1
    %s4270 = scalar_lea.sflag [#allocation3], 1
    %4271 = vsyncpa %s4270, 1

</llo_original>
